<compile_context>
chip_gen: v7x
topology: tpu7x:2x2x1
jax: 0.10.0
libtpu: 0.0.40
codegen_flags: <defaults>
</compile_context>

<pallas_src>
import jax
import jax.numpy as jnp
from jax.experimental import pallas as pl
from jax.experimental.pallas import tpu as pltpu


def resnet_block_kernel(x_ref, w1_ref, s1_ref, b1_ref, w2_ref, s2_ref, b2_ref,
                        out_ref, pad_scr, patch_scr):
    """One image per grid step. x_ref: (1, H, W, C) float32."""
    _, H, W, C = x_ref.shape
    Cout = out_ref.shape[-1]

    x = x_ref[0]                                            # (H, W, C) f32

    def reflect_pad(val):
        # ReflectionPad2d(1): write interior + 4 thin halo strips only.
        pad_scr[1:H + 1, 1:W + 1, :] = val
        # rows: padded row 0 <- val row 1 ; padded row H+1 <- val row H-2
        pad_scr[0:1, 1:W + 1, :] = val[1:2, :, :]
        pad_scr[H + 1:H + 2, 1:W + 1, :] = val[H - 2:H - 1, :, :]
        # cols (after rows so corners come out right):
        # padded col 0 <- padded col 2 ; padded col W+1 <- padded col W-1
        pad_scr[:, 0:1, :] = pad_scr[:, 2:3, :]
        pad_scr[:, W + 1:W + 2, :] = pad_scr[:, W - 1:W, :]

    def conv3x3(w_ref):
        # Build im2col patches (H*W, 9*C) so the conv is ONE matmul with K=9*C.
        for k in range(9):
            dy, dx = k // 3, k % 3
            patch_scr[:, k * C:(k + 1) * C] = (
                pad_scr[dy:dy + H, dx:dx + W, :].reshape(H * W, C))
        return jnp.dot(patch_scr[...].astype(jnp.bfloat16), w_ref[...],
                       preferred_element_type=jnp.float32)

    # conv1 -> bn1 (folded affine) -> relu
    reflect_pad(x)
    out1 = jnp.maximum(conv3x3(w1_ref) * s1_ref[...] + b1_ref[...], 0.0)

    # conv2 -> bn2 (folded affine)
    reflect_pad(out1.reshape(H, W, Cout))
    out2 = conv3x3(w2_ref) * s2_ref[...] + b2_ref[...]

    # ResnetBlock: out = x + conv_block(x)   (no final ReLU)
    out_ref[0] = (x.reshape(H * W, C) + out2).reshape(H, W, Cout)


def resnet_block(x_nchw, w1_oihw, s1, b1, w2_oihw, s2, b2):
    """x_nchw: (N, C, H, W) float32. Returns (N, C, H, W)."""
    N, C, H, W = x_nchw.shape
    Cout = w1_oihw.shape[0]
    assert Cout == C, "ResnetBlock keeps the channel count (dim -> dim)"

    # glue: NCHW -> NHWC (lane dim = C).  TODO(synk): layout change is a wrapper-side XLA copy.
    x_nhwc = jnp.transpose(x_nchw, (0, 2, 3, 1)).astype(jnp.float32)
    # OIHW -> (kH, kW, Cin, Cout) -> (9*Cin, Cout); bf16 MXU operands.
    w1 = jnp.transpose(w1_oihw, (2, 3, 1, 0)).reshape(9 * C, Cout).astype(jnp.bfloat16)
    w2 = jnp.transpose(w2_oihw, (2, 3, 1, 0)).reshape(9 * C, Cout).astype(jnp.bfloat16)
    s1r = s1.reshape(1, Cout).astype(jnp.float32)
    b1r = b1.reshape(1, Cout).astype(jnp.float32)
    s2r = s2.reshape(1, Cout).astype(jnp.float32)
    b2r = b2.reshape(1, Cout).astype(jnp.float32)

    grid_spec = pltpu.PrefetchScalarGridSpec(
        num_scalar_prefetch=0,
        grid=(N,),
        in_specs=[
            pl.BlockSpec((1, H, W, C), lambda n: (n, 0, 0, 0)),   # x (one image / step)
            pl.BlockSpec((9 * C, Cout), lambda n: (0, 0)),        # w1 (resident)
            pl.BlockSpec((1, Cout), lambda n: (0, 0)),            # s1
            pl.BlockSpec((1, Cout), lambda n: (0, 0)),            # b1
            pl.BlockSpec((9 * C, Cout), lambda n: (0, 0)),        # w2
            pl.BlockSpec((1, Cout), lambda n: (0, 0)),            # s2
            pl.BlockSpec((1, Cout), lambda n: (0, 0)),            # b2
        ],
        out_specs=pl.BlockSpec((1, H, W, Cout), lambda n: (n, 0, 0, 0)),
        scratch_shapes=[
            pltpu.VMEM((H + 2, W + 2, C), jnp.float32),   # reflect-padded activation
            pltpu.VMEM((H * W, 9 * C), jnp.float32),      # im2col patches (K = 9*C)
        ],
    )

    out_nhwc = pl.pallas_call(
        resnet_block_kernel,
        out_shape=jax.ShapeDtypeStruct((N, H, W, Cout), jnp.float32),
        grid_spec=grid_spec,
        compiler_params=pltpu.CompilerParams(
            dimension_semantics=("parallel",),       # batch images are independent
            vmem_limit_bytes=32 * 1024 * 1024,       # tiny tiles; safe on v5e/v6e/v7x
        ),
    )(x_nhwc, w1, s1r, b1r, w2, s2r, b2r)

    return jnp.transpose(out_nhwc, (0, 3, 1, 2))


# ----------------------------- references ---------------------------------

def _conv_refpad(x, w, precision=None):
    dn = jax.lax.conv_dimension_numbers(x.shape, w.shape, ('NCHW', 'OIHW', 'NCHW'))
    xp = jnp.pad(x, ((0, 0), (0, 0), (1, 1), (1, 1)), mode='reflect')
    return jax.lax.conv_general_dilated(xp, w, (1, 1), 'VALID',
                                        dimension_numbers=dn, precision=precision)


def reference_f32(x, w1, s1, b1, w2, s2, b2):
    """Pure float32 ResnetBlock reference."""
    hi = jax.lax.Precision.HIGHEST
    out = _conv_refpad(x, w1, hi)
    out = jnp.maximum(out * s1[None, :, None, None] + b1[None, :, None, None], 0.0)
    out = _conv_refpad(out, w2, hi)
    out = out * s2[None, :, None, None] + b2[None, :, None, None]
    return x + out


def reference_bf16(x, w1, s1, b1, w2, s2, b2):
    """Same math with conv operands rounded to bf16 (f32 accumulation), like the kernel."""
    r = lambda a: a.astype(jnp.bfloat16).astype(jnp.float32)
    out = _conv_refpad(r(x), r(w1))
    out = jnp.maximum(out * s1[None, :, None, None] + b1[None, :, None, None], 0.0)
    out = _conv_refpad(r(out), r(w2))
    out = out * s2[None, :, None, None] + b2[None, :, None, None]
    return x + out


if __name__ == "__main__":
    key = jax.random.PRNGKey(0)
    N, C, H, W = 2, 4, 16, 16            # dim = 4, one ResnetBlock
    k_x, k_w1, k_w2 = jax.random.split(key, 3)

    x = jax.random.normal(k_x, (N, C, H, W), jnp.float32)
    w1 = 0.1 * jax.random.normal(k_w1, (C, C, 3, 3), jnp.float32)   # OIHW, bias=False
    w2 = 0.1 * jax.random.normal(k_w2, (C, C, 3, 3), jnp.float32)   # OIHW, bias=False

    # deterministic inference-mode BatchNorm params folded to scale / bias
    eps = 1e-5
    gamma1 = 1.0 + 0.1 * jnp.arange(C, dtype=jnp.float32)
    beta1 = 0.05 * jnp.arange(C, dtype=jnp.float32)
    mean1 = 0.02 * jnp.arange(C, dtype=jnp.float32)
    var1 = 1.0 + 0.05 * jnp.arange(C, dtype=jnp.float32)
    gamma2 = 1.0 - 0.05 * jnp.arange(C, dtype=jnp.float32)
    beta2 = -0.03 * jnp.arange(C, dtype=jnp.float32)
    mean2 = -0.01 * jnp.arange(C, dtype=jnp.float32)
    var2 = 1.0 + 0.02 * jnp.arange(C, dtype=jnp.float32)

    s1 = gamma1 / jnp.sqrt(var1 + eps)
    b1 = beta1 - mean1 * s1
    s2 = gamma2 / jnp.sqrt(var2 + eps)
    b2 = beta2 - mean2 * s2

    out = jax.block_until_ready(resnet_block(x, w1, s1, b1, w2, s2, b2))
    ref_bf = jax.block_until_ready(reference_bf16(x, w1, s1, b1, w2, s2, b2))
    ref_32 = jax.block_until_ready(reference_f32(x, w1, s1, b1, w2, s2, b2))

    assert out.shape == (N, C, H, W)
    # tight check vs. a reference that rounds conv operands to bf16 like the kernel
    assert float(jnp.max(jnp.abs(out - ref_bf))) < 2e-2, "mismatch vs bf16-operand reference"
    # sanity check vs. the pure float32 module semantics
    assert float(jnp.max(jnp.abs(out - ref_32))) < 2e-1, "mismatch vs f32 reference"
    print("KERNEL_OK")
</pallas_src>

<mosaic_0001>
module attributes {stable_mosaic.version = 11 : i64} {
  func.func @resnet_block_kernel(%arg0: i32, %arg1: memref<1x16x16x4xf32, #tpu.memory_space<vmem>>, %arg2: memref<36x4xbf16, #tpu.memory_space<vmem>>, %arg3: memref<1x4xf32, #tpu.memory_space<vmem>>, %arg4: memref<1x4xf32, #tpu.memory_space<vmem>>, %arg5: memref<36x4xbf16, #tpu.memory_space<vmem>>, %arg6: memref<1x4xf32, #tpu.memory_space<vmem>>, %arg7: memref<1x4xf32, #tpu.memory_space<vmem>>, %arg8: memref<1x16x16x4xf32, #tpu.memory_space<vmem>>, %arg9: memref<18x18x4xf32, #tpu.memory_space<vmem>>, %arg10: memref<256x36xf32, #tpu.memory_space<vmem>>) attributes {dimension_semantics = [#tpu.dimension_semantics<parallel>], iteration_bounds = array<i64: 2>, scalar_prefetch = 0 : i64, scratch_operands = 2 : i64, tpu.core_type = #tpu.core_type<tc>, window_params = [{transform_indices = @transform_0, window_bounds = array<i64: 1, 16, 16, 4>}, {pipeline_mode = #tpu.pipeline_mode<synchronous>, transform_indices = @transform_1, window_bounds = array<i64: 36, 4>}, {pipeline_mode = #tpu.pipeline_mode<synchronous>, transform_indices = @transform_2, window_bounds = array<i64: 1, 4>}, {pipeline_mode = #tpu.pipeline_mode<synchronous>, transform_indices = @transform_3, window_bounds = array<i64: 1, 4>}, {pipeline_mode = #tpu.pipeline_mode<synchronous>, transform_indices = @transform_4, window_bounds = array<i64: 36, 4>}, {pipeline_mode = #tpu.pipeline_mode<synchronous>, transform_indices = @transform_5, window_bounds = array<i64: 1, 4>}, {pipeline_mode = #tpu.pipeline_mode<synchronous>, transform_indices = @transform_6, window_bounds = array<i64: 1, 4>}, {transform_indices = @transform_7, window_bounds = array<i64: 1, 16, 16, 4>}]} {
    %c0 = arith.constant 0 : index
    %c0_0 = arith.constant 0 : index
    %c0_1 = arith.constant 0 : index
    %c0_2 = arith.constant 0 : index
    %0 = vector.load %arg1[%c0, %c0_0, %c0_1, %c0_2] : memref<1x16x16x4xf32, #tpu.memory_space<vmem>>, vector<1x16x16x4xf32>
    %1 = vector.shape_cast %0 : vector<1x16x16x4xf32> to vector<16x16x4xf32>
    %c1 = arith.constant 1 : index
    %c1_3 = arith.constant 1 : index
    %c0_4 = arith.constant 0 : index
    %2 = vector.load %arg9[%c1, %c1_3, %c0_4] : memref<18x18x4xf32, #tpu.memory_space<vmem>>, vector<16x16x4xf32>
    tpu.vector_store %arg9[%c1, %c1_3, %c0_4], %1 {strides = array<i32>} : memref<18x18x4xf32, #tpu.memory_space<vmem>>, vector<16x16x4xf32>,
    %3 = vector.extract_strided_slice %1 {offsets = [1, 0, 0], sizes = [1, 16, 4], strides = [1, 1, 1]} : vector<16x16x4xf32> to vector<1x16x4xf32>
    %c0_5 = arith.constant 0 : index
    %c1_6 = arith.constant 1 : index
    %c0_7 = arith.constant 0 : index
    %4 = vector.load %arg9[%c0_5, %c1_6, %c0_7] : memref<18x18x4xf32, #tpu.memory_space<vmem>>, vector<1x16x4xf32>
    tpu.vector_store %arg9[%c0_5, %c1_6, %c0_7], %3 {strides = array<i32>} : memref<18x18x4xf32, #tpu.memory_space<vmem>>, vector<1x16x4xf32>,
    %5 = vector.extract_strided_slice %1 {offsets = [14, 0, 0], sizes = [1, 16, 4], strides = [1, 1, 1]} : vector<16x16x4xf32> to vector<1x16x4xf32>
    %c17 = arith.constant 17 : index
    %c1_8 = arith.constant 1 : index
    %c0_9 = arith.constant 0 : index
    %6 = vector.load %arg9[%c17, %c1_8, %c0_9] : memref<18x18x4xf32, #tpu.memory_space<vmem>>, vector<1x16x4xf32>
    tpu.vector_store %arg9[%c17, %c1_8, %c0_9], %5 {strides = array<i32>} : memref<18x18x4xf32, #tpu.memory_space<vmem>>, vector<1x16x4xf32>,
    %c0_10 = arith.constant 0 : index
    %c2 = arith.constant 2 : index
    %c0_11 = arith.constant 0 : index
    %7 = vector.load %arg9[%c0_10, %c2, %c0_11] : memref<18x18x4xf32, #tpu.memory_space<vmem>>, vector<18x1x4xf32>
    %c0_12 = arith.constant 0 : index
    %c0_13 = arith.constant 0 : index
    %c0_14 = arith.constant 0 : index
    %8 = vector.load %arg9[%c0_12, %c0_13, %c0_14] : memref<18x18x4xf32, #tpu.memory_space<vmem>>, vector<18x1x4xf32>
    tpu.vector_store %arg9[%c0_12, %c0_13, %c0_14], %7 {strides = array<i32>} : memref<18x18x4xf32, #tpu.memory_space<vmem>>, vector<18x1x4xf32>,
    %c0_15 = arith.constant 0 : index
    %c15 = arith.constant 15 : index
    %c0_16 = arith.constant 0 : index
    %9 = vector.load %arg9[%c0_15, %c15, %c0_16] : memref<18x18x4xf32, #tpu.memory_space<vmem>>, vector<18x1x4xf32>
    %c0_17 = arith.constant 0 : index
    %c17_18 = arith.constant 17 : index
    %c0_19 = arith.constant 0 : index
    %10 = vector.load %arg9[%c0_17, %c17_18, %c0_19] : memref<18x18x4xf32, #tpu.memory_space<vmem>>, vector<18x1x4xf32>
    tpu.vector_store %arg9[%c0_17, %c17_18, %c0_19], %9 {strides = array<i32>} : memref<18x18x4xf32, #tpu.memory_space<vmem>>, vector<18x1x4xf32>,
    %c0_20 = arith.constant 0 : index
    %c0_21 = arith.constant 0 : index
    %c0_22 = arith.constant 0 : index
    %11 = vector.load %arg9[%c0_20, %c0_21, %c0_22] : memref<18x18x4xf32, #tpu.memory_space<vmem>>, vector<16x16x4xf32>
    %12 = vector.shape_cast %11 : vector<16x16x4xf32> to vector<256x4xf32>
    %c0_23 = arith.constant 0 : index
    %c0_24 = arith.constant 0 : index
    %13 = vector.load %arg10[%c0_23, %c0_24] : memref<256x36xf32, #tpu.memory_space<vmem>>, vector<256x4xf32>
    tpu.vector_store %arg10[%c0_23, %c0_24], %12 {strides = array<i32>} : memref<256x36xf32, #tpu.memory_space<vmem>>, vector<256x4xf32>,
    %c0_25 = arith.constant 0 : index
    %c1_26 = arith.constant 1 : index
    %c0_27 = arith.constant 0 : index
    %14 = vector.load %arg9[%c0_25, %c1_26, %c0_27] : memref<18x18x4xf32, #tpu.memory_space<vmem>>, vector<16x16x4xf32>
    %15 = vector.shape_cast %14 : vector<16x16x4xf32> to vector<256x4xf32>
    %c0_28 = arith.constant 0 : index
    %c4 = arith.constant 4 : index
    %16 = vector.load %arg10[%c0_28, %c4] : memref<256x36xf32, #tpu.memory_space<vmem>>, vector<256x4xf32>
    tpu.vector_store %arg10[%c0_28, %c4], %15 {strides = array<i32>} : memref<256x36xf32, #tpu.memory_space<vmem>>, vector<256x4xf32>,
    %c0_29 = arith.constant 0 : index
    %c2_30 = arith.constant 2 : index
    %c0_31 = arith.constant 0 : index
    %17 = vector.load %arg9[%c0_29, %c2_30, %c0_31] : memref<18x18x4xf32, #tpu.memory_space<vmem>>, vector<16x16x4xf32>
    %18 = vector.shape_cast %17 : vector<16x16x4xf32> to vector<256x4xf32>
    %c0_32 = arith.constant 0 : index
    %c8 = arith.constant 8 : index
    %19 = vector.load %arg10[%c0_32, %c8] : memref<256x36xf32, #tpu.memory_space<vmem>>, vector<256x4xf32>
    tpu.vector_store %arg10[%c0_32, %c8], %18 {strides = array<i32>} : memref<256x36xf32, #tpu.memory_space<vmem>>, vector<256x4xf32>,
    %c1_33 = arith.constant 1 : index
    %c0_34 = arith.constant 0 : index
    %c0_35 = arith.constant 0 : index
    %20 = vector.load %arg9[%c1_33, %c0_34, %c0_35] : memref<18x18x4xf32, #tpu.memory_space<vmem>>, vector<16x16x4xf32>
    %21 = vector.shape_cast %20 : vector<16x16x4xf32> to vector<256x4xf32>
    %c0_36 = arith.constant 0 : index
    %c12 = arith.constant 12 : index
    %22 = vector.load %arg10[%c0_36, %c12] : memref<256x36xf32, #tpu.memory_space<vmem>>, vector<256x4xf32>
    tpu.vector_store %arg10[%c0_36, %c12], %21 {strides = array<i32>} : memref<256x36xf32, #tpu.memory_space<vmem>>, vector<256x4xf32>,
    %c1_37 = arith.constant 1 : index
    %c1_38 = arith.constant 1 : index
    %c0_39 = arith.constant 0 : index
    %23 = vector.load %arg9[%c1_37, %c1_38, %c0_39] : memref<18x18x4xf32, #tpu.memory_space<vmem>>, vector<16x16x4xf32>
    %24 = vector.shape_cast %23 : vector<16x16x4xf32> to vector<256x4xf32>
    %c0_40 = arith.constant 0 : index
    %c16 = arith.constant 16 : index
    %25 = vector.load %arg10[%c0_40, %c16] : memref<256x36xf32, #tpu.memory_space<vmem>>, vector<256x4xf32>
    tpu.vector_store %arg10[%c0_40, %c16], %24 {strides = array<i32>} : memref<256x36xf32, #tpu.memory_space<vmem>>, vector<256x4xf32>,
    %c1_41 = arith.constant 1 : index
    %c2_42 = arith.constant 2 : index
    %c0_43 = arith.constant 0 : index
    %26 = vector.load %arg9[%c1_41, %c2_42, %c0_43] : memref<18x18x4xf32, #tpu.memory_space<vmem>>, vector<16x16x4xf32>
    %27 = vector.shape_cast %26 : vector<16x16x4xf32> to vector<256x4xf32>
    %c0_44 = arith.constant 0 : index
    %c20 = arith.constant 20 : index
    %28 = vector.load %arg10[%c0_44, %c20] : memref<256x36xf32, #tpu.memory_space<vmem>>, vector<256x4xf32>
    tpu.vector_store %arg10[%c0_44, %c20], %27 {strides = array<i32>} : memref<256x36xf32, #tpu.memory_space<vmem>>, vector<256x4xf32>,
    %c2_45 = arith.constant 2 : index
    %c0_46 = arith.constant 0 : index
    %c0_47 = arith.constant 0 : index
    %29 = vector.load %arg9[%c2_45, %c0_46, %c0_47] : memref<18x18x4xf32, #tpu.memory_space<vmem>>, vector<16x16x4xf32>
    %30 = vector.shape_cast %29 : vector<16x16x4xf32> to vector<256x4xf32>
    %c0_48 = arith.constant 0 : index
    %c24 = arith.constant 24 : index
    %31 = vector.load %arg10[%c0_48, %c24] : memref<256x36xf32, #tpu.memory_space<vmem>>, vector<256x4xf32>
    tpu.vector_store %arg10[%c0_48, %c24], %30 {strides = array<i32>} : memref<256x36xf32, #tpu.memory_space<vmem>>, vector<256x4xf32>,
    %c2_49 = arith.constant 2 : index
    %c1_50 = arith.constant 1 : index
    %c0_51 = arith.constant 0 : index
    %32 = vector.load %arg9[%c2_49, %c1_50, %c0_51] : memref<18x18x4xf32, #tpu.memory_space<vmem>>, vector<16x16x4xf32>
    %33 = vector.shape_cast %32 : vector<16x16x4xf32> to vector<256x4xf32>
    %c0_52 = arith.constant 0 : index
    %c28 = arith.constant 28 : index
    %34 = vector.load %arg10[%c0_52, %c28] : memref<256x36xf32, #tpu.memory_space<vmem>>, vector<256x4xf32>
    tpu.vector_store %arg10[%c0_52, %c28], %33 {strides = array<i32>} : memref<256x36xf32, #tpu.memory_space<vmem>>, vector<256x4xf32>,
    %c2_53 = arith.constant 2 : index
    %c2_54 = arith.constant 2 : index
    %c0_55 = arith.constant 0 : index
    %35 = vector.load %arg9[%c2_53, %c2_54, %c0_55] : memref<18x18x4xf32, #tpu.memory_space<vmem>>, vector<16x16x4xf32>
    %36 = vector.shape_cast %35 : vector<16x16x4xf32> to vector<256x4xf32>
    %c0_56 = arith.constant 0 : index
    %c32 = arith.constant 32 : index
    %37 = vector.load %arg10[%c0_56, %c32] : memref<256x36xf32, #tpu.memory_space<vmem>>, vector<256x4xf32>
    tpu.vector_store %arg10[%c0_56, %c32], %36 {strides = array<i32>} : memref<256x36xf32, #tpu.memory_space<vmem>>, vector<256x4xf32>,
    %c0_57 = arith.constant 0 : index
    %c0_58 = arith.constant 0 : index
    %38 = vector.load %arg10[%c0_57, %c0_58] : memref<256x36xf32, #tpu.memory_space<vmem>>, vector<256x36xf32>
    %39 = arith.truncf %38 : vector<256x36xf32> to vector<256x36xbf16>
    %c0_59 = arith.constant 0 : index
    %c0_60 = arith.constant 0 : index
    %40 = vector.load %arg2[%c0_59, %c0_60] : memref<36x4xbf16, #tpu.memory_space<vmem>>, vector<36x4xbf16>
    %cst = arith.constant dense<0.000000e+00> : vector<256x4xf32>
    %41 = tpu.matmul %39, %40, %cst {dimension_numbers = #tpu.dot_dimension_numbers<[1], [0], [0], [1], [0, 0, 1, 1], [], []>} : vector<256x36xbf16>, vector<36x4xbf16>, vector<256x4xf32> -> vector<256x4xf32>
    %c0_61 = arith.constant 0 : index
    %c0_62 = arith.constant 0 : index
    %42 = vector.load %arg3[%c0_61, %c0_62] : memref<1x4xf32, #tpu.memory_space<vmem>>, vector<1x4xf32>
    %43 = vector.broadcast %42 : vector<1x4xf32> to vector<256x4xf32>
    %44 = arith.mulf %41, %43 : vector<256x4xf32>
    %c0_63 = arith.constant 0 : index
    %c0_64 = arith.constant 0 : index
    %45 = vector.load %arg4[%c0_63, %c0_64] : memref<1x4xf32, #tpu.memory_space<vmem>>, vector<1x4xf32>
    %46 = vector.broadcast %45 : vector<1x4xf32> to vector<256x4xf32>
    %47 = arith.addf %44, %46 : vector<256x4xf32>
    %cst_65 = arith.constant 0.000000e+00 : f32
    %48 = vector.broadcast %cst_65 : f32 to vector<256x4xf32>
    %49 = arith.maximumf %47, %48 : vector<256x4xf32>
    %50 = vector.shape_cast %49 : vector<256x4xf32> to vector<16x16x4xf32>
    %c1_66 = arith.constant 1 : index
    %c1_67 = arith.constant 1 : index
    %c0_68 = arith.constant 0 : index
    %51 = vector.load %arg9[%c1_66, %c1_67, %c0_68] : memref<18x18x4xf32, #tpu.memory_space<vmem>>, vector<16x16x4xf32>
    tpu.vector_store %arg9[%c1_66, %c1_67, %c0_68], %50 {strides = array<i32>} : memref<18x18x4xf32, #tpu.memory_space<vmem>>, vector<16x16x4xf32>,
    %52 = vector.extract_strided_slice %50 {offsets = [1, 0, 0], sizes = [1, 16, 4], strides = [1, 1, 1]} : vector<16x16x4xf32> to vector<1x16x4xf32>
    %c0_69 = arith.constant 0 : index
    %c1_70 = arith.constant 1 : index
    %c0_71 = arith.constant 0 : index
    %53 = vector.load %arg9[%c0_69, %c1_70, %c0_71] : memref<18x18x4xf32, #tpu.memory_space<vmem>>, vector<1x16x4xf32>
    tpu.vector_store %arg9[%c0_69, %c1_70, %c0_71], %52 {strides = array<i32>} : memref<18x18x4xf32, #tpu.memory_space<vmem>>, vector<1x16x4xf32>,
    %54 = vector.extract_strided_slice %50 {offsets = [14, 0, 0], sizes = [1, 16, 4], strides = [1, 1, 1]} : vector<16x16x4xf32> to vector<1x16x4xf32>
    %c17_72 = arith.constant 17 : index
    %c1_73 = arith.constant 1 : index
    %c0_74 = arith.constant 0 : index
    %55 = vector.load %arg9[%c17_72, %c1_73, %c0_74] : memref<18x18x4xf32, #tpu.memory_space<vmem>>, vector<1x16x4xf32>
    tpu.vector_store %arg9[%c17_72, %c1_73, %c0_74], %54 {strides = array<i32>} : memref<18x18x4xf32, #tpu.memory_space<vmem>>, vector<1x16x4xf32>,
    %c0_75 = arith.constant 0 : index
    %c2_76 = arith.constant 2 : index
    %c0_77 = arith.constant 0 : index
    %56 = vector.load %arg9[%c0_75, %c2_76, %c0_77] : memref<18x18x4xf32, #tpu.memory_space<vmem>>, vector<18x1x4xf32>
    %c0_78 = arith.constant 0 : index
    %c0_79 = arith.constant 0 : index
    %c0_80 = arith.constant 0 : index
    %57 = vector.load %arg9[%c0_78, %c0_79, %c0_80] : memref<18x18x4xf32, #tpu.memory_space<vmem>>, vector<18x1x4xf32>
    tpu.vector_store %arg9[%c0_78, %c0_79, %c0_80], %56 {strides = array<i32>} : memref<18x18x4xf32, #tpu.memory_space<vmem>>, vector<18x1x4xf32>,
    %c0_81 = arith.constant 0 : index
    %c15_82 = arith.constant 15 : index
    %c0_83 = arith.constant 0 : index
    %58 = vector.load %arg9[%c0_81, %c15_82, %c0_83] : memref<18x18x4xf32, #tpu.memory_space<vmem>>, vector<18x1x4xf32>
    %c0_84 = arith.constant 0 : index
    %c17_85 = arith.constant 17 : index
    %c0_86 = arith.constant 0 : index
    %59 = vector.load %arg9[%c0_84, %c17_85, %c0_86] : memref<18x18x4xf32, #tpu.memory_space<vmem>>, vector<18x1x4xf32>
    tpu.vector_store %arg9[%c0_84, %c17_85, %c0_86], %58 {strides = array<i32>} : memref<18x18x4xf32, #tpu.memory_space<vmem>>, vector<18x1x4xf32>,
    %c0_87 = arith.constant 0 : index
    %c0_88 = arith.constant 0 : index
    %c0_89 = arith.constant 0 : index
    %60 = vector.load %arg9[%c0_87, %c0_88, %c0_89] : memref<18x18x4xf32, #tpu.memory_space<vmem>>, vector<16x16x4xf32>
    %61 = vector.shape_cast %60 : vector<16x16x4xf32> to vector<256x4xf32>
    %c0_90 = arith.constant 0 : index
    %c0_91 = arith.constant 0 : index
    %62 = vector.load %arg10[%c0_90, %c0_91] : memref<256x36xf32, #tpu.memory_space<vmem>>, vector<256x4xf32>
    tpu.vector_store %arg10[%c0_90, %c0_91], %61 {strides = array<i32>} : memref<256x36xf32, #tpu.memory_space<vmem>>, vector<256x4xf32>,
    %c0_92 = arith.constant 0 : index
    %c1_93 = arith.constant 1 : index
    %c0_94 = arith.constant 0 : index
    %63 = vector.load %arg9[%c0_92, %c1_93, %c0_94] : memref<18x18x4xf32, #tpu.memory_space<vmem>>, vector<16x16x4xf32>
    %64 = vector.shape_cast %63 : vector<16x16x4xf32> to vector<256x4xf32>
    %c0_95 = arith.constant 0 : index
    %c4_96 = arith.constant 4 : index
    %65 = vector.load %arg10[%c0_95, %c4_96] : memref<256x36xf32, #tpu.memory_space<vmem>>, vector<256x4xf32>
    tpu.vector_store %arg10[%c0_95, %c4_96], %64 {strides = array<i32>} : memref<256x36xf32, #tpu.memory_space<vmem>>, vector<256x4xf32>,
    %c0_97 = arith.constant 0 : index
    %c2_98 = arith.constant 2 : index
    %c0_99 = arith.constant 0 : index
    %66 = vector.load %arg9[%c0_97, %c2_98, %c0_99] : memref<18x18x4xf32, #tpu.memory_space<vmem>>, vector<16x16x4xf32>
    %67 = vector.shape_cast %66 : vector<16x16x4xf32> to vector<256x4xf32>
    %c0_100 = arith.constant 0 : index
    %c8_101 = arith.constant 8 : index
    %68 = vector.load %arg10[%c0_100, %c8_101] : memref<256x36xf32, #tpu.memory_space<vmem>>, vector<256x4xf32>
    tpu.vector_store %arg10[%c0_100, %c8_101], %67 {strides = array<i32>} : memref<256x36xf32, #tpu.memory_space<vmem>>, vector<256x4xf32>,
    %c1_102 = arith.constant 1 : index
    %c0_103 = arith.constant 0 : index
    %c0_104 = arith.constant 0 : index
    %69 = vector.load %arg9[%c1_102, %c0_103, %c0_104] : memref<18x18x4xf32, #tpu.memory_space<vmem>>, vector<16x16x4xf32>
    %70 = vector.shape_cast %69 : vector<16x16x4xf32> to vector<256x4xf32>
    %c0_105 = arith.constant 0 : index
    %c12_106 = arith.constant 12 : index
    %71 = vector.load %arg10[%c0_105, %c12_106] : memref<256x36xf32, #tpu.memory_space<vmem>>, vector<256x4xf32>
    tpu.vector_store %arg10[%c0_105, %c12_106], %70 {strides = array<i32>} : memref<256x36xf32, #tpu.memory_space<vmem>>, vector<256x4xf32>,
    %c1_107 = arith.constant 1 : index
    %c1_108 = arith.constant 1 : index
    %c0_109 = arith.constant 0 : index
    %72 = vector.load %arg9[%c1_107, %c1_108, %c0_109] : memref<18x18x4xf32, #tpu.memory_space<vmem>>, vector<16x16x4xf32>
    %73 = vector.shape_cast %72 : vector<16x16x4xf32> to vector<256x4xf32>
    %c0_110 = arith.constant 0 : index
    %c16_111 = arith.constant 16 : index
    %74 = vector.load %arg10[%c0_110, %c16_111] : memref<256x36xf32, #tpu.memory_space<vmem>>, vector<256x4xf32>
    tpu.vector_store %arg10[%c0_110, %c16_111], %73 {strides = array<i32>} : memref<256x36xf32, #tpu.memory_space<vmem>>, vector<256x4xf32>,
    %c1_112 = arith.constant 1 : index
    %c2_113 = arith.constant 2 : index
    %c0_114 = arith.constant 0 : index
    %75 = vector.load %arg9[%c1_112, %c2_113, %c0_114] : memref<18x18x4xf32, #tpu.memory_space<vmem>>, vector<16x16x4xf32>
    %76 = vector.shape_cast %75 : vector<16x16x4xf32> to vector<256x4xf32>
    %c0_115 = arith.constant 0 : index
    %c20_116 = arith.constant 20 : index
    %77 = vector.load %arg10[%c0_115, %c20_116] : memref<256x36xf32, #tpu.memory_space<vmem>>, vector<256x4xf32>
    tpu.vector_store %arg10[%c0_115, %c20_116], %76 {strides = array<i32>} : memref<256x36xf32, #tpu.memory_space<vmem>>, vector<256x4xf32>,
    %c2_117 = arith.constant 2 : index
    %c0_118 = arith.constant 0 : index
    %c0_119 = arith.constant 0 : index
    %78 = vector.load %arg9[%c2_117, %c0_118, %c0_119] : memref<18x18x4xf32, #tpu.memory_space<vmem>>, vector<16x16x4xf32>
    %79 = vector.shape_cast %78 : vector<16x16x4xf32> to vector<256x4xf32>
    %c0_120 = arith.constant 0 : index
    %c24_121 = arith.constant 24 : index
    %80 = vector.load %arg10[%c0_120, %c24_121] : memref<256x36xf32, #tpu.memory_space<vmem>>, vector<256x4xf32>
    tpu.vector_store %arg10[%c0_120, %c24_121], %79 {strides = array<i32>} : memref<256x36xf32, #tpu.memory_space<vmem>>, vector<256x4xf32>,
    %c2_122 = arith.constant 2 : index
    %c1_123 = arith.constant 1 : index
    %c0_124 = arith.constant 0 : index
    %81 = vector.load %arg9[%c2_122, %c1_123, %c0_124] : memref<18x18x4xf32, #tpu.memory_space<vmem>>, vector<16x16x4xf32>
    %82 = vector.shape_cast %81 : vector<16x16x4xf32> to vector<256x4xf32>
    %c0_125 = arith.constant 0 : index
    %c28_126 = arith.constant 28 : index
    %83 = vector.load %arg10[%c0_125, %c28_126] : memref<256x36xf32, #tpu.memory_space<vmem>>, vector<256x4xf32>
    tpu.vector_store %arg10[%c0_125, %c28_126], %82 {strides = array<i32>} : memref<256x36xf32, #tpu.memory_space<vmem>>, vector<256x4xf32>,
    %c2_127 = arith.constant 2 : index
    %c2_128 = arith.constant 2 : index
    %c0_129 = arith.constant 0 : index
    %84 = vector.load %arg9[%c2_127, %c2_128, %c0_129] : memref<18x18x4xf32, #tpu.memory_space<vmem>>, vector<16x16x4xf32>
    %85 = vector.shape_cast %84 : vector<16x16x4xf32> to vector<256x4xf32>
    %c0_130 = arith.constant 0 : index
    %c32_131 = arith.constant 32 : index
    %86 = vector.load %arg10[%c0_130, %c32_131] : memref<256x36xf32, #tpu.memory_space<vmem>>, vector<256x4xf32>
    tpu.vector_store %arg10[%c0_130, %c32_131], %85 {strides = array<i32>} : memref<256x36xf32, #tpu.memory_space<vmem>>, vector<256x4xf32>,
    %c0_132 = arith.constant 0 : index
    %c0_133 = arith.constant 0 : index
    %87 = vector.load %arg10[%c0_132, %c0_133] : memref<256x36xf32, #tpu.memory_space<vmem>>, vector<256x36xf32>
    %88 = arith.truncf %87 : vector<256x36xf32> to vector<256x36xbf16>
    %c0_134 = arith.constant 0 : index
    %c0_135 = arith.constant 0 : index
    %89 = vector.load %arg5[%c0_134, %c0_135] : memref<36x4xbf16, #tpu.memory_space<vmem>>, vector<36x4xbf16>
    %cst_136 = arith.constant dense<0.000000e+00> : vector<256x4xf32>
    %90 = tpu.matmul %88, %89, %cst_136 {dimension_numbers = #tpu.dot_dimension_numbers<[1], [0], [0], [1], [0, 0, 1, 1], [], []>} : vector<256x36xbf16>, vector<36x4xbf16>, vector<256x4xf32> -> vector<256x4xf32>
    %c0_137 = arith.constant 0 : index
    %c0_138 = arith.constant 0 : index
    %91 = vector.load %arg6[%c0_137, %c0_138] : memref<1x4xf32, #tpu.memory_space<vmem>>, vector<1x4xf32>
    %92 = vector.broadcast %91 : vector<1x4xf32> to vector<256x4xf32>
    %93 = arith.mulf %90, %92 : vector<256x4xf32>
    %c0_139 = arith.constant 0 : index
    %c0_140 = arith.constant 0 : index
    %94 = vector.load %arg7[%c0_139, %c0_140] : memref<1x4xf32, #tpu.memory_space<vmem>>, vector<1x4xf32>
    %95 = vector.broadcast %94 : vector<1x4xf32> to vector<256x4xf32>
    %96 = arith.addf %93, %95 : vector<256x4xf32>
    %97 = vector.shape_cast %1 : vector<16x16x4xf32> to vector<256x4xf32>
    %98 = arith.addf %97, %96 : vector<256x4xf32>
    %99 = vector.shape_cast %98 : vector<256x4xf32> to vector<16x16x4xf32>
    %c0_141 = arith.constant 0 : index
    %c0_142 = arith.constant 0 : index
    %c0_143 = arith.constant 0 : index
    %c0_144 = arith.constant 0 : index
    %100 = vector.load %arg8[%c0_141, %c0_142, %c0_143, %c0_144] : memref<1x16x16x4xf32, #tpu.memory_space<vmem>>, vector<1x16x16x4xf32>
    %101 = vector.shape_cast %100 : vector<1x16x16x4xf32> to vector<16x16x4xf32>
    %102 = vector.shape_cast %99 : vector<16x16x4xf32> to vector<1x16x16x4xf32>
    tpu.vector_store %arg8[%c0_141, %c0_142, %c0_143, %c0_144], %102 {strides = array<i32>} : memref<1x16x16x4xf32, #tpu.memory_space<vmem>>, vector<1x16x16x4xf32>,
    return
  }
  func.func @transform_0(%arg0: i32) -> (i32, i32, i32, i32) {
    %c0_i32 = arith.constant 0 : i32
    %c0_i32_0 = arith.constant 0 : i32
    %c0_i32_1 = arith.constant 0 : i32
    %c0_i32_2 = arith.constant 0 : i32
    return %arg0, %c0_i32, %c0_i32_0, %c0_i32_1 : i32, i32, i32, i32
  }
  func.func @transform_1(%arg0: i32) -> (i32, i32) {
    %c0_i32 = arith.constant 0 : i32
    %c0_i32_0 = arith.constant 0 : i32
    %c0_i32_1 = arith.constant 0 : i32
    return %c0_i32, %c0_i32_0 : i32, i32
  }
  func.func @transform_2(%arg0: i32) -> (i32, i32) {
    %c0_i32 = arith.constant 0 : i32
    %c0_i32_0 = arith.constant 0 : i32
    %c0_i32_1 = arith.constant 0 : i32
    return %c0_i32, %c0_i32_0 : i32, i32
  }
  func.func @transform_3(%arg0: i32) -> (i32, i32) {
    %c0_i32 = arith.constant 0 : i32
    %c0_i32_0 = arith.constant 0 : i32
    %c0_i32_1 = arith.constant 0 : i32
    return %c0_i32, %c0_i32_0 : i32, i32
  }
  func.func @transform_4(%arg0: i32) -> (i32, i32) {
    %c0_i32 = arith.constant 0 : i32
    %c0_i32_0 = arith.constant 0 : i32
    %c0_i32_1 = arith.constant 0 : i32
    return %c0_i32, %c0_i32_0 : i32, i32
  }
  func.func @transform_5(%arg0: i32) -> (i32, i32) {
    %c0_i32 = arith.constant 0 : i32
    %c0_i32_0 = arith.constant 0 : i32
    %c0_i32_1 = arith.constant 0 : i32
    return %c0_i32, %c0_i32_0 : i32, i32
  }
  func.func @transform_6(%arg0: i32) -> (i32, i32) {
    %c0_i32 = arith.constant 0 : i32
    %c0_i32_0 = arith.constant 0 : i32
    %c0_i32_1 = arith.constant 0 : i32
    return %c0_i32, %c0_i32_0 : i32, i32
  }
  func.func @transform_7(%arg0: i32) -> (i32, i32, i32, i32) {
    %c0_i32 = arith.constant 0 : i32
    %c0_i32_0 = arith.constant 0 : i32
    %c0_i32_1 = arith.constant 0 : i32
    %c0_i32_2 = arith.constant 0 : i32
    return %arg0, %c0_i32, %c0_i32_0, %c0_i32_1 : i32, i32, i32, i32
  }
}

</mosaic_0001>

<llo_original>
// kernel: tpu_custom_call.1
$region0: #{tpu_custom_call.1}
  #allocation0 [shape = 'u32[]', space=smem, size = 0x4, offset = 0x4, fixed_abs, tag = 'smem constant byte address 0x4 - core index']
  #allocation1 [shape = 'u32[144,128]{1,0:T(1,128)}', space=vmem, size = 0x12000, scoped, tag = 'internal scratch']
  #allocation2 [shape = 'f32[18,18,4]{2,1,0:T(8,128)}', space=vmem, size = 0x36000, scoped, tag = 'scratch operand']
  #allocation3 [shape = 'f32[256,36]{1,0:T(8,128)}', space=vmem, size = 0x20000, scoped, tag = 'scratch operand']
  %s0 = inlined_call_operand.vmem [shape: f32[2,16,16,4], index: 0, kind: input, shape index: {}]
  %s1 = inlined_call_operand.vmem [shape: bf16[36,4], index: 1, kind: input, shape index: {}]
  %s2 = inlined_call_operand.vmem [shape: f32[1,4], index: 2, kind: input, shape index: {}]
  %s3 = inlined_call_operand.vmem [shape: f32[1,4], index: 3, kind: input, shape index: {}]
  %s4 = inlined_call_operand.vmem [shape: bf16[36,4], index: 4, kind: input, shape index: {}]
  %s5 = inlined_call_operand.vmem [shape: f32[1,4], index: 5, kind: input, shape index: {}]
  %s6 = inlined_call_operand.vmem [shape: f32[1,4], index: 6, kind: input, shape index: {}]
  %s7 = inlined_call_operand.vmem [shape: f32[2,16,16,4], index: 7, kind: output, shape index: {}]
  %s8 = sld [smem:[#allocation0]]
  $region61: #{tpu_custom_call.1} parent=0
    _
  %s10 = ssub.s32 1, %s8
  %s11 = scalar_select 0, %s10, %s8
  loop: start=0, step=1, limit=4
  $region2: #{tpu_custom_call.1} parent=0 // loop_pre_header
    _
  $region3: #{tpu_custom_call.1} parent=0 // loop_header
    %s13 = sphi 0, %s17
    %p14 = scmp.ge.s32.totalorder %s13, 4
    %s23 = sphi 0, %s25
    %s26 = sphi 0, %s23
    %s27 = sphi 0, %s26
    %s43 = sphi 0, %s27
    %s47 = sphi 0, %s47
    %s49 = sphi 0, %s47
    %s50 = sphi 0, %s49
    %s64 = sphi 0, %s50
    %s68 = sphi 0, %s68
    %s70 = sphi 0, %s68
    %s71 = sphi 0, %s70
    %s85 = sphi 0, %s71
    %s89 = sphi 0, %s89
    %s91 = sphi 0, %s89
    %s92 = sphi 0, %s91
    %s106 = sphi 0, %s92
    %s110 = sphi 0, %s110
    %s112 = sphi 0, %s110
    %s113 = sphi 0, %s112
    %s127 = sphi 0, %s113
    %s131 = sphi 0, %s131
    %s133 = sphi 0, %s131
    %s134 = sphi 0, %s133
    %s148 = sphi 0, %s134
    %s152 = sphi 0, %s152
    %s154 = sphi 0, %s152
    %s155 = sphi 0, %s154
    %s169 = sphi 0, %s155
    %s175 = sphi 0, %s177
    %s178 = sphi 0, %s175
    %s179 = sphi 0, %s178
    %s195 = sphi 0, %s179
  $region4: #{tpu_custom_call.1} parent=0 // loop_header_branch
    %16 = sbr.rel (%p14) target = $region8
  $region5: #{tpu_custom_call.1} parent=0 // loop_body
    %s18 = ssub.s32 %s13, 1
    %s19 = ssub.s32 %s13, 2
    %s20 = sadd.s32 %s13, 1
    %s21 = ssub.s32 %s13, %s20
    %p22 = scmp.eq.s32.totalorder %s21, 0
    %s24 = sadd.s32 %s23, 1
    %s25 = scalar_select %p22, %s23, %s24
    %p28 = pneg %p22
    %p29 = scmp.eq.s32.totalorder %s13, 1
    %p30 = por %p28, %p29
    %p31 = scmp.ne.s32.totalorder %s23, %s26
    %p32 = scmp.eq.s32.totalorder %s13, 0
    %p33 = por %p31, %p32
    %p34 = scmp.ne.s32.totalorder %s23, %s26
    %p35 = scmp.eq.s32.totalorder %s18, 1
    %p36 = por %p34, %p35
    %p37 = scmp.ne.s32.totalorder %s26, %s27
    %p38 = scmp.eq.s32.totalorder %s18, 0
    %p39 = por %p37, %p38
    %p40 = scmp.ne.s32.totalorder %s26, %s27
    %p41 = scmp.eq.s32.totalorder %s19, 1
    %p42 = por %p40, %p41
    %p44 = scmp.ne.s32.totalorder %s27, %s43
    %p45 = scmp.eq.s32.totalorder %s19, 0
    %p46 = por %p44, %p45
    %s48 = sadd.s32 %s47, 1
    %p51 = scmp.eq.s32.totalorder %s13, 1
    %p52 = scmp.ne.s32.totalorder %s47, %s49
    %p53 = scmp.eq.s32.totalorder %s13, 0
    %p54 = por %p52, %p53
    %p55 = scmp.ne.s32.totalorder %s47, %s49
    %p56 = scmp.eq.s32.totalorder %s18, 1
    %p57 = por %p55, %p56
    %p58 = scmp.ne.s32.totalorder %s49, %s50
    %p59 = scmp.eq.s32.totalorder %s18, 0
    %p60 = por %p58, %p59
    %p61 = scmp.ne.s32.totalorder %s49, %s50
    %p62 = scmp.eq.s32.totalorder %s19, 1
    %p63 = por %p61, %p62
    %p65 = scmp.ne.s32.totalorder %s50, %s64
    %p66 = scmp.eq.s32.totalorder %s19, 0
    %p67 = por %p65, %p66
    %s69 = sadd.s32 %s68, 1
    %p72 = scmp.eq.s32.totalorder %s13, 1
    %p73 = scmp.ne.s32.totalorder %s68, %s70
    %p74 = scmp.eq.s32.totalorder %s13, 0
    %p75 = por %p73, %p74
    %p76 = scmp.ne.s32.totalorder %s68, %s70
    %p77 = scmp.eq.s32.totalorder %s18, 1
    %p78 = por %p76, %p77
    %p79 = scmp.ne.s32.totalorder %s70, %s71
    %p80 = scmp.eq.s32.totalorder %s18, 0
    %p81 = por %p79, %p80
    %p82 = scmp.ne.s32.totalorder %s70, %s71
    %p83 = scmp.eq.s32.totalorder %s19, 1
    %p84 = por %p82, %p83
    %p86 = scmp.ne.s32.totalorder %s71, %s85
    %p87 = scmp.eq.s32.totalorder %s19, 0
    %p88 = por %p86, %p87
    %s90 = sadd.s32 %s89, 1
    %p93 = scmp.eq.s32.totalorder %s13, 1
    %p94 = scmp.ne.s32.totalorder %s89, %s91
    %p95 = scmp.eq.s32.totalorder %s13, 0
    %p96 = por %p94, %p95
    %p97 = scmp.ne.s32.totalorder %s89, %s91
    %p98 = scmp.eq.s32.totalorder %s18, 1
    %p99 = por %p97, %p98
    %p100 = scmp.ne.s32.totalorder %s91, %s92
    %p101 = scmp.eq.s32.totalorder %s18, 0
    %p102 = por %p100, %p101
    %p103 = scmp.ne.s32.totalorder %s91, %s92
    %p104 = scmp.eq.s32.totalorder %s19, 1
    %p105 = por %p103, %p104
    %p107 = scmp.ne.s32.totalorder %s92, %s106
    %p108 = scmp.eq.s32.totalorder %s19, 0
    %p109 = por %p107, %p108
    %s111 = sadd.s32 %s110, 1
    %p114 = scmp.eq.s32.totalorder %s13, 1
    %p115 = scmp.ne.s32.totalorder %s110, %s112
    %p116 = scmp.eq.s32.totalorder %s13, 0
    %p117 = por %p115, %p116
    %p118 = scmp.ne.s32.totalorder %s110, %s112
    %p119 = scmp.eq.s32.totalorder %s18, 1
    %p120 = por %p118, %p119
    %p121 = scmp.ne.s32.totalorder %s112, %s113
    %p122 = scmp.eq.s32.totalorder %s18, 0
    %p123 = por %p121, %p122
    %p124 = scmp.ne.s32.totalorder %s112, %s113
    %p125 = scmp.eq.s32.totalorder %s19, 1
    %p126 = por %p124, %p125
    %p128 = scmp.ne.s32.totalorder %s113, %s127
    %p129 = scmp.eq.s32.totalorder %s19, 0
    %p130 = por %p128, %p129
    %s132 = sadd.s32 %s131, 1
    %p135 = scmp.eq.s32.totalorder %s13, 1
    %p136 = scmp.ne.s32.totalorder %s131, %s133
    %p137 = scmp.eq.s32.totalorder %s13, 0
    %p138 = por %p136, %p137
    %p139 = scmp.ne.s32.totalorder %s131, %s133
    %p140 = scmp.eq.s32.totalorder %s18, 1
    %p141 = por %p139, %p140
    %p142 = scmp.ne.s32.totalorder %s133, %s134
    %p143 = scmp.eq.s32.totalorder %s18, 0
    %p144 = por %p142, %p143
    %p145 = scmp.ne.s32.totalorder %s133, %s134
    %p146 = scmp.eq.s32.totalorder %s19, 1
    %p147 = por %p145, %p146
    %p149 = scmp.ne.s32.totalorder %s134, %s148
    %p150 = scmp.eq.s32.totalorder %s19, 0
    %p151 = por %p149, %p150
    %s153 = sadd.s32 %s152, 1
    %p156 = scmp.eq.s32.totalorder %s13, 1
    %p157 = scmp.ne.s32.totalorder %s152, %s154
    %p158 = scmp.eq.s32.totalorder %s13, 0
    %p159 = por %p157, %p158
    %p160 = scmp.ne.s32.totalorder %s152, %s154
    %p161 = scmp.eq.s32.totalorder %s18, 1
    %p162 = por %p160, %p161
    %p163 = scmp.ne.s32.totalorder %s154, %s155
    %p164 = scmp.eq.s32.totalorder %s18, 0
    %p165 = por %p163, %p164
    %p166 = scmp.ne.s32.totalorder %s154, %s155
    %p167 = scmp.eq.s32.totalorder %s19, 1
    %p168 = por %p166, %p167
    %p170 = scmp.ne.s32.totalorder %s155, %s169
    %p171 = scmp.eq.s32.totalorder %s19, 0
    %p172 = por %p170, %p171
    %s173 = ssub.s32 %s13, %s20
    %p174 = scmp.eq.s32.totalorder %s173, 0
    %s176 = sadd.s32 %s175, 1
    %s177 = scalar_select %p174, %s175, %s176
    %p180 = pneg %p174
    %p181 = scmp.eq.s32.totalorder %s13, 1
    %p182 = por %p180, %p181
    %p183 = scmp.ne.s32.totalorder %s175, %s178
    %p184 = scmp.eq.s32.totalorder %s13, 0
    %p185 = por %p183, %p184
    %p186 = scmp.ne.s32.totalorder %s175, %s178
    %p187 = scmp.eq.s32.totalorder %s18, 1
    %p188 = por %p186, %p187
    %p189 = scmp.ne.s32.totalorder %s178, %s179
    %p190 = scmp.eq.s32.totalorder %s18, 0
    %p191 = por %p189, %p190
    %p192 = scmp.ne.s32.totalorder %s178, %s179
    %p193 = scmp.eq.s32.totalorder %s19, 1
    %p194 = por %p192, %p193
    %p196 = scmp.ne.s32.totalorder %s179, %s195
    %p197 = scmp.eq.s32.totalorder %s19, 0
    %p198 = por %p196, %p197
    %p199 = scmp.le.s32.totalorder 1, %s13
    %p200 = scmp.lt.s32.totalorder %s13, 3
    %p201 = pnand %p199, %p200
    %p202 = pneg %p201
    // Predicated region
    $region9: #{tpu_custom_call.1} parent=5 // pred_check
      _
    $region10: #{tpu_custom_call.1} parent=5 // pred_check_branch
      %204 = sbr.rel (%p201) target = $region12
    $region11: #{tpu_custom_call.1} parent=5 // pred_region
      %s205 = ssub.s32 %s13, 1
      // Predicated region
      $region13: #{tpu_custom_call.1} parent=11 // pred_check
        %p206 = pneg %p60
      $region14: #{tpu_custom_call.1} parent=11 // pred_check_branch
        %208 = sbr.rel (%p206) target = $region16
      $region15: #{tpu_custom_call.1} parent=11 // pred_region
        _
      $region16: #{tpu_custom_call.1} parent=11 // pred_fallthru
        _
      // Predicated region
      $region17: #{tpu_custom_call.1} parent=11 // pred_check
        %p209 = pneg %p81
      $region18: #{tpu_custom_call.1} parent=11 // pred_check_branch
        %211 = sbr.rel (%p209) target = $region20
      $region19: #{tpu_custom_call.1} parent=11 // pred_region
        _
      $region20: #{tpu_custom_call.1} parent=11 // pred_fallthru
        _
      // Predicated region
      $region21: #{tpu_custom_call.1} parent=11 // pred_check
        %p212 = pneg %p102
      $region22: #{tpu_custom_call.1} parent=11 // pred_check_branch
        %214 = sbr.rel (%p212) target = $region24
      $region23: #{tpu_custom_call.1} parent=11 // pred_region
        _
      $region24: #{tpu_custom_call.1} parent=11 // pred_fallthru
        _
      // Predicated region
      $region25: #{tpu_custom_call.1} parent=11 // pred_check
        %p215 = pneg %p123
      $region26: #{tpu_custom_call.1} parent=11 // pred_check_branch
        %217 = sbr.rel (%p215) target = $region28
      $region27: #{tpu_custom_call.1} parent=11 // pred_region
        _
      $region28: #{tpu_custom_call.1} parent=11 // pred_fallthru
        _
      // Predicated region
      $region29: #{tpu_custom_call.1} parent=11 // pred_check
        %p218 = pneg %p144
      $region30: #{tpu_custom_call.1} parent=11 // pred_check_branch
        %220 = sbr.rel (%p218) target = $region32
      $region31: #{tpu_custom_call.1} parent=11 // pred_region
        _
      $region32: #{tpu_custom_call.1} parent=11 // pred_fallthru
        _
      // Predicated region
      $region33: #{tpu_custom_call.1} parent=11 // pred_check
        %p221 = pneg %p165
      $region34: #{tpu_custom_call.1} parent=11 // pred_check_branch
        %223 = sbr.rel (%p221) target = $region36
      $region35: #{tpu_custom_call.1} parent=11 // pred_region
        _
      $region36: #{tpu_custom_call.1} parent=11 // pred_fallthru
        _
    $region12: #{tpu_custom_call.1} parent=5 // pred_fallthru
      _
    %p224 = scmp.lt.s32.totalorder %s13, 2
    // Predicated region
    $region37: #{tpu_custom_call.1} parent=5 // pred_check
      %p225 = pneg %p224
    $region38: #{tpu_custom_call.1} parent=5 // pred_check_branch
      %227 = sbr.rel (%p225) target = $region40
    $region39: #{tpu_custom_call.1} parent=5 // pred_region
      // Predicated region
      $region41: #{tpu_custom_call.1} parent=39 // pred_check
        %p228 = pneg %p33
      $region42: #{tpu_custom_call.1} parent=39 // pred_check_branch
        %230 = sbr.rel (%p228) target = $region44
      $region43: #{tpu_custom_call.1} parent=39 // pred_region
        %p231 = scmp.lt.s32.totalorder %s13, 1
        %s232 = scalar_select %p231, %s13, 1
        %s233 = smul.addr %s232, 32
        %s234 = smul.addr %s233, 8
        %s235 = scalar_lea.vmem %s0, %s234
      $region44: #{tpu_custom_call.1} parent=39 // pred_fallthru
        _
    $region40: #{tpu_custom_call.1} parent=5 // pred_fallthru
      _
    %p236 = scmp.le.s32.totalorder 1, %s13
    %p237 = scmp.lt.s32.totalorder %s13, 3
    %p238 = pnand %p236, %p237
    %p239 = pneg %p238
    // Predicated region
    $region45: #{tpu_custom_call.1} parent=5 // pred_check
      _
    $region46: #{tpu_custom_call.1} parent=5 // pred_check_branch
      %241 = sbr.rel (%p238) target = $region48
    $region47: #{tpu_custom_call.1} parent=5 // pred_region
      %s242 = ssub.s32 %s13, 1
      %p243 = scmp.lt.s32.totalorder %s18, 1
      %s244 = scalar_select %p243, %s18, 1
      %s245 = smul.addr %s244, 32
      %s246 = smul.addr %s245, 8
      %s247 = scalar_lea.vmem %s0, %s246
      %p248 = pneg %p39
      %p249 = pneg %p36
      %p250 = pneg %p60
      %p251 = pneg %p57
      %p252 = pneg %p81
      %p253 = pneg %p78
      %p254 = pneg %p102
      %p255 = pneg %p99
      %p256 = pneg %p123
      %p257 = pneg %p120
      %p258 = pneg %p144
      %p259 = pneg %p141
      %p260 = pneg %p165
      %p261 = pneg %p162
      %p262 = pneg %p191
      %p263 = pneg %p188
      %p264 = scmp.lt.s32.totalorder %s18, 1
      %s265 = scalar_select %p264, %s18, 1
      %s266 = smul.addr %s265, 32
      %s267 = smul.addr %s266, 8
      %s268 = scalar_lea.vmem %s7, %s267
      %p269 = scmp.lt.s32.totalorder %s18, 1
      %s270 = scalar_select %p269, %s18, 1
      %s271 = smul.addr %s270, 32
      %s272 = smul.addr %s271, 8
      %s273 = scalar_lea.vmem %s0, %s272
      %p274 = scmp.lt.s32.totalorder %s18, 1
      %s275 = scalar_select %p274, %s18, 1
      %s276 = smul.addr %s275, 32
      %s277 = smul.addr %s276, 8
      %s278 = scalar_lea.vmem %s7, %s277
      %v280 = vld [vmem:[%s273] sm:$0xff]
      %v281 = vld [vmem:[%s273 + $0x8] sm:$0xff]
      %v282 = vld [vmem:[%s273 + $0x10] sm:$0xff]
      %v283 = vld [vmem:[%s273 + $0x18] sm:$0xff]
      %v284 = vld [vmem:[%s273 + $0x20] sm:$0xff]
      %v285 = vld [vmem:[%s273 + $0x28] sm:$0xff]
      %v286 = vld [vmem:[%s273 + $0x30] sm:$0xff]
      %v287 = vld [vmem:[%s273 + $0x38] sm:$0xff]
      %v288 = vld [vmem:[%s273 + $0x40] sm:$0xff]
      %v289 = vld [vmem:[%s273 + $0x48] sm:$0xff]
      %v290 = vld [vmem:[%s273 + $0x50] sm:$0xff]
      %v291 = vld [vmem:[%s273 + $0x58] sm:$0xff]
      %v292 = vld [vmem:[%s273 + $0x60] sm:$0xff]
      %v293 = vld [vmem:[%s273 + $0x68] sm:$0xff]
      %v294 = vld [vmem:[%s273 + $0x70] sm:$0xff]
      %v295 = vld [vmem:[%s273 + $0x78] sm:$0xff]
      %v296 = vld [vmem:[%s273 + $0x80] sm:$0xff]
      %v297 = vld [vmem:[%s273 + $0x88] sm:$0xff]
      %v298 = vld [vmem:[%s273 + $0x90] sm:$0xff]
      %v299 = vld [vmem:[%s273 + $0x98] sm:$0xff]
      %v300 = vld [vmem:[%s273 + $0xa0] sm:$0xff]
      %v301 = vld [vmem:[%s273 + $0xa8] sm:$0xff]
      %v302 = vld [vmem:[%s273 + $0xb0] sm:$0xff]
      %v303 = vld [vmem:[%s273 + $0xb8] sm:$0xff]
      %v304 = vld [vmem:[%s273 + $0xc0] sm:$0xff]
      %v305 = vld [vmem:[%s273 + $0xc8] sm:$0xff]
      %v306 = vld [vmem:[%s273 + $0xd0] sm:$0xff]
      %v307 = vld [vmem:[%s273 + $0xd8] sm:$0xff]
      %v308 = vld [vmem:[%s273 + $0xe0] sm:$0xff]
      %v309 = vld [vmem:[%s273 + $0xe8] sm:$0xff]
      %v310 = vld [vmem:[%s273 + $0xf0] sm:$0xff]
      %v311 = vld [vmem:[%s273 + $0xf8] sm:$0xff]
      %s312 = scalar_lea.vmem [#allocation2], 24
      %vm313 = vcmask 31744
      %314 = vst.msk [vmem:[%s312 + $0x1] sm:$0xff] %vm313, %v280
      %315 = vst.msk [vmem:[%s312 + $0x9] sm:$0xff] %vm313, %v281
      %316 = vst.msk [vmem:[%s312 + $0x19] sm:$0xff] %vm313, %v282
      %317 = vst.msk [vmem:[%s312 + $0x21] sm:$0xff] %vm313, %v283
      %318 = vst.msk [vmem:[%s312 + $0x31] sm:$0xff] %vm313, %v284
      %319 = vst.msk [vmem:[%s312 + $0x39] sm:$0xff] %vm313, %v285
      %320 = vst.msk [vmem:[%s312 + $0x49] sm:$0xff] %vm313, %v286
      %321 = vst.msk [vmem:[%s312 + $0x51] sm:$0xff] %vm313, %v287
      %322 = vst.msk [vmem:[%s312 + $0x61] sm:$0xff] %vm313, %v288
      %323 = vst.msk [vmem:[%s312 + $0x69] sm:$0xff] %vm313, %v289
      %324 = vst.msk [vmem:[%s312 + $0x79] sm:$0xff] %vm313, %v290
      %325 = vst.msk [vmem:[%s312 + $0x81] sm:$0xff] %vm313, %v291
      %326 = vst.msk [vmem:[%s312 + $0x91] sm:$0xff] %vm313, %v292
      %327 = vst.msk [vmem:[%s312 + $0x99] sm:$0xff] %vm313, %v293
      %328 = vst.msk [vmem:[%s312 + $0xa9] sm:$0xff] %vm313, %v294
      %329 = vst.msk [vmem:[%s312 + $0xb1] sm:$0xff] %vm313, %v295
      %330 = vst.msk [vmem:[%s312 + $0xc1] sm:$0xff] %vm313, %v296
      %331 = vst.msk [vmem:[%s312 + $0xc9] sm:$0xff] %vm313, %v297
      %332 = vst.msk [vmem:[%s312 + $0xd9] sm:$0xff] %vm313, %v298
      %333 = vst.msk [vmem:[%s312 + $0xe1] sm:$0xff] %vm313, %v299
      %334 = vst.msk [vmem:[%s312 + $0xf1] sm:$0xff] %vm313, %v300
      %335 = vst.msk [vmem:[%s312 + $0xf9] sm:$0xff] %vm313, %v301
      %336 = vst.msk [vmem:[%s312 + $0x109] sm:$0xff] %vm313, %v302
      %337 = vst.msk [vmem:[%s312 + $0x111] sm:$0xff] %vm313, %v303
      %338 = vst.msk [vmem:[%s312 + $0x121] sm:$0xff] %vm313, %v304
      %339 = vst.msk [vmem:[%s312 + $0x129] sm:$0xff] %vm313, %v305
      %340 = vst.msk [vmem:[%s312 + $0x139] sm:$0xff] %vm313, %v306
      %341 = vst.msk [vmem:[%s312 + $0x141] sm:$0xff] %vm313, %v307
      %342 = vst.msk [vmem:[%s312 + $0x151] sm:$0xff] %vm313, %v308
      %343 = vst.msk [vmem:[%s312 + $0x159] sm:$0xff] %vm313, %v309
      %344 = vst.msk [vmem:[%s312 + $0x169] sm:$0xff] %vm313, %v310
      %345 = vst.msk [vmem:[%s312 + $0x171] sm:$0xff] %vm313, %v311
      %346 = vst.msk [vmem:[#allocation2 + $0x1] sm:$0xff] %vm313, %v282
      %347 = vst.msk [vmem:[#allocation2 + $0x9] sm:$0xff] %vm313, %v283
      %s348 = scalar_lea.vmem [#allocation2], 408
      %349 = vst.msk [vmem:[%s348 + $0x1] sm:$0xff] %vm313, %v308
      %350 = vst.msk [vmem:[%s348 + $0x9] sm:$0xff] %vm313, %v309
      %v351 = vld [vmem:[#allocation2 + $0x2] sm:$0x1]
      %v352 = vld [vmem:[#allocation2 + $0x1a] sm:$0x1]
      %v353 = vld [vmem:[#allocation2 + $0x32] sm:$0x1]
      %v354 = vld [vmem:[#allocation2 + $0x4a] sm:$0x1]
      %v355 = vld [vmem:[#allocation2 + $0x62] sm:$0x1]
      %v356 = vld [vmem:[#allocation2 + $0x7a] sm:$0x1]
      %v357 = vld [vmem:[#allocation2 + $0x92] sm:$0x1]
      %v358 = vld [vmem:[#allocation2 + $0xaa] sm:$0x1]
      %v359 = vld [vmem:[#allocation2 + $0xc2] sm:$0x1]
      %v360 = vld [vmem:[#allocation2 + $0xda] sm:$0x1]
      %v361 = vld [vmem:[#allocation2 + $0xf2] sm:$0x1]
      %v362 = vld [vmem:[#allocation2 + $0x10a] sm:$0x1]
      %v363 = vld [vmem:[#allocation2 + $0x122] sm:$0x1]
      %v364 = vld [vmem:[#allocation2 + $0x13a] sm:$0x1]
      %v365 = vld [vmem:[#allocation2 + $0x152] sm:$0x1]
      %v366 = vld [vmem:[#allocation2 + $0x16a] sm:$0x1]
      %v367 = vld [vmem:[#allocation2 + $0x182] sm:$0x1]
      %v368 = vld [vmem:[#allocation2 + $0x19a] sm:$0x1]
      %vm369 = vcmask 24576
      %370 = vst.msk [vmem:[#allocation2] sm:$0x1] %vm369, %v351
      %371 = vst.msk [vmem:[#allocation2 + $0x18] sm:$0x1] %vm369, %v352
      %372 = vst.msk [vmem:[#allocation2 + $0x30] sm:$0x1] %vm369, %v353
      %373 = vst.msk [vmem:[#allocation2 + $0x48] sm:$0x1] %vm369, %v354
      %374 = vst.msk [vmem:[#allocation2 + $0x60] sm:$0x1] %vm369, %v355
      %375 = vst.msk [vmem:[#allocation2 + $0x78] sm:$0x1] %vm369, %v356
      %376 = vst.msk [vmem:[#allocation2 + $0x90] sm:$0x1] %vm369, %v357
      %377 = vst.msk [vmem:[#allocation2 + $0xa8] sm:$0x1] %vm369, %v358
      %378 = vst.msk [vmem:[#allocation2 + $0xc0] sm:$0x1] %vm369, %v359
      %379 = vst.msk [vmem:[#allocation2 + $0xd8] sm:$0x1] %vm369, %v360
      %380 = vst.msk [vmem:[#allocation2 + $0xf0] sm:$0x1] %vm369, %v361
      %381 = vst.msk [vmem:[#allocation2 + $0x108] sm:$0x1] %vm369, %v362
      %382 = vst.msk [vmem:[#allocation2 + $0x120] sm:$0x1] %vm369, %v363
      %383 = vst.msk [vmem:[#allocation2 + $0x138] sm:$0x1] %vm369, %v364
      %384 = vst.msk [vmem:[#allocation2 + $0x150] sm:$0x1] %vm369, %v365
      %385 = vst.msk [vmem:[#allocation2 + $0x168] sm:$0x1] %vm369, %v366
      %386 = vst.msk [vmem:[#allocation2 + $0x180] sm:$0x1] %vm369, %v367
      %387 = vst.msk [vmem:[#allocation2 + $0x198] sm:$0x1] %vm369, %v368
      %v388 = vld [vmem:[#allocation2 + $0xf] sm:$0x1]
      %v389 = vld [vmem:[#allocation2 + $0x27] sm:$0x1]
      %v390 = vld [vmem:[#allocation2 + $0x3f] sm:$0x1]
      %v391 = vld [vmem:[#allocation2 + $0x57] sm:$0x1]
      %v392 = vld [vmem:[#allocation2 + $0x6f] sm:$0x1]
      %v393 = vld [vmem:[#allocation2 + $0x87] sm:$0x1]
      %v394 = vld [vmem:[#allocation2 + $0x9f] sm:$0x1]
      %v395 = vld [vmem:[#allocation2 + $0xb7] sm:$0x1]
      %v396 = vld [vmem:[#allocation2 + $0xcf] sm:$0x1]
      %v397 = vld [vmem:[#allocation2 + $0xe7] sm:$0x1]
      %v398 = vld [vmem:[#allocation2 + $0xff] sm:$0x1]
      %v399 = vld [vmem:[#allocation2 + $0x117] sm:$0x1]
      %v400 = vld [vmem:[#allocation2 + $0x12f] sm:$0x1]
      %v401 = vld [vmem:[#allocation2 + $0x147] sm:$0x1]
      %v402 = vld [vmem:[#allocation2 + $0x15f] sm:$0x1]
      %v403 = vld [vmem:[#allocation2 + $0x177] sm:$0x1]
      %v404 = vld [vmem:[#allocation2 + $0x18f] sm:$0x1]
      %v405 = vld [vmem:[#allocation2 + $0x1a7] sm:$0x1]
      %406 = vst.msk [vmem:[#allocation2 + $0x11] sm:$0x1] %vm369, %v388
      %407 = vst.msk [vmem:[#allocation2 + $0x29] sm:$0x1] %vm369, %v389
      %408 = vst.msk [vmem:[#allocation2 + $0x41] sm:$0x1] %vm369, %v390
      %409 = vst.msk [vmem:[#allocation2 + $0x59] sm:$0x1] %vm369, %v391
      %410 = vst.msk [vmem:[#allocation2 + $0x71] sm:$0x1] %vm369, %v392
      %411 = vst.msk [vmem:[#allocation2 + $0x89] sm:$0x1] %vm369, %v393
      %412 = vst.msk [vmem:[#allocation2 + $0xa1] sm:$0x1] %vm369, %v394
      %413 = vst.msk [vmem:[#allocation2 + $0xb9] sm:$0x1] %vm369, %v395
      %414 = vst.msk [vmem:[#allocation2 + $0xd1] sm:$0x1] %vm369, %v396
      %415 = vst.msk [vmem:[#allocation2 + $0xe9] sm:$0x1] %vm369, %v397
      %416 = vst.msk [vmem:[#allocation2 + $0x101] sm:$0x1] %vm369, %v398
      %417 = vst.msk [vmem:[#allocation2 + $0x119] sm:$0x1] %vm369, %v399
      %418 = vst.msk [vmem:[#allocation2 + $0x131] sm:$0x1] %vm369, %v400
      %419 = vst.msk [vmem:[#allocation2 + $0x149] sm:$0x1] %vm369, %v401
      %420 = vst.msk [vmem:[#allocation2 + $0x161] sm:$0x1] %vm369, %v402
      %421 = vst.msk [vmem:[#allocation2 + $0x179] sm:$0x1] %vm369, %v403
      %422 = vst.msk [vmem:[#allocation2 + $0x191] sm:$0x1] %vm369, %v404
      %423 = vst.msk [vmem:[#allocation2 + $0x1a9] sm:$0x1] %vm369, %v405
      %v424 = vld [vmem:[#allocation2] sm:$0xff]
      %v425 = vld [vmem:[#allocation2 + $0x8] sm:$0xff]
      %v426 = vld [vmem:[#allocation2 + $0x18] sm:$0xff]
      %v427 = vld [vmem:[#allocation2 + $0x20] sm:$0xff]
      %v428 = vld [vmem:[#allocation2 + $0x30] sm:$0xff]
      %v429 = vld [vmem:[#allocation2 + $0x38] sm:$0xff]
      %v430 = vld [vmem:[#allocation2 + $0x48] sm:$0xff]
      %v431 = vld [vmem:[#allocation2 + $0x50] sm:$0xff]
      %v432 = vld [vmem:[#allocation2 + $0x60] sm:$0xff]
      %v433 = vld [vmem:[#allocation2 + $0x68] sm:$0xff]
      %v434 = vld [vmem:[#allocation2 + $0x78] sm:$0xff]
      %v435 = vld [vmem:[#allocation2 + $0x80] sm:$0xff]
      %v436 = vld [vmem:[#allocation2 + $0x90] sm:$0xff]
      %v437 = vld [vmem:[#allocation2 + $0x98] sm:$0xff]
      %v438 = vld [vmem:[#allocation2 + $0xa8] sm:$0xff]
      %v439 = vld [vmem:[#allocation2 + $0xb0] sm:$0xff]
      %v440 = vld [vmem:[#allocation2 + $0xc0] sm:$0xff]
      %v441 = vld [vmem:[#allocation2 + $0xc8] sm:$0xff]
      %v442 = vld [vmem:[#allocation2 + $0xd8] sm:$0xff]
      %v443 = vld [vmem:[#allocation2 + $0xe0] sm:$0xff]
      %v444 = vld [vmem:[#allocation2 + $0xf0] sm:$0xff]
      %v445 = vld [vmem:[#allocation2 + $0xf8] sm:$0xff]
      %v446 = vld [vmem:[#allocation2 + $0x108] sm:$0xff]
      %v447 = vld [vmem:[#allocation2 + $0x110] sm:$0xff]
      %v448 = vld [vmem:[#allocation2 + $0x120] sm:$0xff]
      %v449 = vld [vmem:[#allocation2 + $0x128] sm:$0xff]
      %v450 = vld [vmem:[#allocation2 + $0x138] sm:$0xff]
      %v451 = vld [vmem:[#allocation2 + $0x140] sm:$0xff]
      %v452 = vld [vmem:[#allocation2 + $0x150] sm:$0xff]
      %v453 = vld [vmem:[#allocation2 + $0x158] sm:$0xff]
      %v454 = vld [vmem:[#allocation2 + $0x168] sm:$0xff]
      %v455 = vld [vmem:[#allocation2 + $0x170] sm:$0xff]
      %456 = vst.msk [vmem:[#allocation3] sm:$0xff] %vm313, %v424
      %457 = vst.msk [vmem:[#allocation3 + $0x8] sm:$0xff] %vm313, %v425
      %458 = vst.msk [vmem:[#allocation3 + $0x10] sm:$0xff] %vm313, %v426
      %459 = vst.msk [vmem:[#allocation3 + $0x18] sm:$0xff] %vm313, %v427
      %460 = vst.msk [vmem:[#allocation3 + $0x20] sm:$0xff] %vm313, %v428
      %461 = vst.msk [vmem:[#allocation3 + $0x28] sm:$0xff] %vm313, %v429
      %462 = vst.msk [vmem:[#allocation3 + $0x30] sm:$0xff] %vm313, %v430
      %463 = vst.msk [vmem:[#allocation3 + $0x38] sm:$0xff] %vm313, %v431
      %464 = vst.msk [vmem:[#allocation3 + $0x40] sm:$0xff] %vm313, %v432
      %465 = vst.msk [vmem:[#allocation3 + $0x48] sm:$0xff] %vm313, %v433
      %466 = vst.msk [vmem:[#allocation3 + $0x50] sm:$0xff] %vm313, %v434
      %467 = vst.msk [vmem:[#allocation3 + $0x58] sm:$0xff] %vm313, %v435
      %468 = vst.msk [vmem:[#allocation3 + $0x60] sm:$0xff] %vm313, %v436
      %469 = vst.msk [vmem:[#allocation3 + $0x68] sm:$0xff] %vm313, %v437
      %470 = vst.msk [vmem:[#allocation3 + $0x70] sm:$0xff] %vm313, %v438
      %471 = vst.msk [vmem:[#allocation3 + $0x78] sm:$0xff] %vm313, %v439
      %472 = vst.msk [vmem:[#allocation3 + $0x80] sm:$0xff] %vm313, %v440
      %473 = vst.msk [vmem:[#allocation3 + $0x88] sm:$0xff] %vm313, %v441
      %474 = vst.msk [vmem:[#allocation3 + $0x90] sm:$0xff] %vm313, %v442
      %475 = vst.msk [vmem:[#allocation3 + $0x98] sm:$0xff] %vm313, %v443
      %476 = vst.msk [vmem:[#allocation3 + $0xa0] sm:$0xff] %vm313, %v444
      %477 = vst.msk [vmem:[#allocation3 + $0xa8] sm:$0xff] %vm313, %v445
      %478 = vst.msk [vmem:[#allocation3 + $0xb0] sm:$0xff] %vm313, %v446
      %479 = vst.msk [vmem:[#allocation3 + $0xb8] sm:$0xff] %vm313, %v447
      %480 = vst.msk [vmem:[#allocation3 + $0xc0] sm:$0xff] %vm313, %v448
      %481 = vst.msk [vmem:[#allocation3 + $0xc8] sm:$0xff] %vm313, %v449
      %482 = vst.msk [vmem:[#allocation3 + $0xd0] sm:$0xff] %vm313, %v450
      %483 = vst.msk [vmem:[#allocation3 + $0xd8] sm:$0xff] %vm313, %v451
      %484 = vst.msk [vmem:[#allocation3 + $0xe0] sm:$0xff] %vm313, %v452
      %485 = vst.msk [vmem:[#allocation3 + $0xe8] sm:$0xff] %vm313, %v453
      %486 = vst.msk [vmem:[#allocation3 + $0xf0] sm:$0xff] %vm313, %v454
      %487 = vst.msk [vmem:[#allocation3 + $0xf8] sm:$0xff] %vm313, %v455
      %v488 = vld [vmem:[#allocation2 + $0x1] sm:$0xff]
      %v489 = vld [vmem:[#allocation2 + $0x9] sm:$0xff]
      %v490 = vld [vmem:[#allocation2 + $0x19] sm:$0xff]
      %v491 = vld [vmem:[#allocation2 + $0x21] sm:$0xff]
      %v492 = vld [vmem:[#allocation2 + $0x31] sm:$0xff]
      %v493 = vld [vmem:[#allocation2 + $0x39] sm:$0xff]
      %v494 = vld [vmem:[#allocation2 + $0x49] sm:$0xff]
      %v495 = vld [vmem:[#allocation2 + $0x51] sm:$0xff]
      %v496 = vld [vmem:[#allocation2 + $0x61] sm:$0xff]
      %v497 = vld [vmem:[#allocation2 + $0x69] sm:$0xff]
      %v498 = vld [vmem:[#allocation2 + $0x79] sm:$0xff]
      %v499 = vld [vmem:[#allocation2 + $0x81] sm:$0xff]
      %v500 = vld [vmem:[#allocation2 + $0x91] sm:$0xff]
      %v501 = vld [vmem:[#allocation2 + $0x99] sm:$0xff]
      %v502 = vld [vmem:[#allocation2 + $0xa9] sm:$0xff]
      %v503 = vld [vmem:[#allocation2 + $0xb1] sm:$0xff]
      %v504 = vld [vmem:[#allocation2 + $0xc1] sm:$0xff]
      %v505 = vld [vmem:[#allocation2 + $0xc9] sm:$0xff]
      %v506 = vld [vmem:[#allocation2 + $0xd9] sm:$0xff]
      %v507 = vld [vmem:[#allocation2 + $0xe1] sm:$0xff]
      %v508 = vld [vmem:[#allocation2 + $0xf1] sm:$0xff]
      %v509 = vld [vmem:[#allocation2 + $0xf9] sm:$0xff]
      %v510 = vld [vmem:[#allocation2 + $0x109] sm:$0xff]
      %v511 = vld [vmem:[#allocation2 + $0x111] sm:$0xff]
      %v512 = vld [vmem:[#allocation2 + $0x121] sm:$0xff]
      %v513 = vld [vmem:[#allocation2 + $0x129] sm:$0xff]
      %v514 = vld [vmem:[#allocation2 + $0x139] sm:$0xff]
      %v515 = vld [vmem:[#allocation2 + $0x141] sm:$0xff]
      %v516 = vld [vmem:[#allocation2 + $0x151] sm:$0xff]
      %v517 = vld [vmem:[#allocation2 + $0x159] sm:$0xff]
      %v518 = vld [vmem:[#allocation2 + $0x169] sm:$0xff]
      %v519 = vld [vmem:[#allocation2 + $0x171] sm:$0xff]
      %552 = vrot.lane.b32.xlu0 %v488, 4
      %v553 = vpop.permute.xlu0 %552
      %554 = vrot.lane.b32.xlu0 %v489, 4
      %v555 = vpop.permute.xlu0 %554
      %556 = vrot.lane.b32.xlu0 %v490, 4
      %v557 = vpop.permute.xlu0 %556
      %558 = vrot.lane.b32.xlu0 %v491, 4
      %v559 = vpop.permute.xlu0 %558
      %560 = vrot.lane.b32.xlu0 %v492, 4
      %v561 = vpop.permute.xlu0 %560
      %562 = vrot.lane.b32.xlu0 %v493, 4
      %v563 = vpop.permute.xlu0 %562
      %564 = vrot.lane.b32.xlu0 %v494, 4
      %v565 = vpop.permute.xlu0 %564
      %566 = vrot.lane.b32.xlu0 %v495, 4
      %v567 = vpop.permute.xlu0 %566
      %568 = vrot.lane.b32.xlu0 %v496, 4
      %v569 = vpop.permute.xlu0 %568
      %570 = vrot.lane.b32.xlu0 %v497, 4
      %v571 = vpop.permute.xlu0 %570
      %572 = vrot.lane.b32.xlu0 %v498, 4
      %v573 = vpop.permute.xlu0 %572
      %574 = vrot.lane.b32.xlu0 %v499, 4
      %v575 = vpop.permute.xlu0 %574
      %576 = vrot.lane.b32.xlu0 %v500, 4
      %v577 = vpop.permute.xlu0 %576
      %578 = vrot.lane.b32.xlu0 %v501, 4
      %v579 = vpop.permute.xlu0 %578
      %580 = vrot.lane.b32.xlu0 %v502, 4
      %v581 = vpop.permute.xlu0 %580
      %582 = vrot.lane.b32.xlu0 %v503, 4
      %v583 = vpop.permute.xlu0 %582
      %584 = vrot.lane.b32.xlu0 %v504, 4
      %v585 = vpop.permute.xlu0 %584
      %586 = vrot.lane.b32.xlu0 %v505, 4
      %v587 = vpop.permute.xlu0 %586
      %588 = vrot.lane.b32.xlu0 %v506, 4
      %v589 = vpop.permute.xlu0 %588
      %590 = vrot.lane.b32.xlu0 %v507, 4
      %v591 = vpop.permute.xlu0 %590
      %592 = vrot.lane.b32.xlu0 %v508, 4
      %v593 = vpop.permute.xlu0 %592
      %594 = vrot.lane.b32.xlu0 %v509, 4
      %v595 = vpop.permute.xlu0 %594
      %596 = vrot.lane.b32.xlu0 %v510, 4
      %v597 = vpop.permute.xlu0 %596
      %598 = vrot.lane.b32.xlu0 %v511, 4
      %v599 = vpop.permute.xlu0 %598
      %600 = vrot.lane.b32.xlu0 %v512, 4
      %v601 = vpop.permute.xlu0 %600
      %602 = vrot.lane.b32.xlu0 %v513, 4
      %v603 = vpop.permute.xlu0 %602
      %604 = vrot.lane.b32.xlu0 %v514, 4
      %v605 = vpop.permute.xlu0 %604
      %606 = vrot.lane.b32.xlu0 %v515, 4
      %v607 = vpop.permute.xlu0 %606
      %608 = vrot.lane.b32.xlu0 %v516, 4
      %v609 = vpop.permute.xlu0 %608
      %610 = vrot.lane.b32.xlu0 %v517, 4
      %v611 = vpop.permute.xlu0 %610
      %612 = vrot.lane.b32.xlu0 %v518, 4
      %v613 = vpop.permute.xlu0 %612
      %614 = vrot.lane.b32.xlu0 %v519, 4
      %v615 = vpop.permute.xlu0 %614
      %vm648 = vcmask 64544
      %649 = vst.msk [vmem:[#allocation3] sm:$0xff] %vm648, %v553
      %650 = vst.msk [vmem:[#allocation3 + $0x8] sm:$0xff] %vm648, %v555
      %651 = vst.msk [vmem:[#allocation3 + $0x10] sm:$0xff] %vm648, %v557
      %652 = vst.msk [vmem:[#allocation3 + $0x18] sm:$0xff] %vm648, %v559
      %653 = vst.msk [vmem:[#allocation3 + $0x20] sm:$0xff] %vm648, %v561
      %654 = vst.msk [vmem:[#allocation3 + $0x28] sm:$0xff] %vm648, %v563
      %655 = vst.msk [vmem:[#allocation3 + $0x30] sm:$0xff] %vm648, %v565
      %656 = vst.msk [vmem:[#allocation3 + $0x38] sm:$0xff] %vm648, %v567
      %657 = vst.msk [vmem:[#allocation3 + $0x40] sm:$0xff] %vm648, %v569
      %658 = vst.msk [vmem:[#allocation3 + $0x48] sm:$0xff] %vm648, %v571
      %659 = vst.msk [vmem:[#allocation3 + $0x50] sm:$0xff] %vm648, %v573
      %660 = vst.msk [vmem:[#allocation3 + $0x58] sm:$0xff] %vm648, %v575
      %661 = vst.msk [vmem:[#allocation3 + $0x60] sm:$0xff] %vm648, %v577
      %662 = vst.msk [vmem:[#allocation3 + $0x68] sm:$0xff] %vm648, %v579
      %663 = vst.msk [vmem:[#allocation3 + $0x70] sm:$0xff] %vm648, %v581
      %664 = vst.msk [vmem:[#allocation3 + $0x78] sm:$0xff] %vm648, %v583
      %665 = vst.msk [vmem:[#allocation3 + $0x80] sm:$0xff] %vm648, %v585
      %666 = vst.msk [vmem:[#allocation3 + $0x88] sm:$0xff] %vm648, %v587
      %667 = vst.msk [vmem:[#allocation3 + $0x90] sm:$0xff] %vm648, %v589
      %668 = vst.msk [vmem:[#allocation3 + $0x98] sm:$0xff] %vm648, %v591
      %669 = vst.msk [vmem:[#allocation3 + $0xa0] sm:$0xff] %vm648, %v593
      %670 = vst.msk [vmem:[#allocation3 + $0xa8] sm:$0xff] %vm648, %v595
      %671 = vst.msk [vmem:[#allocation3 + $0xb0] sm:$0xff] %vm648, %v597
      %672 = vst.msk [vmem:[#allocation3 + $0xb8] sm:$0xff] %vm648, %v599
      %673 = vst.msk [vmem:[#allocation3 + $0xc0] sm:$0xff] %vm648, %v601
      %674 = vst.msk [vmem:[#allocation3 + $0xc8] sm:$0xff] %vm648, %v603
      %675 = vst.msk [vmem:[#allocation3 + $0xd0] sm:$0xff] %vm648, %v605
      %676 = vst.msk [vmem:[#allocation3 + $0xd8] sm:$0xff] %vm648, %v607
      %677 = vst.msk [vmem:[#allocation3 + $0xe0] sm:$0xff] %vm648, %v609
      %678 = vst.msk [vmem:[#allocation3 + $0xe8] sm:$0xff] %vm648, %v611
      %679 = vst.msk [vmem:[#allocation3 + $0xf0] sm:$0xff] %vm648, %v613
      %680 = vst.msk [vmem:[#allocation3 + $0xf8] sm:$0xff] %vm648, %v615
      %v681 = vld [vmem:[#allocation2 + $0x2] sm:$0xff]
      %v682 = vld [vmem:[#allocation2 + $0xa] sm:$0xff]
      %v683 = vld [vmem:[#allocation2 + $0x1a] sm:$0xff]
      %v684 = vld [vmem:[#allocation2 + $0x22] sm:$0xff]
      %v685 = vld [vmem:[#allocation2 + $0x32] sm:$0xff]
      %v686 = vld [vmem:[#allocation2 + $0x3a] sm:$0xff]
      %v687 = vld [vmem:[#allocation2 + $0x4a] sm:$0xff]
      %v688 = vld [vmem:[#allocation2 + $0x52] sm:$0xff]
      %v689 = vld [vmem:[#allocation2 + $0x62] sm:$0xff]
      %v690 = vld [vmem:[#allocation2 + $0x6a] sm:$0xff]
      %v691 = vld [vmem:[#allocation2 + $0x7a] sm:$0xff]
      %v692 = vld [vmem:[#allocation2 + $0x82] sm:$0xff]
      %v693 = vld [vmem:[#allocation2 + $0x92] sm:$0xff]
      %v694 = vld [vmem:[#allocation2 + $0x9a] sm:$0xff]
      %v695 = vld [vmem:[#allocation2 + $0xaa] sm:$0xff]
      %v696 = vld [vmem:[#allocation2 + $0xb2] sm:$0xff]
      %v697 = vld [vmem:[#allocation2 + $0xc2] sm:$0xff]
      %v698 = vld [vmem:[#allocation2 + $0xca] sm:$0xff]
      %v699 = vld [vmem:[#allocation2 + $0xda] sm:$0xff]
      %v700 = vld [vmem:[#allocation2 + $0xe2] sm:$0xff]
      %v701 = vld [vmem:[#allocation2 + $0xf2] sm:$0xff]
      %v702 = vld [vmem:[#allocation2 + $0xfa] sm:$0xff]
      %v703 = vld [vmem:[#allocation2 + $0x10a] sm:$0xff]
      %v704 = vld [vmem:[#allocation2 + $0x112] sm:$0xff]
      %v705 = vld [vmem:[#allocation2 + $0x122] sm:$0xff]
      %v706 = vld [vmem:[#allocation2 + $0x12a] sm:$0xff]
      %v707 = vld [vmem:[#allocation2 + $0x13a] sm:$0xff]
      %v708 = vld [vmem:[#allocation2 + $0x142] sm:$0xff]
      %v709 = vld [vmem:[#allocation2 + $0x152] sm:$0xff]
      %v710 = vld [vmem:[#allocation2 + $0x15a] sm:$0xff]
      %v711 = vld [vmem:[#allocation2 + $0x16a] sm:$0xff]
      %v712 = vld [vmem:[#allocation2 + $0x172] sm:$0xff]
      %745 = vrot.lane.b32.xlu0 %v681, 8
      %v746 = vpop.permute.xlu0 %745
      %747 = vrot.lane.b32.xlu0 %v682, 8
      %v748 = vpop.permute.xlu0 %747
      %749 = vrot.lane.b32.xlu0 %v683, 8
      %v750 = vpop.permute.xlu0 %749
      %751 = vrot.lane.b32.xlu0 %v684, 8
      %v752 = vpop.permute.xlu0 %751
      %753 = vrot.lane.b32.xlu0 %v685, 8
      %v754 = vpop.permute.xlu0 %753
      %755 = vrot.lane.b32.xlu0 %v686, 8
      %v756 = vpop.permute.xlu0 %755
      %757 = vrot.lane.b32.xlu0 %v687, 8
      %v758 = vpop.permute.xlu0 %757
      %759 = vrot.lane.b32.xlu0 %v688, 8
      %v760 = vpop.permute.xlu0 %759
      %761 = vrot.lane.b32.xlu0 %v689, 8
      %v762 = vpop.permute.xlu0 %761
      %763 = vrot.lane.b32.xlu0 %v690, 8
      %v764 = vpop.permute.xlu0 %763
      %765 = vrot.lane.b32.xlu0 %v691, 8
      %v766 = vpop.permute.xlu0 %765
      %767 = vrot.lane.b32.xlu0 %v692, 8
      %v768 = vpop.permute.xlu0 %767
      %769 = vrot.lane.b32.xlu0 %v693, 8
      %v770 = vpop.permute.xlu0 %769
      %771 = vrot.lane.b32.xlu0 %v694, 8
      %v772 = vpop.permute.xlu0 %771
      %773 = vrot.lane.b32.xlu0 %v695, 8
      %v774 = vpop.permute.xlu0 %773
      %775 = vrot.lane.b32.xlu0 %v696, 8
      %v776 = vpop.permute.xlu0 %775
      %777 = vrot.lane.b32.xlu0 %v697, 8
      %v778 = vpop.permute.xlu0 %777
      %779 = vrot.lane.b32.xlu0 %v698, 8
      %v780 = vpop.permute.xlu0 %779
      %781 = vrot.lane.b32.xlu0 %v699, 8
      %v782 = vpop.permute.xlu0 %781
      %783 = vrot.lane.b32.xlu0 %v700, 8
      %v784 = vpop.permute.xlu0 %783
      %785 = vrot.lane.b32.xlu0 %v701, 8
      %v786 = vpop.permute.xlu0 %785
      %787 = vrot.lane.b32.xlu0 %v702, 8
      %v788 = vpop.permute.xlu0 %787
      %789 = vrot.lane.b32.xlu0 %v703, 8
      %v790 = vpop.permute.xlu0 %789
      %791 = vrot.lane.b32.xlu0 %v704, 8
      %v792 = vpop.permute.xlu0 %791
      %793 = vrot.lane.b32.xlu0 %v705, 8
      %v794 = vpop.permute.xlu0 %793
      %795 = vrot.lane.b32.xlu0 %v706, 8
      %v796 = vpop.permute.xlu0 %795
      %797 = vrot.lane.b32.xlu0 %v707, 8
      %v798 = vpop.permute.xlu0 %797
      %799 = vrot.lane.b32.xlu0 %v708, 8
      %v800 = vpop.permute.xlu0 %799
      %801 = vrot.lane.b32.xlu0 %v709, 8
      %v802 = vpop.permute.xlu0 %801
      %803 = vrot.lane.b32.xlu0 %v710, 8
      %v804 = vpop.permute.xlu0 %803
      %805 = vrot.lane.b32.xlu0 %v711, 8
      %v806 = vpop.permute.xlu0 %805
      %807 = vrot.lane.b32.xlu0 %v712, 8
      %v808 = vpop.permute.xlu0 %807
      %vm841 = vcmask 97344
      %842 = vst.msk [vmem:[#allocation3] sm:$0xff] %vm841, %v746
      %843 = vst.msk [vmem:[#allocation3 + $0x8] sm:$0xff] %vm841, %v748
      %844 = vst.msk [vmem:[#allocation3 + $0x10] sm:$0xff] %vm841, %v750
      %845 = vst.msk [vmem:[#allocation3 + $0x18] sm:$0xff] %vm841, %v752
      %846 = vst.msk [vmem:[#allocation3 + $0x20] sm:$0xff] %vm841, %v754
      %847 = vst.msk [vmem:[#allocation3 + $0x28] sm:$0xff] %vm841, %v756
      %848 = vst.msk [vmem:[#allocation3 + $0x30] sm:$0xff] %vm841, %v758
      %849 = vst.msk [vmem:[#allocation3 + $0x38] sm:$0xff] %vm841, %v760
      %850 = vst.msk [vmem:[#allocation3 + $0x40] sm:$0xff] %vm841, %v762
      %851 = vst.msk [vmem:[#allocation3 + $0x48] sm:$0xff] %vm841, %v764
      %852 = vst.msk [vmem:[#allocation3 + $0x50] sm:$0xff] %vm841, %v766
      %853 = vst.msk [vmem:[#allocation3 + $0x58] sm:$0xff] %vm841, %v768
      %854 = vst.msk [vmem:[#allocation3 + $0x60] sm:$0xff] %vm841, %v770
      %855 = vst.msk [vmem:[#allocation3 + $0x68] sm:$0xff] %vm841, %v772
      %856 = vst.msk [vmem:[#allocation3 + $0x70] sm:$0xff] %vm841, %v774
      %857 = vst.msk [vmem:[#allocation3 + $0x78] sm:$0xff] %vm841, %v776
      %858 = vst.msk [vmem:[#allocation3 + $0x80] sm:$0xff] %vm841, %v778
      %859 = vst.msk [vmem:[#allocation3 + $0x88] sm:$0xff] %vm841, %v780
      %860 = vst.msk [vmem:[#allocation3 + $0x90] sm:$0xff] %vm841, %v782
      %861 = vst.msk [vmem:[#allocation3 + $0x98] sm:$0xff] %vm841, %v784
      %862 = vst.msk [vmem:[#allocation3 + $0xa0] sm:$0xff] %vm841, %v786
      %863 = vst.msk [vmem:[#allocation3 + $0xa8] sm:$0xff] %vm841, %v788
      %864 = vst.msk [vmem:[#allocation3 + $0xb0] sm:$0xff] %vm841, %v790
      %865 = vst.msk [vmem:[#allocation3 + $0xb8] sm:$0xff] %vm841, %v792
      %866 = vst.msk [vmem:[#allocation3 + $0xc0] sm:$0xff] %vm841, %v794
      %867 = vst.msk [vmem:[#allocation3 + $0xc8] sm:$0xff] %vm841, %v796
      %868 = vst.msk [vmem:[#allocation3 + $0xd0] sm:$0xff] %vm841, %v798
      %869 = vst.msk [vmem:[#allocation3 + $0xd8] sm:$0xff] %vm841, %v800
      %870 = vst.msk [vmem:[#allocation3 + $0xe0] sm:$0xff] %vm841, %v802
      %871 = vst.msk [vmem:[#allocation3 + $0xe8] sm:$0xff] %vm841, %v804
      %872 = vst.msk [vmem:[#allocation3 + $0xf0] sm:$0xff] %vm841, %v806
      %873 = vst.msk [vmem:[#allocation3 + $0xf8] sm:$0xff] %vm841, %v808
      %v874 = vld [vmem:[%s312] sm:$0xff]
      %v875 = vld [vmem:[%s312 + $0x8] sm:$0xff]
      %v876 = vld [vmem:[%s312 + $0x18] sm:$0xff]
      %v877 = vld [vmem:[%s312 + $0x20] sm:$0xff]
      %v878 = vld [vmem:[%s312 + $0x30] sm:$0xff]
      %v879 = vld [vmem:[%s312 + $0x38] sm:$0xff]
      %v880 = vld [vmem:[%s312 + $0x48] sm:$0xff]
      %v881 = vld [vmem:[%s312 + $0x50] sm:$0xff]
      %v882 = vld [vmem:[%s312 + $0x60] sm:$0xff]
      %v883 = vld [vmem:[%s312 + $0x68] sm:$0xff]
      %v884 = vld [vmem:[%s312 + $0x78] sm:$0xff]
      %v885 = vld [vmem:[%s312 + $0x80] sm:$0xff]
      %v886 = vld [vmem:[%s312 + $0x90] sm:$0xff]
      %v887 = vld [vmem:[%s312 + $0x98] sm:$0xff]
      %v888 = vld [vmem:[%s312 + $0xa8] sm:$0xff]
      %v889 = vld [vmem:[%s312 + $0xb0] sm:$0xff]
      %v890 = vld [vmem:[%s312 + $0xc0] sm:$0xff]
      %v891 = vld [vmem:[%s312 + $0xc8] sm:$0xff]
      %v892 = vld [vmem:[%s312 + $0xd8] sm:$0xff]
      %v893 = vld [vmem:[%s312 + $0xe0] sm:$0xff]
      %v894 = vld [vmem:[%s312 + $0xf0] sm:$0xff]
      %v895 = vld [vmem:[%s312 + $0xf8] sm:$0xff]
      %v896 = vld [vmem:[%s312 + $0x108] sm:$0xff]
      %v897 = vld [vmem:[%s312 + $0x110] sm:$0xff]
      %v898 = vld [vmem:[%s312 + $0x120] sm:$0xff]
      %v899 = vld [vmem:[%s312 + $0x128] sm:$0xff]
      %v900 = vld [vmem:[%s312 + $0x138] sm:$0xff]
      %v901 = vld [vmem:[%s312 + $0x140] sm:$0xff]
      %v902 = vld [vmem:[%s312 + $0x150] sm:$0xff]
      %v903 = vld [vmem:[%s312 + $0x158] sm:$0xff]
      %v904 = vld [vmem:[%s312 + $0x168] sm:$0xff]
      %v905 = vld [vmem:[%s312 + $0x170] sm:$0xff]
      %938 = vrot.lane.b32.xlu0 %v874, 12
      %v939 = vpop.permute.xlu0 %938
      %940 = vrot.lane.b32.xlu0 %v875, 12
      %v941 = vpop.permute.xlu0 %940
      %942 = vrot.lane.b32.xlu0 %v876, 12
      %v943 = vpop.permute.xlu0 %942
      %944 = vrot.lane.b32.xlu0 %v877, 12
      %v945 = vpop.permute.xlu0 %944
      %946 = vrot.lane.b32.xlu0 %v878, 12
      %v947 = vpop.permute.xlu0 %946
      %948 = vrot.lane.b32.xlu0 %v879, 12
      %v949 = vpop.permute.xlu0 %948
      %950 = vrot.lane.b32.xlu0 %v880, 12
      %v951 = vpop.permute.xlu0 %950
      %952 = vrot.lane.b32.xlu0 %v881, 12
      %v953 = vpop.permute.xlu0 %952
      %954 = vrot.lane.b32.xlu0 %v882, 12
      %v955 = vpop.permute.xlu0 %954
      %956 = vrot.lane.b32.xlu0 %v883, 12
      %v957 = vpop.permute.xlu0 %956
      %958 = vrot.lane.b32.xlu0 %v884, 12
      %v959 = vpop.permute.xlu0 %958
      %960 = vrot.lane.b32.xlu0 %v885, 12
      %v961 = vpop.permute.xlu0 %960
      %962 = vrot.lane.b32.xlu0 %v886, 12
      %v963 = vpop.permute.xlu0 %962
      %964 = vrot.lane.b32.xlu0 %v887, 12
      %v965 = vpop.permute.xlu0 %964
      %966 = vrot.lane.b32.xlu0 %v888, 12
      %v967 = vpop.permute.xlu0 %966
      %968 = vrot.lane.b32.xlu0 %v889, 12
      %v969 = vpop.permute.xlu0 %968
      %970 = vrot.lane.b32.xlu0 %v890, 12
      %v971 = vpop.permute.xlu0 %970
      %972 = vrot.lane.b32.xlu0 %v891, 12
      %v973 = vpop.permute.xlu0 %972
      %974 = vrot.lane.b32.xlu0 %v892, 12
      %v975 = vpop.permute.xlu0 %974
      %976 = vrot.lane.b32.xlu0 %v893, 12
      %v977 = vpop.permute.xlu0 %976
      %978 = vrot.lane.b32.xlu0 %v894, 12
      %v979 = vpop.permute.xlu0 %978
      %980 = vrot.lane.b32.xlu0 %v895, 12
      %v981 = vpop.permute.xlu0 %980
      %982 = vrot.lane.b32.xlu0 %v896, 12
      %v983 = vpop.permute.xlu0 %982
      %984 = vrot.lane.b32.xlu0 %v897, 12
      %v985 = vpop.permute.xlu0 %984
      %986 = vrot.lane.b32.xlu0 %v898, 12
      %v987 = vpop.permute.xlu0 %986
      %988 = vrot.lane.b32.xlu0 %v899, 12
      %v989 = vpop.permute.xlu0 %988
      %990 = vrot.lane.b32.xlu0 %v900, 12
      %v991 = vpop.permute.xlu0 %990
      %992 = vrot.lane.b32.xlu0 %v901, 12
      %v993 = vpop.permute.xlu0 %992
      %994 = vrot.lane.b32.xlu0 %v902, 12
      %v995 = vpop.permute.xlu0 %994
      %996 = vrot.lane.b32.xlu0 %v903, 12
      %v997 = vpop.permute.xlu0 %996
      %998 = vrot.lane.b32.xlu0 %v904, 12
      %v999 = vpop.permute.xlu0 %998
      %1000 = vrot.lane.b32.xlu0 %v905, 12
      %v1001 = vpop.permute.xlu0 %1000
      %vm1034 = vcmask 130144
      %1035 = vst.msk [vmem:[#allocation3] sm:$0xff] %vm1034, %v939
      %1036 = vst.msk [vmem:[#allocation3 + $0x8] sm:$0xff] %vm1034, %v941
      %1037 = vst.msk [vmem:[#allocation3 + $0x10] sm:$0xff] %vm1034, %v943
      %1038 = vst.msk [vmem:[#allocation3 + $0x18] sm:$0xff] %vm1034, %v945
      %1039 = vst.msk [vmem:[#allocation3 + $0x20] sm:$0xff] %vm1034, %v947
      %1040 = vst.msk [vmem:[#allocation3 + $0x28] sm:$0xff] %vm1034, %v949
      %1041 = vst.msk [vmem:[#allocation3 + $0x30] sm:$0xff] %vm1034, %v951
      %1042 = vst.msk [vmem:[#allocation3 + $0x38] sm:$0xff] %vm1034, %v953
      %1043 = vst.msk [vmem:[#allocation3 + $0x40] sm:$0xff] %vm1034, %v955
      %1044 = vst.msk [vmem:[#allocation3 + $0x48] sm:$0xff] %vm1034, %v957
      %1045 = vst.msk [vmem:[#allocation3 + $0x50] sm:$0xff] %vm1034, %v959
      %1046 = vst.msk [vmem:[#allocation3 + $0x58] sm:$0xff] %vm1034, %v961
      %1047 = vst.msk [vmem:[#allocation3 + $0x60] sm:$0xff] %vm1034, %v963
      %1048 = vst.msk [vmem:[#allocation3 + $0x68] sm:$0xff] %vm1034, %v965
      %1049 = vst.msk [vmem:[#allocation3 + $0x70] sm:$0xff] %vm1034, %v967
      %1050 = vst.msk [vmem:[#allocation3 + $0x78] sm:$0xff] %vm1034, %v969
      %1051 = vst.msk [vmem:[#allocation3 + $0x80] sm:$0xff] %vm1034, %v971
      %1052 = vst.msk [vmem:[#allocation3 + $0x88] sm:$0xff] %vm1034, %v973
      %1053 = vst.msk [vmem:[#allocation3 + $0x90] sm:$0xff] %vm1034, %v975
      %1054 = vst.msk [vmem:[#allocation3 + $0x98] sm:$0xff] %vm1034, %v977
      %1055 = vst.msk [vmem:[#allocation3 + $0xa0] sm:$0xff] %vm1034, %v979
      %1056 = vst.msk [vmem:[#allocation3 + $0xa8] sm:$0xff] %vm1034, %v981
      %1057 = vst.msk [vmem:[#allocation3 + $0xb0] sm:$0xff] %vm1034, %v983
      %1058 = vst.msk [vmem:[#allocation3 + $0xb8] sm:$0xff] %vm1034, %v985
      %1059 = vst.msk [vmem:[#allocation3 + $0xc0] sm:$0xff] %vm1034, %v987
      %1060 = vst.msk [vmem:[#allocation3 + $0xc8] sm:$0xff] %vm1034, %v989
      %1061 = vst.msk [vmem:[#allocation3 + $0xd0] sm:$0xff] %vm1034, %v991
      %1062 = vst.msk [vmem:[#allocation3 + $0xd8] sm:$0xff] %vm1034, %v993
      %1063 = vst.msk [vmem:[#allocation3 + $0xe0] sm:$0xff] %vm1034, %v995
      %1064 = vst.msk [vmem:[#allocation3 + $0xe8] sm:$0xff] %vm1034, %v997
      %1065 = vst.msk [vmem:[#allocation3 + $0xf0] sm:$0xff] %vm1034, %v999
      %1066 = vst.msk [vmem:[#allocation3 + $0xf8] sm:$0xff] %vm1034, %v1001
      %v1067 = vld [vmem:[%s312 + $0x1] sm:$0xff]
      %v1068 = vld [vmem:[%s312 + $0x9] sm:$0xff]
      %v1069 = vld [vmem:[%s312 + $0x19] sm:$0xff]
      %v1070 = vld [vmem:[%s312 + $0x21] sm:$0xff]
      %v1071 = vld [vmem:[%s312 + $0x31] sm:$0xff]
      %v1072 = vld [vmem:[%s312 + $0x39] sm:$0xff]
      %v1073 = vld [vmem:[%s312 + $0x49] sm:$0xff]
      %v1074 = vld [vmem:[%s312 + $0x51] sm:$0xff]
      %v1075 = vld [vmem:[%s312 + $0x61] sm:$0xff]
      %v1076 = vld [vmem:[%s312 + $0x69] sm:$0xff]
      %v1077 = vld [vmem:[%s312 + $0x79] sm:$0xff]
      %v1078 = vld [vmem:[%s312 + $0x81] sm:$0xff]
      %v1079 = vld [vmem:[%s312 + $0x91] sm:$0xff]
      %v1080 = vld [vmem:[%s312 + $0x99] sm:$0xff]
      %v1081 = vld [vmem:[%s312 + $0xa9] sm:$0xff]
      %v1082 = vld [vmem:[%s312 + $0xb1] sm:$0xff]
      %v1083 = vld [vmem:[%s312 + $0xc1] sm:$0xff]
      %v1084 = vld [vmem:[%s312 + $0xc9] sm:$0xff]
      %v1085 = vld [vmem:[%s312 + $0xd9] sm:$0xff]
      %v1086 = vld [vmem:[%s312 + $0xe1] sm:$0xff]
      %v1087 = vld [vmem:[%s312 + $0xf1] sm:$0xff]
      %v1088 = vld [vmem:[%s312 + $0xf9] sm:$0xff]
      %v1089 = vld [vmem:[%s312 + $0x109] sm:$0xff]
      %v1090 = vld [vmem:[%s312 + $0x111] sm:$0xff]
      %v1091 = vld [vmem:[%s312 + $0x121] sm:$0xff]
      %v1092 = vld [vmem:[%s312 + $0x129] sm:$0xff]
      %v1093 = vld [vmem:[%s312 + $0x139] sm:$0xff]
      %v1094 = vld [vmem:[%s312 + $0x141] sm:$0xff]
      %v1095 = vld [vmem:[%s312 + $0x151] sm:$0xff]
      %v1096 = vld [vmem:[%s312 + $0x159] sm:$0xff]
      %v1097 = vld [vmem:[%s312 + $0x169] sm:$0xff]
      %v1098 = vld [vmem:[%s312 + $0x171] sm:$0xff]
      %1131 = vrot.lane.b32.xlu0 %v1067, 16
      %v1132 = vpop.permute.xlu0 %1131
      %1133 = vrot.lane.b32.xlu0 %v1068, 16
      %v1134 = vpop.permute.xlu0 %1133
      %1135 = vrot.lane.b32.xlu0 %v1069, 16
      %v1136 = vpop.permute.xlu0 %1135
      %1137 = vrot.lane.b32.xlu0 %v1070, 16
      %v1138 = vpop.permute.xlu0 %1137
      %1139 = vrot.lane.b32.xlu0 %v1071, 16
      %v1140 = vpop.permute.xlu0 %1139
      %1141 = vrot.lane.b32.xlu0 %v1072, 16
      %v1142 = vpop.permute.xlu0 %1141
      %1143 = vrot.lane.b32.xlu0 %v1073, 16
      %v1144 = vpop.permute.xlu0 %1143
      %1145 = vrot.lane.b32.xlu0 %v1074, 16
      %v1146 = vpop.permute.xlu0 %1145
      %1147 = vrot.lane.b32.xlu0 %v1075, 16
      %v1148 = vpop.permute.xlu0 %1147
      %1149 = vrot.lane.b32.xlu0 %v1076, 16
      %v1150 = vpop.permute.xlu0 %1149
      %1151 = vrot.lane.b32.xlu0 %v1077, 16
      %v1152 = vpop.permute.xlu0 %1151
      %1153 = vrot.lane.b32.xlu0 %v1078, 16
      %v1154 = vpop.permute.xlu0 %1153
      %1155 = vrot.lane.b32.xlu0 %v1079, 16
      %v1156 = vpop.permute.xlu0 %1155
      %1157 = vrot.lane.b32.xlu0 %v1080, 16
      %v1158 = vpop.permute.xlu0 %1157
      %1159 = vrot.lane.b32.xlu0 %v1081, 16
      %v1160 = vpop.permute.xlu0 %1159
      %1161 = vrot.lane.b32.xlu0 %v1082, 16
      %v1162 = vpop.permute.xlu0 %1161
      %1163 = vrot.lane.b32.xlu0 %v1083, 16
      %v1164 = vpop.permute.xlu0 %1163
      %1165 = vrot.lane.b32.xlu0 %v1084, 16
      %v1166 = vpop.permute.xlu0 %1165
      %1167 = vrot.lane.b32.xlu0 %v1085, 16
      %v1168 = vpop.permute.xlu0 %1167
      %1169 = vrot.lane.b32.xlu0 %v1086, 16
      %v1170 = vpop.permute.xlu0 %1169
      %1171 = vrot.lane.b32.xlu0 %v1087, 16
      %v1172 = vpop.permute.xlu0 %1171
      %1173 = vrot.lane.b32.xlu0 %v1088, 16
      %v1174 = vpop.permute.xlu0 %1173
      %1175 = vrot.lane.b32.xlu0 %v1089, 16
      %v1176 = vpop.permute.xlu0 %1175
      %1177 = vrot.lane.b32.xlu0 %v1090, 16
      %v1178 = vpop.permute.xlu0 %1177
      %1179 = vrot.lane.b32.xlu0 %v1091, 16
      %v1180 = vpop.permute.xlu0 %1179
      %1181 = vrot.lane.b32.xlu0 %v1092, 16
      %v1182 = vpop.permute.xlu0 %1181
      %1183 = vrot.lane.b32.xlu0 %v1093, 16
      %v1184 = vpop.permute.xlu0 %1183
      %1185 = vrot.lane.b32.xlu0 %v1094, 16
      %v1186 = vpop.permute.xlu0 %1185
      %1187 = vrot.lane.b32.xlu0 %v1095, 16
      %v1188 = vpop.permute.xlu0 %1187
      %1189 = vrot.lane.b32.xlu0 %v1096, 16
      %v1190 = vpop.permute.xlu0 %1189
      %1191 = vrot.lane.b32.xlu0 %v1097, 16
      %v1192 = vpop.permute.xlu0 %1191
      %1193 = vrot.lane.b32.xlu0 %v1098, 16
      %v1194 = vpop.permute.xlu0 %1193
      %vm1227 = vcmask 162944
      %1228 = vst.msk [vmem:[#allocation3] sm:$0xff] %vm1227, %v1132
      %1229 = vst.msk [vmem:[#allocation3 + $0x8] sm:$0xff] %vm1227, %v1134
      %1230 = vst.msk [vmem:[#allocation3 + $0x10] sm:$0xff] %vm1227, %v1136
      %1231 = vst.msk [vmem:[#allocation3 + $0x18] sm:$0xff] %vm1227, %v1138
      %1232 = vst.msk [vmem:[#allocation3 + $0x20] sm:$0xff] %vm1227, %v1140
      %1233 = vst.msk [vmem:[#allocation3 + $0x28] sm:$0xff] %vm1227, %v1142
      %1234 = vst.msk [vmem:[#allocation3 + $0x30] sm:$0xff] %vm1227, %v1144
      %1235 = vst.msk [vmem:[#allocation3 + $0x38] sm:$0xff] %vm1227, %v1146
      %1236 = vst.msk [vmem:[#allocation3 + $0x40] sm:$0xff] %vm1227, %v1148
      %1237 = vst.msk [vmem:[#allocation3 + $0x48] sm:$0xff] %vm1227, %v1150
      %1238 = vst.msk [vmem:[#allocation3 + $0x50] sm:$0xff] %vm1227, %v1152
      %1239 = vst.msk [vmem:[#allocation3 + $0x58] sm:$0xff] %vm1227, %v1154
      %1240 = vst.msk [vmem:[#allocation3 + $0x60] sm:$0xff] %vm1227, %v1156
      %1241 = vst.msk [vmem:[#allocation3 + $0x68] sm:$0xff] %vm1227, %v1158
      %1242 = vst.msk [vmem:[#allocation3 + $0x70] sm:$0xff] %vm1227, %v1160
      %1243 = vst.msk [vmem:[#allocation3 + $0x78] sm:$0xff] %vm1227, %v1162
      %1244 = vst.msk [vmem:[#allocation3 + $0x80] sm:$0xff] %vm1227, %v1164
      %1245 = vst.msk [vmem:[#allocation3 + $0x88] sm:$0xff] %vm1227, %v1166
      %1246 = vst.msk [vmem:[#allocation3 + $0x90] sm:$0xff] %vm1227, %v1168
      %1247 = vst.msk [vmem:[#allocation3 + $0x98] sm:$0xff] %vm1227, %v1170
      %1248 = vst.msk [vmem:[#allocation3 + $0xa0] sm:$0xff] %vm1227, %v1172
      %1249 = vst.msk [vmem:[#allocation3 + $0xa8] sm:$0xff] %vm1227, %v1174
      %1250 = vst.msk [vmem:[#allocation3 + $0xb0] sm:$0xff] %vm1227, %v1176
      %1251 = vst.msk [vmem:[#allocation3 + $0xb8] sm:$0xff] %vm1227, %v1178
      %1252 = vst.msk [vmem:[#allocation3 + $0xc0] sm:$0xff] %vm1227, %v1180
      %1253 = vst.msk [vmem:[#allocation3 + $0xc8] sm:$0xff] %vm1227, %v1182
      %1254 = vst.msk [vmem:[#allocation3 + $0xd0] sm:$0xff] %vm1227, %v1184
      %1255 = vst.msk [vmem:[#allocation3 + $0xd8] sm:$0xff] %vm1227, %v1186
      %1256 = vst.msk [vmem:[#allocation3 + $0xe0] sm:$0xff] %vm1227, %v1188
      %1257 = vst.msk [vmem:[#allocation3 + $0xe8] sm:$0xff] %vm1227, %v1190
      %1258 = vst.msk [vmem:[#allocation3 + $0xf0] sm:$0xff] %vm1227, %v1192
      %1259 = vst.msk [vmem:[#allocation3 + $0xf8] sm:$0xff] %vm1227, %v1194
      %v1260 = vld [vmem:[%s312 + $0x2] sm:$0xff]
      %v1261 = vld [vmem:[%s312 + $0xa] sm:$0xff]
      %v1262 = vld [vmem:[%s312 + $0x1a] sm:$0xff]
      %v1263 = vld [vmem:[%s312 + $0x22] sm:$0xff]
      %v1264 = vld [vmem:[%s312 + $0x32] sm:$0xff]
      %v1265 = vld [vmem:[%s312 + $0x3a] sm:$0xff]
      %v1266 = vld [vmem:[%s312 + $0x4a] sm:$0xff]
      %v1267 = vld [vmem:[%s312 + $0x52] sm:$0xff]
      %v1268 = vld [vmem:[%s312 + $0x62] sm:$0xff]
      %v1269 = vld [vmem:[%s312 + $0x6a] sm:$0xff]
      %v1270 = vld [vmem:[%s312 + $0x7a] sm:$0xff]
      %v1271 = vld [vmem:[%s312 + $0x82] sm:$0xff]
      %v1272 = vld [vmem:[%s312 + $0x92] sm:$0xff]
      %v1273 = vld [vmem:[%s312 + $0x9a] sm:$0xff]
      %v1274 = vld [vmem:[%s312 + $0xaa] sm:$0xff]
      %v1275 = vld [vmem:[%s312 + $0xb2] sm:$0xff]
      %v1276 = vld [vmem:[%s312 + $0xc2] sm:$0xff]
      %v1277 = vld [vmem:[%s312 + $0xca] sm:$0xff]
      %v1278 = vld [vmem:[%s312 + $0xda] sm:$0xff]
      %v1279 = vld [vmem:[%s312 + $0xe2] sm:$0xff]
      %v1280 = vld [vmem:[%s312 + $0xf2] sm:$0xff]
      %v1281 = vld [vmem:[%s312 + $0xfa] sm:$0xff]
      %v1282 = vld [vmem:[%s312 + $0x10a] sm:$0xff]
      %v1283 = vld [vmem:[%s312 + $0x112] sm:$0xff]
      %v1284 = vld [vmem:[%s312 + $0x122] sm:$0xff]
      %v1285 = vld [vmem:[%s312 + $0x12a] sm:$0xff]
      %v1286 = vld [vmem:[%s312 + $0x13a] sm:$0xff]
      %v1287 = vld [vmem:[%s312 + $0x142] sm:$0xff]
      %v1288 = vld [vmem:[%s312 + $0x152] sm:$0xff]
      %v1289 = vld [vmem:[%s312 + $0x15a] sm:$0xff]
      %v1290 = vld [vmem:[%s312 + $0x16a] sm:$0xff]
      %v1291 = vld [vmem:[%s312 + $0x172] sm:$0xff]
      %1324 = vrot.lane.b32.xlu0 %v1260, 20
      %v1325 = vpop.permute.xlu0 %1324
      %1326 = vrot.lane.b32.xlu0 %v1261, 20
      %v1327 = vpop.permute.xlu0 %1326
      %1328 = vrot.lane.b32.xlu0 %v1262, 20
      %v1329 = vpop.permute.xlu0 %1328
      %1330 = vrot.lane.b32.xlu0 %v1263, 20
      %v1331 = vpop.permute.xlu0 %1330
      %1332 = vrot.lane.b32.xlu0 %v1264, 20
      %v1333 = vpop.permute.xlu0 %1332
      %1334 = vrot.lane.b32.xlu0 %v1265, 20
      %v1335 = vpop.permute.xlu0 %1334
      %1336 = vrot.lane.b32.xlu0 %v1266, 20
      %v1337 = vpop.permute.xlu0 %1336
      %1338 = vrot.lane.b32.xlu0 %v1267, 20
      %v1339 = vpop.permute.xlu0 %1338
      %1340 = vrot.lane.b32.xlu0 %v1268, 20
      %v1341 = vpop.permute.xlu0 %1340
      %1342 = vrot.lane.b32.xlu0 %v1269, 20
      %v1343 = vpop.permute.xlu0 %1342
      %1344 = vrot.lane.b32.xlu0 %v1270, 20
      %v1345 = vpop.permute.xlu0 %1344
      %1346 = vrot.lane.b32.xlu0 %v1271, 20
      %v1347 = vpop.permute.xlu0 %1346
      %1348 = vrot.lane.b32.xlu0 %v1272, 20
      %v1349 = vpop.permute.xlu0 %1348
      %1350 = vrot.lane.b32.xlu0 %v1273, 20
      %v1351 = vpop.permute.xlu0 %1350
      %1352 = vrot.lane.b32.xlu0 %v1274, 20
      %v1353 = vpop.permute.xlu0 %1352
      %1354 = vrot.lane.b32.xlu0 %v1275, 20
      %v1355 = vpop.permute.xlu0 %1354
      %1356 = vrot.lane.b32.xlu0 %v1276, 20
      %v1357 = vpop.permute.xlu0 %1356
      %1358 = vrot.lane.b32.xlu0 %v1277, 20
      %v1359 = vpop.permute.xlu0 %1358
      %1360 = vrot.lane.b32.xlu0 %v1278, 20
      %v1361 = vpop.permute.xlu0 %1360
      %1362 = vrot.lane.b32.xlu0 %v1279, 20
      %v1363 = vpop.permute.xlu0 %1362
      %1364 = vrot.lane.b32.xlu0 %v1280, 20
      %v1365 = vpop.permute.xlu0 %1364
      %1366 = vrot.lane.b32.xlu0 %v1281, 20
      %v1367 = vpop.permute.xlu0 %1366
      %1368 = vrot.lane.b32.xlu0 %v1282, 20
      %v1369 = vpop.permute.xlu0 %1368
      %1370 = vrot.lane.b32.xlu0 %v1283, 20
      %v1371 = vpop.permute.xlu0 %1370
      %1372 = vrot.lane.b32.xlu0 %v1284, 20
      %v1373 = vpop.permute.xlu0 %1372
      %1374 = vrot.lane.b32.xlu0 %v1285, 20
      %v1375 = vpop.permute.xlu0 %1374
      %1376 = vrot.lane.b32.xlu0 %v1286, 20
      %v1377 = vpop.permute.xlu0 %1376
      %1378 = vrot.lane.b32.xlu0 %v1287, 20
      %v1379 = vpop.permute.xlu0 %1378
      %1380 = vrot.lane.b32.xlu0 %v1288, 20
      %v1381 = vpop.permute.xlu0 %1380
      %1382 = vrot.lane.b32.xlu0 %v1289, 20
      %v1383 = vpop.permute.xlu0 %1382
      %1384 = vrot.lane.b32.xlu0 %v1290, 20
      %v1385 = vpop.permute.xlu0 %1384
      %1386 = vrot.lane.b32.xlu0 %v1291, 20
      %v1387 = vpop.permute.xlu0 %1386
      %vm1420 = vcmask 195744
      %1421 = vst.msk [vmem:[#allocation3] sm:$0xff] %vm1420, %v1325
      %1422 = vst.msk [vmem:[#allocation3 + $0x8] sm:$0xff] %vm1420, %v1327
      %1423 = vst.msk [vmem:[#allocation3 + $0x10] sm:$0xff] %vm1420, %v1329
      %1424 = vst.msk [vmem:[#allocation3 + $0x18] sm:$0xff] %vm1420, %v1331
      %1425 = vst.msk [vmem:[#allocation3 + $0x20] sm:$0xff] %vm1420, %v1333
      %1426 = vst.msk [vmem:[#allocation3 + $0x28] sm:$0xff] %vm1420, %v1335
      %1427 = vst.msk [vmem:[#allocation3 + $0x30] sm:$0xff] %vm1420, %v1337
      %1428 = vst.msk [vmem:[#allocation3 + $0x38] sm:$0xff] %vm1420, %v1339
      %1429 = vst.msk [vmem:[#allocation3 + $0x40] sm:$0xff] %vm1420, %v1341
      %1430 = vst.msk [vmem:[#allocation3 + $0x48] sm:$0xff] %vm1420, %v1343
      %1431 = vst.msk [vmem:[#allocation3 + $0x50] sm:$0xff] %vm1420, %v1345
      %1432 = vst.msk [vmem:[#allocation3 + $0x58] sm:$0xff] %vm1420, %v1347
      %1433 = vst.msk [vmem:[#allocation3 + $0x60] sm:$0xff] %vm1420, %v1349
      %1434 = vst.msk [vmem:[#allocation3 + $0x68] sm:$0xff] %vm1420, %v1351
      %1435 = vst.msk [vmem:[#allocation3 + $0x70] sm:$0xff] %vm1420, %v1353
      %1436 = vst.msk [vmem:[#allocation3 + $0x78] sm:$0xff] %vm1420, %v1355
      %1437 = vst.msk [vmem:[#allocation3 + $0x80] sm:$0xff] %vm1420, %v1357
      %1438 = vst.msk [vmem:[#allocation3 + $0x88] sm:$0xff] %vm1420, %v1359
      %1439 = vst.msk [vmem:[#allocation3 + $0x90] sm:$0xff] %vm1420, %v1361
      %1440 = vst.msk [vmem:[#allocation3 + $0x98] sm:$0xff] %vm1420, %v1363
      %1441 = vst.msk [vmem:[#allocation3 + $0xa0] sm:$0xff] %vm1420, %v1365
      %1442 = vst.msk [vmem:[#allocation3 + $0xa8] sm:$0xff] %vm1420, %v1367
      %1443 = vst.msk [vmem:[#allocation3 + $0xb0] sm:$0xff] %vm1420, %v1369
      %1444 = vst.msk [vmem:[#allocation3 + $0xb8] sm:$0xff] %vm1420, %v1371
      %1445 = vst.msk [vmem:[#allocation3 + $0xc0] sm:$0xff] %vm1420, %v1373
      %1446 = vst.msk [vmem:[#allocation3 + $0xc8] sm:$0xff] %vm1420, %v1375
      %1447 = vst.msk [vmem:[#allocation3 + $0xd0] sm:$0xff] %vm1420, %v1377
      %1448 = vst.msk [vmem:[#allocation3 + $0xd8] sm:$0xff] %vm1420, %v1379
      %1449 = vst.msk [vmem:[#allocation3 + $0xe0] sm:$0xff] %vm1420, %v1381
      %1450 = vst.msk [vmem:[#allocation3 + $0xe8] sm:$0xff] %vm1420, %v1383
      %1451 = vst.msk [vmem:[#allocation3 + $0xf0] sm:$0xff] %vm1420, %v1385
      %1452 = vst.msk [vmem:[#allocation3 + $0xf8] sm:$0xff] %vm1420, %v1387
      %s1453 = scalar_lea.vmem [#allocation2], 48
      %v1454 = vld [vmem:[%s1453] sm:$0xff]
      %v1455 = vld [vmem:[%s1453 + $0x8] sm:$0xff]
      %v1456 = vld [vmem:[%s1453 + $0x18] sm:$0xff]
      %v1457 = vld [vmem:[%s1453 + $0x20] sm:$0xff]
      %v1458 = vld [vmem:[%s1453 + $0x30] sm:$0xff]
      %v1459 = vld [vmem:[%s1453 + $0x38] sm:$0xff]
      %v1460 = vld [vmem:[%s1453 + $0x48] sm:$0xff]
      %v1461 = vld [vmem:[%s1453 + $0x50] sm:$0xff]
      %v1462 = vld [vmem:[%s1453 + $0x60] sm:$0xff]
      %v1463 = vld [vmem:[%s1453 + $0x68] sm:$0xff]
      %v1464 = vld [vmem:[%s1453 + $0x78] sm:$0xff]
      %v1465 = vld [vmem:[%s1453 + $0x80] sm:$0xff]
      %v1466 = vld [vmem:[%s1453 + $0x90] sm:$0xff]
      %v1467 = vld [vmem:[%s1453 + $0x98] sm:$0xff]
      %v1468 = vld [vmem:[%s1453 + $0xa8] sm:$0xff]
      %v1469 = vld [vmem:[%s1453 + $0xb0] sm:$0xff]
      %v1470 = vld [vmem:[%s1453 + $0xc0] sm:$0xff]
      %v1471 = vld [vmem:[%s1453 + $0xc8] sm:$0xff]
      %v1472 = vld [vmem:[%s1453 + $0xd8] sm:$0xff]
      %v1473 = vld [vmem:[%s1453 + $0xe0] sm:$0xff]
      %v1474 = vld [vmem:[%s1453 + $0xf0] sm:$0xff]
      %v1475 = vld [vmem:[%s1453 + $0xf8] sm:$0xff]
      %v1476 = vld [vmem:[%s1453 + $0x108] sm:$0xff]
      %v1477 = vld [vmem:[%s1453 + $0x110] sm:$0xff]
      %v1478 = vld [vmem:[%s1453 + $0x120] sm:$0xff]
      %v1479 = vld [vmem:[%s1453 + $0x128] sm:$0xff]
      %v1480 = vld [vmem:[%s1453 + $0x138] sm:$0xff]
      %v1481 = vld [vmem:[%s1453 + $0x140] sm:$0xff]
      %v1482 = vld [vmem:[%s1453 + $0x150] sm:$0xff]
      %v1483 = vld [vmem:[%s1453 + $0x158] sm:$0xff]
      %v1484 = vld [vmem:[%s1453 + $0x168] sm:$0xff]
      %v1485 = vld [vmem:[%s1453 + $0x170] sm:$0xff]
      %1518 = vrot.lane.b32.xlu0 %v1454, 24
      %v1519 = vpop.permute.xlu0 %1518
      %1520 = vrot.lane.b32.xlu0 %v1455, 24
      %v1521 = vpop.permute.xlu0 %1520
      %1522 = vrot.lane.b32.xlu0 %v1456, 24
      %v1523 = vpop.permute.xlu0 %1522
      %1524 = vrot.lane.b32.xlu0 %v1457, 24
      %v1525 = vpop.permute.xlu0 %1524
      %1526 = vrot.lane.b32.xlu0 %v1458, 24
      %v1527 = vpop.permute.xlu0 %1526
      %1528 = vrot.lane.b32.xlu0 %v1459, 24
      %v1529 = vpop.permute.xlu0 %1528
      %1530 = vrot.lane.b32.xlu0 %v1460, 24
      %v1531 = vpop.permute.xlu0 %1530
      %1532 = vrot.lane.b32.xlu0 %v1461, 24
      %v1533 = vpop.permute.xlu0 %1532
      %1534 = vrot.lane.b32.xlu0 %v1462, 24
      %v1535 = vpop.permute.xlu0 %1534
      %1536 = vrot.lane.b32.xlu0 %v1463, 24
      %v1537 = vpop.permute.xlu0 %1536
      %1538 = vrot.lane.b32.xlu0 %v1464, 24
      %v1539 = vpop.permute.xlu0 %1538
      %1540 = vrot.lane.b32.xlu0 %v1465, 24
      %v1541 = vpop.permute.xlu0 %1540
      %1542 = vrot.lane.b32.xlu0 %v1466, 24
      %v1543 = vpop.permute.xlu0 %1542
      %1544 = vrot.lane.b32.xlu0 %v1467, 24
      %v1545 = vpop.permute.xlu0 %1544
      %1546 = vrot.lane.b32.xlu0 %v1468, 24
      %v1547 = vpop.permute.xlu0 %1546
      %1548 = vrot.lane.b32.xlu0 %v1469, 24
      %v1549 = vpop.permute.xlu0 %1548
      %1550 = vrot.lane.b32.xlu0 %v1470, 24
      %v1551 = vpop.permute.xlu0 %1550
      %1552 = vrot.lane.b32.xlu0 %v1471, 24
      %v1553 = vpop.permute.xlu0 %1552
      %1554 = vrot.lane.b32.xlu0 %v1472, 24
      %v1555 = vpop.permute.xlu0 %1554
      %1556 = vrot.lane.b32.xlu0 %v1473, 24
      %v1557 = vpop.permute.xlu0 %1556
      %1558 = vrot.lane.b32.xlu0 %v1474, 24
      %v1559 = vpop.permute.xlu0 %1558
      %1560 = vrot.lane.b32.xlu0 %v1475, 24
      %v1561 = vpop.permute.xlu0 %1560
      %1562 = vrot.lane.b32.xlu0 %v1476, 24
      %v1563 = vpop.permute.xlu0 %1562
      %1564 = vrot.lane.b32.xlu0 %v1477, 24
      %v1565 = vpop.permute.xlu0 %1564
      %1566 = vrot.lane.b32.xlu0 %v1478, 24
      %v1567 = vpop.permute.xlu0 %1566
      %1568 = vrot.lane.b32.xlu0 %v1479, 24
      %v1569 = vpop.permute.xlu0 %1568
      %1570 = vrot.lane.b32.xlu0 %v1480, 24
      %v1571 = vpop.permute.xlu0 %1570
      %1572 = vrot.lane.b32.xlu0 %v1481, 24
      %v1573 = vpop.permute.xlu0 %1572
      %1574 = vrot.lane.b32.xlu0 %v1482, 24
      %v1575 = vpop.permute.xlu0 %1574
      %1576 = vrot.lane.b32.xlu0 %v1483, 24
      %v1577 = vpop.permute.xlu0 %1576
      %1578 = vrot.lane.b32.xlu0 %v1484, 24
      %v1579 = vpop.permute.xlu0 %1578
      %1580 = vrot.lane.b32.xlu0 %v1485, 24
      %v1581 = vpop.permute.xlu0 %1580
      %vm1614 = vcmask 228544
      %1615 = vst.msk [vmem:[#allocation3] sm:$0xff] %vm1614, %v1519
      %1616 = vst.msk [vmem:[#allocation3 + $0x8] sm:$0xff] %vm1614, %v1521
      %1617 = vst.msk [vmem:[#allocation3 + $0x10] sm:$0xff] %vm1614, %v1523
      %1618 = vst.msk [vmem:[#allocation3 + $0x18] sm:$0xff] %vm1614, %v1525
      %1619 = vst.msk [vmem:[#allocation3 + $0x20] sm:$0xff] %vm1614, %v1527
      %1620 = vst.msk [vmem:[#allocation3 + $0x28] sm:$0xff] %vm1614, %v1529
      %1621 = vst.msk [vmem:[#allocation3 + $0x30] sm:$0xff] %vm1614, %v1531
      %1622 = vst.msk [vmem:[#allocation3 + $0x38] sm:$0xff] %vm1614, %v1533
      %1623 = vst.msk [vmem:[#allocation3 + $0x40] sm:$0xff] %vm1614, %v1535
      %1624 = vst.msk [vmem:[#allocation3 + $0x48] sm:$0xff] %vm1614, %v1537
      %1625 = vst.msk [vmem:[#allocation3 + $0x50] sm:$0xff] %vm1614, %v1539
      %1626 = vst.msk [vmem:[#allocation3 + $0x58] sm:$0xff] %vm1614, %v1541
      %1627 = vst.msk [vmem:[#allocation3 + $0x60] sm:$0xff] %vm1614, %v1543
      %1628 = vst.msk [vmem:[#allocation3 + $0x68] sm:$0xff] %vm1614, %v1545
      %1629 = vst.msk [vmem:[#allocation3 + $0x70] sm:$0xff] %vm1614, %v1547
      %1630 = vst.msk [vmem:[#allocation3 + $0x78] sm:$0xff] %vm1614, %v1549
      %1631 = vst.msk [vmem:[#allocation3 + $0x80] sm:$0xff] %vm1614, %v1551
      %1632 = vst.msk [vmem:[#allocation3 + $0x88] sm:$0xff] %vm1614, %v1553
      %1633 = vst.msk [vmem:[#allocation3 + $0x90] sm:$0xff] %vm1614, %v1555
      %1634 = vst.msk [vmem:[#allocation3 + $0x98] sm:$0xff] %vm1614, %v1557
      %1635 = vst.msk [vmem:[#allocation3 + $0xa0] sm:$0xff] %vm1614, %v1559
      %1636 = vst.msk [vmem:[#allocation3 + $0xa8] sm:$0xff] %vm1614, %v1561
      %1637 = vst.msk [vmem:[#allocation3 + $0xb0] sm:$0xff] %vm1614, %v1563
      %1638 = vst.msk [vmem:[#allocation3 + $0xb8] sm:$0xff] %vm1614, %v1565
      %1639 = vst.msk [vmem:[#allocation3 + $0xc0] sm:$0xff] %vm1614, %v1567
      %1640 = vst.msk [vmem:[#allocation3 + $0xc8] sm:$0xff] %vm1614, %v1569
      %1641 = vst.msk [vmem:[#allocation3 + $0xd0] sm:$0xff] %vm1614, %v1571
      %1642 = vst.msk [vmem:[#allocation3 + $0xd8] sm:$0xff] %vm1614, %v1573
      %1643 = vst.msk [vmem:[#allocation3 + $0xe0] sm:$0xff] %vm1614, %v1575
      %1644 = vst.msk [vmem:[#allocation3 + $0xe8] sm:$0xff] %vm1614, %v1577
      %1645 = vst.msk [vmem:[#allocation3 + $0xf0] sm:$0xff] %vm1614, %v1579
      %1646 = vst.msk [vmem:[#allocation3 + $0xf8] sm:$0xff] %vm1614, %v1581
      %v1647 = vld [vmem:[%s1453 + $0x1] sm:$0xff]
      %v1648 = vld [vmem:[%s1453 + $0x9] sm:$0xff]
      %v1649 = vld [vmem:[%s1453 + $0x19] sm:$0xff]
      %v1650 = vld [vmem:[%s1453 + $0x21] sm:$0xff]
      %v1651 = vld [vmem:[%s1453 + $0x31] sm:$0xff]
      %v1652 = vld [vmem:[%s1453 + $0x39] sm:$0xff]
      %v1653 = vld [vmem:[%s1453 + $0x49] sm:$0xff]
      %v1654 = vld [vmem:[%s1453 + $0x51] sm:$0xff]
      %v1655 = vld [vmem:[%s1453 + $0x61] sm:$0xff]
      %v1656 = vld [vmem:[%s1453 + $0x69] sm:$0xff]
      %v1657 = vld [vmem:[%s1453 + $0x79] sm:$0xff]
      %v1658 = vld [vmem:[%s1453 + $0x81] sm:$0xff]
      %v1659 = vld [vmem:[%s1453 + $0x91] sm:$0xff]
      %v1660 = vld [vmem:[%s1453 + $0x99] sm:$0xff]
      %v1661 = vld [vmem:[%s1453 + $0xa9] sm:$0xff]
      %v1662 = vld [vmem:[%s1453 + $0xb1] sm:$0xff]
      %v1663 = vld [vmem:[%s1453 + $0xc1] sm:$0xff]
      %v1664 = vld [vmem:[%s1453 + $0xc9] sm:$0xff]
      %v1665 = vld [vmem:[%s1453 + $0xd9] sm:$0xff]
      %v1666 = vld [vmem:[%s1453 + $0xe1] sm:$0xff]
      %v1667 = vld [vmem:[%s1453 + $0xf1] sm:$0xff]
      %v1668 = vld [vmem:[%s1453 + $0xf9] sm:$0xff]
      %v1669 = vld [vmem:[%s1453 + $0x109] sm:$0xff]
      %v1670 = vld [vmem:[%s1453 + $0x111] sm:$0xff]
      %v1671 = vld [vmem:[%s1453 + $0x121] sm:$0xff]
      %v1672 = vld [vmem:[%s1453 + $0x129] sm:$0xff]
      %v1673 = vld [vmem:[%s1453 + $0x139] sm:$0xff]
      %v1674 = vld [vmem:[%s1453 + $0x141] sm:$0xff]
      %v1675 = vld [vmem:[%s1453 + $0x151] sm:$0xff]
      %v1676 = vld [vmem:[%s1453 + $0x159] sm:$0xff]
      %v1677 = vld [vmem:[%s1453 + $0x169] sm:$0xff]
      %v1678 = vld [vmem:[%s1453 + $0x171] sm:$0xff]
      %1711 = vrot.lane.b32.xlu0 %v1647, 28
      %v1712 = vpop.permute.xlu0 %1711
      %1713 = vrot.lane.b32.xlu0 %v1648, 28
      %v1714 = vpop.permute.xlu0 %1713
      %1715 = vrot.lane.b32.xlu0 %v1649, 28
      %v1716 = vpop.permute.xlu0 %1715
      %1717 = vrot.lane.b32.xlu0 %v1650, 28
      %v1718 = vpop.permute.xlu0 %1717
      %1719 = vrot.lane.b32.xlu0 %v1651, 28
      %v1720 = vpop.permute.xlu0 %1719
      %1721 = vrot.lane.b32.xlu0 %v1652, 28
      %v1722 = vpop.permute.xlu0 %1721
      %1723 = vrot.lane.b32.xlu0 %v1653, 28
      %v1724 = vpop.permute.xlu0 %1723
      %1725 = vrot.lane.b32.xlu0 %v1654, 28
      %v1726 = vpop.permute.xlu0 %1725
      %1727 = vrot.lane.b32.xlu0 %v1655, 28
      %v1728 = vpop.permute.xlu0 %1727
      %1729 = vrot.lane.b32.xlu0 %v1656, 28
      %v1730 = vpop.permute.xlu0 %1729
      %1731 = vrot.lane.b32.xlu0 %v1657, 28
      %v1732 = vpop.permute.xlu0 %1731
      %1733 = vrot.lane.b32.xlu0 %v1658, 28
      %v1734 = vpop.permute.xlu0 %1733
      %1735 = vrot.lane.b32.xlu0 %v1659, 28
      %v1736 = vpop.permute.xlu0 %1735
      %1737 = vrot.lane.b32.xlu0 %v1660, 28
      %v1738 = vpop.permute.xlu0 %1737
      %1739 = vrot.lane.b32.xlu0 %v1661, 28
      %v1740 = vpop.permute.xlu0 %1739
      %1741 = vrot.lane.b32.xlu0 %v1662, 28
      %v1742 = vpop.permute.xlu0 %1741
      %1743 = vrot.lane.b32.xlu0 %v1663, 28
      %v1744 = vpop.permute.xlu0 %1743
      %1745 = vrot.lane.b32.xlu0 %v1664, 28
      %v1746 = vpop.permute.xlu0 %1745
      %1747 = vrot.lane.b32.xlu0 %v1665, 28
      %v1748 = vpop.permute.xlu0 %1747
      %1749 = vrot.lane.b32.xlu0 %v1666, 28
      %v1750 = vpop.permute.xlu0 %1749
      %1751 = vrot.lane.b32.xlu0 %v1667, 28
      %v1752 = vpop.permute.xlu0 %1751
      %1753 = vrot.lane.b32.xlu0 %v1668, 28
      %v1754 = vpop.permute.xlu0 %1753
      %1755 = vrot.lane.b32.xlu0 %v1669, 28
      %v1756 = vpop.permute.xlu0 %1755
      %1757 = vrot.lane.b32.xlu0 %v1670, 28
      %v1758 = vpop.permute.xlu0 %1757
      %1759 = vrot.lane.b32.xlu0 %v1671, 28
      %v1760 = vpop.permute.xlu0 %1759
      %1761 = vrot.lane.b32.xlu0 %v1672, 28
      %v1762 = vpop.permute.xlu0 %1761
      %1763 = vrot.lane.b32.xlu0 %v1673, 28
      %v1764 = vpop.permute.xlu0 %1763
      %1765 = vrot.lane.b32.xlu0 %v1674, 28
      %v1766 = vpop.permute.xlu0 %1765
      %1767 = vrot.lane.b32.xlu0 %v1675, 28
      %v1768 = vpop.permute.xlu0 %1767
      %1769 = vrot.lane.b32.xlu0 %v1676, 28
      %v1770 = vpop.permute.xlu0 %1769
      %1771 = vrot.lane.b32.xlu0 %v1677, 28
      %v1772 = vpop.permute.xlu0 %1771
      %1773 = vrot.lane.b32.xlu0 %v1678, 28
      %v1774 = vpop.permute.xlu0 %1773
      %vm1807 = vcmask 261344
      %1808 = vst.msk [vmem:[#allocation3] sm:$0xff] %vm1807, %v1712
      %1809 = vst.msk [vmem:[#allocation3 + $0x8] sm:$0xff] %vm1807, %v1714
      %1810 = vst.msk [vmem:[#allocation3 + $0x10] sm:$0xff] %vm1807, %v1716
      %1811 = vst.msk [vmem:[#allocation3 + $0x18] sm:$0xff] %vm1807, %v1718
      %1812 = vst.msk [vmem:[#allocation3 + $0x20] sm:$0xff] %vm1807, %v1720
      %1813 = vst.msk [vmem:[#allocation3 + $0x28] sm:$0xff] %vm1807, %v1722
      %1814 = vst.msk [vmem:[#allocation3 + $0x30] sm:$0xff] %vm1807, %v1724
      %1815 = vst.msk [vmem:[#allocation3 + $0x38] sm:$0xff] %vm1807, %v1726
      %1816 = vst.msk [vmem:[#allocation3 + $0x40] sm:$0xff] %vm1807, %v1728
      %1817 = vst.msk [vmem:[#allocation3 + $0x48] sm:$0xff] %vm1807, %v1730
      %1818 = vst.msk [vmem:[#allocation3 + $0x50] sm:$0xff] %vm1807, %v1732
      %1819 = vst.msk [vmem:[#allocation3 + $0x58] sm:$0xff] %vm1807, %v1734
      %1820 = vst.msk [vmem:[#allocation3 + $0x60] sm:$0xff] %vm1807, %v1736
      %1821 = vst.msk [vmem:[#allocation3 + $0x68] sm:$0xff] %vm1807, %v1738
      %1822 = vst.msk [vmem:[#allocation3 + $0x70] sm:$0xff] %vm1807, %v1740
      %1823 = vst.msk [vmem:[#allocation3 + $0x78] sm:$0xff] %vm1807, %v1742
      %1824 = vst.msk [vmem:[#allocation3 + $0x80] sm:$0xff] %vm1807, %v1744
      %1825 = vst.msk [vmem:[#allocation3 + $0x88] sm:$0xff] %vm1807, %v1746
      %1826 = vst.msk [vmem:[#allocation3 + $0x90] sm:$0xff] %vm1807, %v1748
      %1827 = vst.msk [vmem:[#allocation3 + $0x98] sm:$0xff] %vm1807, %v1750
      %1828 = vst.msk [vmem:[#allocation3 + $0xa0] sm:$0xff] %vm1807, %v1752
      %1829 = vst.msk [vmem:[#allocation3 + $0xa8] sm:$0xff] %vm1807, %v1754
      %1830 = vst.msk [vmem:[#allocation3 + $0xb0] sm:$0xff] %vm1807, %v1756
      %1831 = vst.msk [vmem:[#allocation3 + $0xb8] sm:$0xff] %vm1807, %v1758
      %1832 = vst.msk [vmem:[#allocation3 + $0xc0] sm:$0xff] %vm1807, %v1760
      %1833 = vst.msk [vmem:[#allocation3 + $0xc8] sm:$0xff] %vm1807, %v1762
      %1834 = vst.msk [vmem:[#allocation3 + $0xd0] sm:$0xff] %vm1807, %v1764
      %1835 = vst.msk [vmem:[#allocation3 + $0xd8] sm:$0xff] %vm1807, %v1766
      %1836 = vst.msk [vmem:[#allocation3 + $0xe0] sm:$0xff] %vm1807, %v1768
      %1837 = vst.msk [vmem:[#allocation3 + $0xe8] sm:$0xff] %vm1807, %v1770
      %1838 = vst.msk [vmem:[#allocation3 + $0xf0] sm:$0xff] %vm1807, %v1772
      %1839 = vst.msk [vmem:[#allocation3 + $0xf8] sm:$0xff] %vm1807, %v1774
      %v1840 = vld [vmem:[%s1453 + $0x2] sm:$0xff]
      %v1841 = vld [vmem:[%s1453 + $0xa] sm:$0xff]
      %v1842 = vld [vmem:[%s1453 + $0x1a] sm:$0xff]
      %v1843 = vld [vmem:[%s1453 + $0x22] sm:$0xff]
      %v1844 = vld [vmem:[%s1453 + $0x32] sm:$0xff]
      %v1845 = vld [vmem:[%s1453 + $0x3a] sm:$0xff]
      %v1846 = vld [vmem:[%s1453 + $0x4a] sm:$0xff]
      %v1847 = vld [vmem:[%s1453 + $0x52] sm:$0xff]
      %v1848 = vld [vmem:[%s1453 + $0x62] sm:$0xff]
      %v1849 = vld [vmem:[%s1453 + $0x6a] sm:$0xff]
      %v1850 = vld [vmem:[%s1453 + $0x7a] sm:$0xff]
      %v1851 = vld [vmem:[%s1453 + $0x82] sm:$0xff]
      %v1852 = vld [vmem:[%s1453 + $0x92] sm:$0xff]
      %v1853 = vld [vmem:[%s1453 + $0x9a] sm:$0xff]
      %v1854 = vld [vmem:[%s1453 + $0xaa] sm:$0xff]
      %v1855 = vld [vmem:[%s1453 + $0xb2] sm:$0xff]
      %v1856 = vld [vmem:[%s1453 + $0xc2] sm:$0xff]
      %v1857 = vld [vmem:[%s1453 + $0xca] sm:$0xff]
      %v1858 = vld [vmem:[%s1453 + $0xda] sm:$0xff]
      %v1859 = vld [vmem:[%s1453 + $0xe2] sm:$0xff]
      %v1860 = vld [vmem:[%s1453 + $0xf2] sm:$0xff]
      %v1861 = vld [vmem:[%s1453 + $0xfa] sm:$0xff]
      %v1862 = vld [vmem:[%s1453 + $0x10a] sm:$0xff]
      %v1863 = vld [vmem:[%s1453 + $0x112] sm:$0xff]
      %v1864 = vld [vmem:[%s1453 + $0x122] sm:$0xff]
      %v1865 = vld [vmem:[%s1453 + $0x12a] sm:$0xff]
      %v1866 = vld [vmem:[%s1453 + $0x13a] sm:$0xff]
      %v1867 = vld [vmem:[%s1453 + $0x142] sm:$0xff]
      %v1868 = vld [vmem:[%s1453 + $0x152] sm:$0xff]
      %v1869 = vld [vmem:[%s1453 + $0x15a] sm:$0xff]
      %v1870 = vld [vmem:[%s1453 + $0x16a] sm:$0xff]
      %v1871 = vld [vmem:[%s1453 + $0x172] sm:$0xff]
      %1904 = vrot.lane.b32.xlu0 %v1840, 32
      %v1905 = vpop.permute.xlu0 %1904
      %1906 = vrot.lane.b32.xlu0 %v1841, 32
      %v1907 = vpop.permute.xlu0 %1906
      %1908 = vrot.lane.b32.xlu0 %v1842, 32
      %v1909 = vpop.permute.xlu0 %1908
      %1910 = vrot.lane.b32.xlu0 %v1843, 32
      %v1911 = vpop.permute.xlu0 %1910
      %1912 = vrot.lane.b32.xlu0 %v1844, 32
      %v1913 = vpop.permute.xlu0 %1912
      %1914 = vrot.lane.b32.xlu0 %v1845, 32
      %v1915 = vpop.permute.xlu0 %1914
      %1916 = vrot.lane.b32.xlu0 %v1846, 32
      %v1917 = vpop.permute.xlu0 %1916
      %1918 = vrot.lane.b32.xlu0 %v1847, 32
      %v1919 = vpop.permute.xlu0 %1918
      %1920 = vrot.lane.b32.xlu0 %v1848, 32
      %v1921 = vpop.permute.xlu0 %1920
      %1922 = vrot.lane.b32.xlu0 %v1849, 32
      %v1923 = vpop.permute.xlu0 %1922
      %1924 = vrot.lane.b32.xlu0 %v1850, 32
      %v1925 = vpop.permute.xlu0 %1924
      %1926 = vrot.lane.b32.xlu0 %v1851, 32
      %v1927 = vpop.permute.xlu0 %1926
      %1928 = vrot.lane.b32.xlu0 %v1852, 32
      %v1929 = vpop.permute.xlu0 %1928
      %1930 = vrot.lane.b32.xlu0 %v1853, 32
      %v1931 = vpop.permute.xlu0 %1930
      %1932 = vrot.lane.b32.xlu0 %v1854, 32
      %v1933 = vpop.permute.xlu0 %1932
      %1934 = vrot.lane.b32.xlu0 %v1855, 32
      %v1935 = vpop.permute.xlu0 %1934
      %1936 = vrot.lane.b32.xlu0 %v1856, 32
      %v1937 = vpop.permute.xlu0 %1936
      %1938 = vrot.lane.b32.xlu0 %v1857, 32
      %v1939 = vpop.permute.xlu0 %1938
      %1940 = vrot.lane.b32.xlu0 %v1858, 32
      %v1941 = vpop.permute.xlu0 %1940
      %1942 = vrot.lane.b32.xlu0 %v1859, 32
      %v1943 = vpop.permute.xlu0 %1942
      %1944 = vrot.lane.b32.xlu0 %v1860, 32
      %v1945 = vpop.permute.xlu0 %1944
      %1946 = vrot.lane.b32.xlu0 %v1861, 32
      %v1947 = vpop.permute.xlu0 %1946
      %1948 = vrot.lane.b32.xlu0 %v1862, 32
      %v1949 = vpop.permute.xlu0 %1948
      %1950 = vrot.lane.b32.xlu0 %v1863, 32
      %v1951 = vpop.permute.xlu0 %1950
      %1952 = vrot.lane.b32.xlu0 %v1864, 32
      %v1953 = vpop.permute.xlu0 %1952
      %1954 = vrot.lane.b32.xlu0 %v1865, 32
      %v1955 = vpop.permute.xlu0 %1954
      %1956 = vrot.lane.b32.xlu0 %v1866, 32
      %v1957 = vpop.permute.xlu0 %1956
      %1958 = vrot.lane.b32.xlu0 %v1867, 32
      %v1959 = vpop.permute.xlu0 %1958
      %1960 = vrot.lane.b32.xlu0 %v1868, 32
      %v1961 = vpop.permute.xlu0 %1960
      %1962 = vrot.lane.b32.xlu0 %v1869, 32
      %v1963 = vpop.permute.xlu0 %1962
      %1964 = vrot.lane.b32.xlu0 %v1870, 32
      %v1965 = vpop.permute.xlu0 %1964
      %1966 = vrot.lane.b32.xlu0 %v1871, 32
      %v1967 = vpop.permute.xlu0 %1966
      %vm2000 = vcmask 294144
      %2001 = vst.msk [vmem:[#allocation3] sm:$0xff] %vm2000, %v1905
      %2002 = vst.msk [vmem:[#allocation3 + $0x8] sm:$0xff] %vm2000, %v1907
      %2003 = vst.msk [vmem:[#allocation3 + $0x10] sm:$0xff] %vm2000, %v1909
      %2004 = vst.msk [vmem:[#allocation3 + $0x18] sm:$0xff] %vm2000, %v1911
      %2005 = vst.msk [vmem:[#allocation3 + $0x20] sm:$0xff] %vm2000, %v1913
      %2006 = vst.msk [vmem:[#allocation3 + $0x28] sm:$0xff] %vm2000, %v1915
      %2007 = vst.msk [vmem:[#allocation3 + $0x30] sm:$0xff] %vm2000, %v1917
      %2008 = vst.msk [vmem:[#allocation3 + $0x38] sm:$0xff] %vm2000, %v1919
      %2009 = vst.msk [vmem:[#allocation3 + $0x40] sm:$0xff] %vm2000, %v1921
      %2010 = vst.msk [vmem:[#allocation3 + $0x48] sm:$0xff] %vm2000, %v1923
      %2011 = vst.msk [vmem:[#allocation3 + $0x50] sm:$0xff] %vm2000, %v1925
      %2012 = vst.msk [vmem:[#allocation3 + $0x58] sm:$0xff] %vm2000, %v1927
      %2013 = vst.msk [vmem:[#allocation3 + $0x60] sm:$0xff] %vm2000, %v1929
      %2014 = vst.msk [vmem:[#allocation3 + $0x68] sm:$0xff] %vm2000, %v1931
      %2015 = vst.msk [vmem:[#allocation3 + $0x70] sm:$0xff] %vm2000, %v1933
      %2016 = vst.msk [vmem:[#allocation3 + $0x78] sm:$0xff] %vm2000, %v1935
      %2017 = vst.msk [vmem:[#allocation3 + $0x80] sm:$0xff] %vm2000, %v1937
      %2018 = vst.msk [vmem:[#allocation3 + $0x88] sm:$0xff] %vm2000, %v1939
      %2019 = vst.msk [vmem:[#allocation3 + $0x90] sm:$0xff] %vm2000, %v1941
      %2020 = vst.msk [vmem:[#allocation3 + $0x98] sm:$0xff] %vm2000, %v1943
      %2021 = vst.msk [vmem:[#allocation3 + $0xa0] sm:$0xff] %vm2000, %v1945
      %2022 = vst.msk [vmem:[#allocation3 + $0xa8] sm:$0xff] %vm2000, %v1947
      %2023 = vst.msk [vmem:[#allocation3 + $0xb0] sm:$0xff] %vm2000, %v1949
      %2024 = vst.msk [vmem:[#allocation3 + $0xb8] sm:$0xff] %vm2000, %v1951
      %2025 = vst.msk [vmem:[#allocation3 + $0xc0] sm:$0xff] %vm2000, %v1953
      %2026 = vst.msk [vmem:[#allocation3 + $0xc8] sm:$0xff] %vm2000, %v1955
      %2027 = vst.msk [vmem:[#allocation3 + $0xd0] sm:$0xff] %vm2000, %v1957
      %2028 = vst.msk [vmem:[#allocation3 + $0xd8] sm:$0xff] %vm2000, %v1959
      %2029 = vst.msk [vmem:[#allocation3 + $0xe0] sm:$0xff] %vm2000, %v1961
      %2030 = vst.msk [vmem:[#allocation3 + $0xe8] sm:$0xff] %vm2000, %v1963
      %2031 = vst.msk [vmem:[#allocation3 + $0xf0] sm:$0xff] %vm2000, %v1965
      %2032 = vst.msk [vmem:[#allocation3 + $0xf8] sm:$0xff] %vm2000, %v1967
      %v2033 = vld [vmem:[#allocation3] sm:$0xff]
      %v2034 = vld [vmem:[#allocation3 + $0x8] sm:$0xff]
      %v2035 = vld [vmem:[#allocation3 + $0x10] sm:$0xff]
      %v2036 = vld [vmem:[#allocation3 + $0x18] sm:$0xff]
      %v2037 = vld [vmem:[#allocation3 + $0x20] sm:$0xff]
      %v2038 = vld [vmem:[#allocation3 + $0x28] sm:$0xff]
      %v2039 = vld [vmem:[#allocation3 + $0x30] sm:$0xff]
      %v2040 = vld [vmem:[#allocation3 + $0x38] sm:$0xff]
      %v2041 = vld [vmem:[#allocation3 + $0x40] sm:$0xff]
      %v2042 = vld [vmem:[#allocation3 + $0x48] sm:$0xff]
      %v2043 = vld [vmem:[#allocation3 + $0x50] sm:$0xff]
      %v2044 = vld [vmem:[#allocation3 + $0x58] sm:$0xff]
      %v2045 = vld [vmem:[#allocation3 + $0x60] sm:$0xff]
      %v2046 = vld [vmem:[#allocation3 + $0x68] sm:$0xff]
      %v2047 = vld [vmem:[#allocation3 + $0x70] sm:$0xff]
      %v2048 = vld [vmem:[#allocation3 + $0x78] sm:$0xff]
      %v2049 = vld [vmem:[#allocation3 + $0x80] sm:$0xff]
      %v2050 = vld [vmem:[#allocation3 + $0x88] sm:$0xff]
      %v2051 = vld [vmem:[#allocation3 + $0x90] sm:$0xff]
      %v2052 = vld [vmem:[#allocation3 + $0x98] sm:$0xff]
      %v2053 = vld [vmem:[#allocation3 + $0xa0] sm:$0xff]
      %v2054 = vld [vmem:[#allocation3 + $0xa8] sm:$0xff]
      %v2055 = vld [vmem:[#allocation3 + $0xb0] sm:$0xff]
      %v2056 = vld [vmem:[#allocation3 + $0xb8] sm:$0xff]
      %v2057 = vld [vmem:[#allocation3 + $0xc0] sm:$0xff]
      %v2058 = vld [vmem:[#allocation3 + $0xc8] sm:$0xff]
      %v2059 = vld [vmem:[#allocation3 + $0xd0] sm:$0xff]
      %v2060 = vld [vmem:[#allocation3 + $0xd8] sm:$0xff]
      %v2061 = vld [vmem:[#allocation3 + $0xe0] sm:$0xff]
      %v2062 = vld [vmem:[#allocation3 + $0xe8] sm:$0xff]
      %v2063 = vld [vmem:[#allocation3 + $0xf0] sm:$0xff]
      %v2064 = vld [vmem:[#allocation3 + $0xf8] sm:$0xff]
      %v2065 = vpack.c.bf16 %v2034, %v2033
      %v2066 = vpack.c.bf16 %v2036, %v2035
      %v2067 = vpack.c.bf16 %v2038, %v2037
      %v2068 = vpack.c.bf16 %v2040, %v2039
      %v2069 = vpack.c.bf16 %v2042, %v2041
      %v2070 = vpack.c.bf16 %v2044, %v2043
      %v2071 = vpack.c.bf16 %v2046, %v2045
      %v2072 = vpack.c.bf16 %v2048, %v2047
      %v2073 = vpack.c.bf16 %v2050, %v2049
      %v2074 = vpack.c.bf16 %v2052, %v2051
      %v2075 = vpack.c.bf16 %v2054, %v2053
      %v2076 = vpack.c.bf16 %v2056, %v2055
      %v2077 = vpack.c.bf16 %v2058, %v2057
      %v2078 = vpack.c.bf16 %v2060, %v2059
      %v2079 = vpack.c.bf16 %v2062, %v2061
      %v2080 = vpack.c.bf16 %v2064, %v2063
      %v2081 = vld [vmem:[%s1] sm:$0xf]
      %v2082 = vld [vmem:[%s1 + $0x4] sm:$0xf]
      %v2083 = vld [vmem:[%s1 + $0x8] sm:$0xf]
      %v2084 = vld [vmem:[%s1 + $0xc] sm:$0xf]
      %v2085 = vld [vmem:[%s1 + $0x10] sm:$0x3]
      %v2091 = vunpack.c.l.b16 %v2081
      %v2092 = vunpack.c.l.b16 %v2082
      %v2093 = vunpack.c.l.b16 %v2083
      %v2094 = vunpack.c.l.b16 %v2084
      %v2095 = vunpack.c.l.b16 %v2085
      %v2096 = vpack.c.b16 %v2092, %v2091
      %v2097 = vpack.c.b16 %v2094, %v2093
      %v2098 = vpack.c.b16 %v2095, %v2095
      %vm2101 = vcmask 293888
      %v2103 = vsel %vm2101, %v2065, 0
      %v2106 = vsel %vm2101, %v2066, 0
      %v2109 = vsel %vm2101, %v2067, 0
      %v2112 = vsel %vm2101, %v2068, 0
      %v2115 = vsel %vm2101, %v2069, 0
      %v2118 = vsel %vm2101, %v2070, 0
      %v2121 = vsel %vm2101, %v2071, 0
      %v2124 = vsel %vm2101, %v2072, 0
      %v2127 = vsel %vm2101, %v2073, 0
      %v2130 = vsel %vm2101, %v2074, 0
      %v2133 = vsel %vm2101, %v2075, 0
      %v2136 = vsel %vm2101, %v2076, 0
      %v2139 = vsel %vm2101, %v2077, 0
      %v2142 = vsel %vm2101, %v2078, 0
      %v2145 = vsel %vm2101, %v2079, 0
      %v2148 = vsel %vm2101, %v2080, 0
      %vm2150 = vcmask 1041408
      %v2152 = vsel %vm2150, %v2098, 0
      %2154 = vmatprep.subr.bf16.mxu0 0
      %2155 = vmatpush1.bf16.msra.mxu0 %v2096
      %2156 = vmatprep.subr.bf16.mxu0 0
      %2157 = vmatpush1.bf16.msra.mxu0 %v2097
      %2158 = vmatprep.subr.bf16.mxu0 0
      %2159 = vmatpush1.bf16.msra.mxu0 %v2152
      %2160 = vmatprep.subr.bf16.mxu0 0
      %2161 = vmatpush1.bf16.msra.mxu0 0
      %2162 = vmatprep.subr.bf16.mxu0 0
      %2163 = vmatpush1.bf16.msra.mxu0 0
      %2164 = vmatprep.subr.bf16.mxu0 0
      %2165 = vmatpush1.bf16.msra.mxu0 0
      %2166 = vmatprep.subr.bf16.mxu0 0
      %2167 = vmatpush1.bf16.msra.mxu0 0
      %2168 = vmatprep.subr.bf16.mxu0 0
      %2169 = vmatpush1.bf16.msra.mxu0 0
      %2170 = vmatprep.subr.bf16.mxu0 0
      %2171 = vmatpush1.bf16.msra.mxu0 0
      %2172 = vmatprep.subr.bf16.mxu0 0
      %2173 = vmatpush1.bf16.msra.mxu0 0
      %2174 = vmatprep.subr.bf16.mxu0 0
      %2175 = vmatpush1.bf16.msra.mxu0 0
      %2176 = vmatprep.subr.bf16.mxu0 0
      %2177 = vmatpush1.bf16.msra.mxu0 0
      %2178 = vmatprep.subr.bf16.mxu0 0
      %2179 = vmatpush1.bf16.msra.mxu0 0
      %2180 = vmatprep.subr.bf16.mxu0 0
      %2181 = vmatpush1.bf16.msra.mxu0 0
      %2182 = vmatprep.subr.bf16.mxu0 0
      %2183 = vmatpush1.bf16.msra.mxu0 0
      %2184 = vmatprep.subr.bf16.mxu0 0
      %2185 = vmatpush1.bf16.msra.mxu0 0
      %2186 = vmatprep.mubr.bf16.mxu0 0
      %2187 = vmatmul.mubr.bf16.gmra.mrb[0].mxu0 %v2103
      %v2188 = vpop.f32.mrb[0].mxu0
      %v2189 = vadd.f32 0.0, %v2188
      %v2190 = vpop.f32.mrb[0].mxu0
      %v2191 = vpop.f32.mrb[0].mxu0
      %v2192 = vadd.f32 0.0, %v2191
      %v2193 = vpop.f32.mrb[0].mxu0
      %2194 = vmatprep.mubr.bf16.mxu0 0
      %2195 = vmatmul.mubr.bf16.gmra.mrb[0].mxu0 %v2106
      %v2196 = vpop.f32.mrb[0].mxu0
      %v2197 = vadd.f32 0.0, %v2196
      %v2198 = vpop.f32.mrb[0].mxu0
      %v2199 = vpop.f32.mrb[0].mxu0
      %v2200 = vadd.f32 0.0, %v2199
      %v2201 = vpop.f32.mrb[0].mxu0
      %2202 = vmatprep.mubr.bf16.mxu0 0
      %2203 = vmatmul.mubr.bf16.gmra.mrb[0].mxu0 %v2109
      %v2204 = vpop.f32.mrb[0].mxu0
      %v2205 = vadd.f32 0.0, %v2204
      %v2206 = vpop.f32.mrb[0].mxu0
      %v2207 = vpop.f32.mrb[0].mxu0
      %v2208 = vadd.f32 0.0, %v2207
      %v2209 = vpop.f32.mrb[0].mxu0
      %2210 = vmatprep.mubr.bf16.mxu0 0
      %2211 = vmatmul.mubr.bf16.gmra.mrb[0].mxu0 %v2112
      %v2212 = vpop.f32.mrb[0].mxu0
      %v2213 = vadd.f32 0.0, %v2212
      %v2214 = vpop.f32.mrb[0].mxu0
      %v2215 = vpop.f32.mrb[0].mxu0
      %v2216 = vadd.f32 0.0, %v2215
      %v2217 = vpop.f32.mrb[0].mxu0
      %2218 = vmatprep.mubr.bf16.mxu0 0
      %2219 = vmatmul.mubr.bf16.gmra.mrb[0].mxu0 %v2115
      %v2220 = vpop.f32.mrb[0].mxu0
      %v2221 = vadd.f32 0.0, %v2220
      %v2222 = vpop.f32.mrb[0].mxu0
      %v2223 = vpop.f32.mrb[0].mxu0
      %v2224 = vadd.f32 0.0, %v2223
      %v2225 = vpop.f32.mrb[0].mxu0
      %2226 = vmatprep.mubr.bf16.mxu0 0
      %2227 = vmatmul.mubr.bf16.gmra.mrb[0].mxu0 %v2118
      %v2228 = vpop.f32.mrb[0].mxu0
      %v2229 = vadd.f32 0.0, %v2228
      %v2230 = vpop.f32.mrb[0].mxu0
      %v2231 = vpop.f32.mrb[0].mxu0
      %v2232 = vadd.f32 0.0, %v2231
      %v2233 = vpop.f32.mrb[0].mxu0
      %2234 = vmatprep.mubr.bf16.mxu0 0
      %2235 = vmatmul.mubr.bf16.gmra.mrb[0].mxu0 %v2121
      %v2236 = vpop.f32.mrb[0].mxu0
      %v2237 = vadd.f32 0.0, %v2236
      %v2238 = vpop.f32.mrb[0].mxu0
      %v2239 = vpop.f32.mrb[0].mxu0
      %v2240 = vadd.f32 0.0, %v2239
      %v2241 = vpop.f32.mrb[0].mxu0
      %2242 = vmatprep.mubr.bf16.mxu0 0
      %2243 = vmatmul.mubr.bf16.gmra.mrb[0].mxu0 %v2124
      %v2244 = vpop.f32.mrb[0].mxu0
      %v2245 = vadd.f32 0.0, %v2244
      %v2246 = vpop.f32.mrb[0].mxu0
      %v2247 = vpop.f32.mrb[0].mxu0
      %v2248 = vadd.f32 0.0, %v2247
      %v2249 = vpop.f32.mrb[0].mxu0
      %2250 = vmatprep.mubr.bf16.mxu0 0
      %2251 = vmatmul.mubr.bf16.gmra.mrb[0].mxu0 %v2127
      %v2252 = vpop.f32.mrb[0].mxu0
      %v2253 = vadd.f32 0.0, %v2252
      %v2254 = vpop.f32.mrb[0].mxu0
      %v2255 = vpop.f32.mrb[0].mxu0
      %v2256 = vadd.f32 0.0, %v2255
      %v2257 = vpop.f32.mrb[0].mxu0
      %2258 = vmatprep.mubr.bf16.mxu0 0
      %2259 = vmatmul.mubr.bf16.gmra.mrb[0].mxu0 %v2130
      %v2260 = vpop.f32.mrb[0].mxu0
      %v2261 = vadd.f32 0.0, %v2260
      %v2262 = vpop.f32.mrb[0].mxu0
      %v2263 = vpop.f32.mrb[0].mxu0
      %v2264 = vadd.f32 0.0, %v2263
      %v2265 = vpop.f32.mrb[0].mxu0
      %2266 = vmatprep.mubr.bf16.mxu0 0
      %2267 = vmatmul.mubr.bf16.gmra.mrb[0].mxu0 %v2133
      %v2268 = vpop.f32.mrb[0].mxu0
      %v2269 = vadd.f32 0.0, %v2268
      %v2270 = vpop.f32.mrb[0].mxu0
      %v2271 = vpop.f32.mrb[0].mxu0
      %v2272 = vadd.f32 0.0, %v2271
      %v2273 = vpop.f32.mrb[0].mxu0
      %2274 = vmatprep.mubr.bf16.mxu0 0
      %2275 = vmatmul.mubr.bf16.gmra.mrb[0].mxu0 %v2136
      %v2276 = vpop.f32.mrb[0].mxu0
      %v2277 = vadd.f32 0.0, %v2276
      %v2278 = vpop.f32.mrb[0].mxu0
      %v2279 = vpop.f32.mrb[0].mxu0
      %v2280 = vadd.f32 0.0, %v2279
      %v2281 = vpop.f32.mrb[0].mxu0
      %2282 = vmatprep.mubr.bf16.mxu0 0
      %2283 = vmatmul.mubr.bf16.gmra.mrb[0].mxu0 %v2139
      %v2284 = vpop.f32.mrb[0].mxu0
      %v2285 = vadd.f32 0.0, %v2284
      %v2286 = vpop.f32.mrb[0].mxu0
      %v2287 = vpop.f32.mrb[0].mxu0
      %v2288 = vadd.f32 0.0, %v2287
      %v2289 = vpop.f32.mrb[0].mxu0
      %2290 = vmatprep.mubr.bf16.mxu0 0
      %2291 = vmatmul.mubr.bf16.gmra.mrb[0].mxu0 %v2142
      %v2292 = vpop.f32.mrb[0].mxu0
      %v2293 = vadd.f32 0.0, %v2292
      %v2294 = vpop.f32.mrb[0].mxu0
      %v2295 = vpop.f32.mrb[0].mxu0
      %v2296 = vadd.f32 0.0, %v2295
      %v2297 = vpop.f32.mrb[0].mxu0
      %2298 = vmatprep.mubr.bf16.mxu0 0
      %2299 = vmatmul.mubr.bf16.gmra.mrb[0].mxu0 %v2145
      %v2300 = vpop.f32.mrb[0].mxu0
      %v2301 = vadd.f32 0.0, %v2300
      %v2302 = vpop.f32.mrb[0].mxu0
      %v2303 = vpop.f32.mrb[0].mxu0
      %v2304 = vadd.f32 0.0, %v2303
      %v2305 = vpop.f32.mrb[0].mxu0
      %2306 = vmatprep.mubr.bf16.mxu0 0
      %2307 = vmatmul.mubr.bf16.gmra.mrb[0].mxu0 %v2148
      %v2308 = vpop.f32.mrb[0].mxu0
      %v2309 = vadd.f32 0.0, %v2308
      %v2310 = vpop.f32.mrb[0].mxu0
      %v2311 = vpop.f32.mrb[0].mxu0
      %v2312 = vadd.f32 0.0, %v2311
      %v2313 = vpop.f32.mrb[0].mxu0
      %2314 = vdwg.mxu0
      %v2315 = vld [vmem:[%s2] sm:$0x1]
      %v2317 = vlaneseq
      %v2318 = vshrl.u32 %v2317, 7
      %v2319 = vsub.s32 0, %v2318
      %v2320 = vrot.slane %v2315, %v2319
      %v2322 = vmul.f32 %v2189, %v2320
      %v2323 = vmul.f32 %v2192, %v2320
      %v2324 = vmul.f32 %v2197, %v2320
      %v2325 = vmul.f32 %v2200, %v2320
      %v2326 = vmul.f32 %v2205, %v2320
      %v2327 = vmul.f32 %v2208, %v2320
      %v2328 = vmul.f32 %v2213, %v2320
      %v2329 = vmul.f32 %v2216, %v2320
      %v2330 = vmul.f32 %v2221, %v2320
      %v2331 = vmul.f32 %v2224, %v2320
      %v2332 = vmul.f32 %v2229, %v2320
      %v2333 = vmul.f32 %v2232, %v2320
      %v2334 = vmul.f32 %v2237, %v2320
      %v2335 = vmul.f32 %v2240, %v2320
      %v2336 = vmul.f32 %v2245, %v2320
      %v2337 = vmul.f32 %v2248, %v2320
      %v2338 = vmul.f32 %v2253, %v2320
      %v2339 = vmul.f32 %v2256, %v2320
      %v2340 = vmul.f32 %v2261, %v2320
      %v2341 = vmul.f32 %v2264, %v2320
      %v2342 = vmul.f32 %v2269, %v2320
      %v2343 = vmul.f32 %v2272, %v2320
      %v2344 = vmul.f32 %v2277, %v2320
      %v2345 = vmul.f32 %v2280, %v2320
      %v2346 = vmul.f32 %v2285, %v2320
      %v2347 = vmul.f32 %v2288, %v2320
      %v2348 = vmul.f32 %v2293, %v2320
      %v2349 = vmul.f32 %v2296, %v2320
      %v2350 = vmul.f32 %v2301, %v2320
      %v2351 = vmul.f32 %v2304, %v2320
      %v2352 = vmul.f32 %v2309, %v2320
      %v2353 = vmul.f32 %v2312, %v2320
      %v2354 = vld [vmem:[%s3] sm:$0x1]
      %v2356 = vlaneseq
      %v2357 = vshrl.u32 %v2356, 7
      %v2358 = vsub.s32 0, %v2357
      %v2359 = vrot.slane %v2354, %v2358
      %v2361 = vadd.f32 %v2322, %v2359
      %v2362 = vadd.f32 %v2323, %v2359
      %v2363 = vadd.f32 %v2324, %v2359
      %v2364 = vadd.f32 %v2325, %v2359
      %v2365 = vadd.f32 %v2326, %v2359
      %v2366 = vadd.f32 %v2327, %v2359
      %v2367 = vadd.f32 %v2328, %v2359
      %v2368 = vadd.f32 %v2329, %v2359
      %v2369 = vadd.f32 %v2330, %v2359
      %v2370 = vadd.f32 %v2331, %v2359
      %v2371 = vadd.f32 %v2332, %v2359
      %v2372 = vadd.f32 %v2333, %v2359
      %v2373 = vadd.f32 %v2334, %v2359
      %v2374 = vadd.f32 %v2335, %v2359
      %v2375 = vadd.f32 %v2336, %v2359
      %v2376 = vadd.f32 %v2337, %v2359
      %v2377 = vadd.f32 %v2338, %v2359
      %v2378 = vadd.f32 %v2339, %v2359
      %v2379 = vadd.f32 %v2340, %v2359
      %v2380 = vadd.f32 %v2341, %v2359
      %v2381 = vadd.f32 %v2342, %v2359
      %v2382 = vadd.f32 %v2343, %v2359
      %v2383 = vadd.f32 %v2344, %v2359
      %v2384 = vadd.f32 %v2345, %v2359
      %v2385 = vadd.f32 %v2346, %v2359
      %v2386 = vadd.f32 %v2347, %v2359
      %v2387 = vadd.f32 %v2348, %v2359
      %v2388 = vadd.f32 %v2349, %v2359
      %v2389 = vadd.f32 %v2350, %v2359
      %v2390 = vadd.f32 %v2351, %v2359
      %v2391 = vadd.f32 %v2352, %v2359
      %v2392 = vadd.f32 %v2353, %v2359
      %v2393 = vmax.f32 %v2361, 0.0
      %v2394 = vmax.f32 %v2362, 0.0
      %v2395 = vmax.f32 %v2363, 0.0
      %v2396 = vmax.f32 %v2364, 0.0
      %v2397 = vmax.f32 %v2365, 0.0
      %v2398 = vmax.f32 %v2366, 0.0
      %v2399 = vmax.f32 %v2367, 0.0
      %v2400 = vmax.f32 %v2368, 0.0
      %v2401 = vmax.f32 %v2369, 0.0
      %v2402 = vmax.f32 %v2370, 0.0
      %v2403 = vmax.f32 %v2371, 0.0
      %v2404 = vmax.f32 %v2372, 0.0
      %v2405 = vmax.f32 %v2373, 0.0
      %v2406 = vmax.f32 %v2374, 0.0
      %v2407 = vmax.f32 %v2375, 0.0
      %v2408 = vmax.f32 %v2376, 0.0
      %v2409 = vmax.f32 %v2377, 0.0
      %v2410 = vmax.f32 %v2378, 0.0
      %v2411 = vmax.f32 %v2379, 0.0
      %v2412 = vmax.f32 %v2380, 0.0
      %v2413 = vmax.f32 %v2381, 0.0
      %v2414 = vmax.f32 %v2382, 0.0
      %v2415 = vmax.f32 %v2383, 0.0
      %v2416 = vmax.f32 %v2384, 0.0
      %v2417 = vmax.f32 %v2385, 0.0
      %v2418 = vmax.f32 %v2386, 0.0
      %v2419 = vmax.f32 %v2387, 0.0
      %v2420 = vmax.f32 %v2388, 0.0
      %v2421 = vmax.f32 %v2389, 0.0
      %v2422 = vmax.f32 %v2390, 0.0
      %v2423 = vmax.f32 %v2391, 0.0
      %v2424 = vmax.f32 %v2392, 0.0
      %2425 = vst.msk [vmem:[%s312 + $0x1] sm:$0xff] %vm313, %v2393
      %2426 = vst.msk [vmem:[%s312 + $0x9] sm:$0xff] %vm313, %v2394
      %2427 = vst.msk [vmem:[%s312 + $0x19] sm:$0xff] %vm313, %v2395
      %2428 = vst.msk [vmem:[%s312 + $0x21] sm:$0xff] %vm313, %v2396
      %2429 = vst.msk [vmem:[%s312 + $0x31] sm:$0xff] %vm313, %v2397
      %2430 = vst.msk [vmem:[%s312 + $0x39] sm:$0xff] %vm313, %v2398
      %2431 = vst.msk [vmem:[%s312 + $0x49] sm:$0xff] %vm313, %v2399
      %2432 = vst.msk [vmem:[%s312 + $0x51] sm:$0xff] %vm313, %v2400
      %2433 = vst.msk [vmem:[%s312 + $0x61] sm:$0xff] %vm313, %v2401
      %2434 = vst.msk [vmem:[%s312 + $0x69] sm:$0xff] %vm313, %v2402
      %2435 = vst.msk [vmem:[%s312 + $0x79] sm:$0xff] %vm313, %v2403
      %2436 = vst.msk [vmem:[%s312 + $0x81] sm:$0xff] %vm313, %v2404
      %2437 = vst.msk [vmem:[%s312 + $0x91] sm:$0xff] %vm313, %v2405
      %2438 = vst.msk [vmem:[%s312 + $0x99] sm:$0xff] %vm313, %v2406
      %2439 = vst.msk [vmem:[%s312 + $0xa9] sm:$0xff] %vm313, %v2407
      %2440 = vst.msk [vmem:[%s312 + $0xb1] sm:$0xff] %vm313, %v2408
      %2441 = vst.msk [vmem:[%s312 + $0xc1] sm:$0xff] %vm313, %v2409
      %2442 = vst.msk [vmem:[%s312 + $0xc9] sm:$0xff] %vm313, %v2410
      %2443 = vst.msk [vmem:[%s312 + $0xd9] sm:$0xff] %vm313, %v2411
      %2444 = vst.msk [vmem:[%s312 + $0xe1] sm:$0xff] %vm313, %v2412
      %2445 = vst.msk [vmem:[%s312 + $0xf1] sm:$0xff] %vm313, %v2413
      %2446 = vst.msk [vmem:[%s312 + $0xf9] sm:$0xff] %vm313, %v2414
      %2447 = vst.msk [vmem:[%s312 + $0x109] sm:$0xff] %vm313, %v2415
      %2448 = vst.msk [vmem:[%s312 + $0x111] sm:$0xff] %vm313, %v2416
      %2449 = vst.msk [vmem:[%s312 + $0x121] sm:$0xff] %vm313, %v2417
      %2450 = vst.msk [vmem:[%s312 + $0x129] sm:$0xff] %vm313, %v2418
      %2451 = vst.msk [vmem:[%s312 + $0x139] sm:$0xff] %vm313, %v2419
      %2452 = vst.msk [vmem:[%s312 + $0x141] sm:$0xff] %vm313, %v2420
      %2453 = vst.msk [vmem:[%s312 + $0x151] sm:$0xff] %vm313, %v2421
      %2454 = vst.msk [vmem:[%s312 + $0x159] sm:$0xff] %vm313, %v2422
      %2455 = vst.msk [vmem:[%s312 + $0x169] sm:$0xff] %vm313, %v2423
      %2456 = vst.msk [vmem:[%s312 + $0x171] sm:$0xff] %vm313, %v2424
      %2457 = vst.msk [vmem:[#allocation2 + $0x1] sm:$0xff] %vm313, %v2395
      %2458 = vst.msk [vmem:[#allocation2 + $0x9] sm:$0xff] %vm313, %v2396
      %2459 = vst.msk [vmem:[%s348 + $0x1] sm:$0xff] %vm313, %v2421
      %2460 = vst.msk [vmem:[%s348 + $0x9] sm:$0xff] %vm313, %v2422
      %v2461 = vld [vmem:[#allocation2 + $0x2] sm:$0x1]
      %v2462 = vld [vmem:[#allocation2 + $0x1a] sm:$0x1]
      %v2463 = vld [vmem:[#allocation2 + $0x32] sm:$0x1]
      %v2464 = vld [vmem:[#allocation2 + $0x4a] sm:$0x1]
      %v2465 = vld [vmem:[#allocation2 + $0x62] sm:$0x1]
      %v2466 = vld [vmem:[#allocation2 + $0x7a] sm:$0x1]
      %v2467 = vld [vmem:[#allocation2 + $0x92] sm:$0x1]
      %v2468 = vld [vmem:[#allocation2 + $0xaa] sm:$0x1]
      %v2469 = vld [vmem:[#allocation2 + $0xc2] sm:$0x1]
      %v2470 = vld [vmem:[#allocation2 + $0xda] sm:$0x1]
      %v2471 = vld [vmem:[#allocation2 + $0xf2] sm:$0x1]
      %v2472 = vld [vmem:[#allocation2 + $0x10a] sm:$0x1]
      %v2473 = vld [vmem:[#allocation2 + $0x122] sm:$0x1]
      %v2474 = vld [vmem:[#allocation2 + $0x13a] sm:$0x1]
      %v2475 = vld [vmem:[#allocation2 + $0x152] sm:$0x1]
      %v2476 = vld [vmem:[#allocation2 + $0x16a] sm:$0x1]
      %v2477 = vld [vmem:[#allocation2 + $0x182] sm:$0x1]
      %v2478 = vld [vmem:[#allocation2 + $0x19a] sm:$0x1]
      %2479 = vst.msk [vmem:[#allocation2] sm:$0x1] %vm369, %v2461
      %2480 = vst.msk [vmem:[#allocation2 + $0x18] sm:$0x1] %vm369, %v2462
      %2481 = vst.msk [vmem:[#allocation2 + $0x30] sm:$0x1] %vm369, %v2463
      %2482 = vst.msk [vmem:[#allocation2 + $0x48] sm:$0x1] %vm369, %v2464
      %2483 = vst.msk [vmem:[#allocation2 + $0x60] sm:$0x1] %vm369, %v2465
      %2484 = vst.msk [vmem:[#allocation2 + $0x78] sm:$0x1] %vm369, %v2466
      %2485 = vst.msk [vmem:[#allocation2 + $0x90] sm:$0x1] %vm369, %v2467
      %2486 = vst.msk [vmem:[#allocation2 + $0xa8] sm:$0x1] %vm369, %v2468
      %2487 = vst.msk [vmem:[#allocation2 + $0xc0] sm:$0x1] %vm369, %v2469
      %2488 = vst.msk [vmem:[#allocation2 + $0xd8] sm:$0x1] %vm369, %v2470
      %2489 = vst.msk [vmem:[#allocation2 + $0xf0] sm:$0x1] %vm369, %v2471
      %2490 = vst.msk [vmem:[#allocation2 + $0x108] sm:$0x1] %vm369, %v2472
      %2491 = vst.msk [vmem:[#allocation2 + $0x120] sm:$0x1] %vm369, %v2473
      %2492 = vst.msk [vmem:[#allocation2 + $0x138] sm:$0x1] %vm369, %v2474
      %2493 = vst.msk [vmem:[#allocation2 + $0x150] sm:$0x1] %vm369, %v2475
      %2494 = vst.msk [vmem:[#allocation2 + $0x168] sm:$0x1] %vm369, %v2476
      %2495 = vst.msk [vmem:[#allocation2 + $0x180] sm:$0x1] %vm369, %v2477
      %2496 = vst.msk [vmem:[#allocation2 + $0x198] sm:$0x1] %vm369, %v2478
      %v2497 = vld [vmem:[#allocation2 + $0xf] sm:$0x1]
      %v2498 = vld [vmem:[#allocation2 + $0x27] sm:$0x1]
      %v2499 = vld [vmem:[#allocation2 + $0x3f] sm:$0x1]
      %v2500 = vld [vmem:[#allocation2 + $0x57] sm:$0x1]
      %v2501 = vld [vmem:[#allocation2 + $0x6f] sm:$0x1]
      %v2502 = vld [vmem:[#allocation2 + $0x87] sm:$0x1]
      %v2503 = vld [vmem:[#allocation2 + $0x9f] sm:$0x1]
      %v2504 = vld [vmem:[#allocation2 + $0xb7] sm:$0x1]
      %v2505 = vld [vmem:[#allocation2 + $0xcf] sm:$0x1]
      %v2506 = vld [vmem:[#allocation2 + $0xe7] sm:$0x1]
      %v2507 = vld [vmem:[#allocation2 + $0xff] sm:$0x1]
      %v2508 = vld [vmem:[#allocation2 + $0x117] sm:$0x1]
      %v2509 = vld [vmem:[#allocation2 + $0x12f] sm:$0x1]
      %v2510 = vld [vmem:[#allocation2 + $0x147] sm:$0x1]
      %v2511 = vld [vmem:[#allocation2 + $0x15f] sm:$0x1]
      %v2512 = vld [vmem:[#allocation2 + $0x177] sm:$0x1]
      %v2513 = vld [vmem:[#allocation2 + $0x18f] sm:$0x1]
      %v2514 = vld [vmem:[#allocation2 + $0x1a7] sm:$0x1]
      %2515 = vst.msk [vmem:[#allocation2 + $0x11] sm:$0x1] %vm369, %v2497
      %2516 = vst.msk [vmem:[#allocation2 + $0x29] sm:$0x1] %vm369, %v2498
      %2517 = vst.msk [vmem:[#allocation2 + $0x41] sm:$0x1] %vm369, %v2499
      %2518 = vst.msk [vmem:[#allocation2 + $0x59] sm:$0x1] %vm369, %v2500
      %2519 = vst.msk [vmem:[#allocation2 + $0x71] sm:$0x1] %vm369, %v2501
      %2520 = vst.msk [vmem:[#allocation2 + $0x89] sm:$0x1] %vm369, %v2502
      %2521 = vst.msk [vmem:[#allocation2 + $0xa1] sm:$0x1] %vm369, %v2503
      %2522 = vst.msk [vmem:[#allocation2 + $0xb9] sm:$0x1] %vm369, %v2504
      %2523 = vst.msk [vmem:[#allocation2 + $0xd1] sm:$0x1] %vm369, %v2505
      %2524 = vst.msk [vmem:[#allocation2 + $0xe9] sm:$0x1] %vm369, %v2506
      %2525 = vst.msk [vmem:[#allocation2 + $0x101] sm:$0x1] %vm369, %v2507
      %2526 = vst.msk [vmem:[#allocation2 + $0x119] sm:$0x1] %vm369, %v2508
      %2527 = vst.msk [vmem:[#allocation2 + $0x131] sm:$0x1] %vm369, %v2509
      %2528 = vst.msk [vmem:[#allocation2 + $0x149] sm:$0x1] %vm369, %v2510
      %2529 = vst.msk [vmem:[#allocation2 + $0x161] sm:$0x1] %vm369, %v2511
      %2530 = vst.msk [vmem:[#allocation2 + $0x179] sm:$0x1] %vm369, %v2512
      %2531 = vst.msk [vmem:[#allocation2 + $0x191] sm:$0x1] %vm369, %v2513
      %2532 = vst.msk [vmem:[#allocation2 + $0x1a9] sm:$0x1] %vm369, %v2514
      %v2533 = vld [vmem:[#allocation2] sm:$0xff]
      %v2534 = vld [vmem:[#allocation2 + $0x8] sm:$0xff]
      %v2535 = vld [vmem:[#allocation2 + $0x18] sm:$0xff]
      %v2536 = vld [vmem:[#allocation2 + $0x20] sm:$0xff]
      %v2537 = vld [vmem:[#allocation2 + $0x30] sm:$0xff]
      %v2538 = vld [vmem:[#allocation2 + $0x38] sm:$0xff]
      %v2539 = vld [vmem:[#allocation2 + $0x48] sm:$0xff]
      %v2540 = vld [vmem:[#allocation2 + $0x50] sm:$0xff]
      %v2541 = vld [vmem:[#allocation2 + $0x60] sm:$0xff]
      %v2542 = vld [vmem:[#allocation2 + $0x68] sm:$0xff]
      %v2543 = vld [vmem:[#allocation2 + $0x78] sm:$0xff]
      %v2544 = vld [vmem:[#allocation2 + $0x80] sm:$0xff]
      %v2545 = vld [vmem:[#allocation2 + $0x90] sm:$0xff]
      %v2546 = vld [vmem:[#allocation2 + $0x98] sm:$0xff]
      %v2547 = vld [vmem:[#allocation2 + $0xa8] sm:$0xff]
      %v2548 = vld [vmem:[#allocation2 + $0xb0] sm:$0xff]
      %v2549 = vld [vmem:[#allocation2 + $0xc0] sm:$0xff]
      %v2550 = vld [vmem:[#allocation2 + $0xc8] sm:$0xff]
      %v2551 = vld [vmem:[#allocation2 + $0xd8] sm:$0xff]
      %v2552 = vld [vmem:[#allocation2 + $0xe0] sm:$0xff]
      %v2553 = vld [vmem:[#allocation2 + $0xf0] sm:$0xff]
      %v2554 = vld [vmem:[#allocation2 + $0xf8] sm:$0xff]
      %v2555 = vld [vmem:[#allocation2 + $0x108] sm:$0xff]
      %v2556 = vld [vmem:[#allocation2 + $0x110] sm:$0xff]
      %v2557 = vld [vmem:[#allocation2 + $0x120] sm:$0xff]
      %v2558 = vld [vmem:[#allocation2 + $0x128] sm:$0xff]
      %v2559 = vld [vmem:[#allocation2 + $0x138] sm:$0xff]
      %v2560 = vld [vmem:[#allocation2 + $0x140] sm:$0xff]
      %v2561 = vld [vmem:[#allocation2 + $0x150] sm:$0xff]
      %v2562 = vld [vmem:[#allocation2 + $0x158] sm:$0xff]
      %v2563 = vld [vmem:[#allocation2 + $0x168] sm:$0xff]
      %v2564 = vld [vmem:[#allocation2 + $0x170] sm:$0xff]
      %2565 = vst.msk [vmem:[#allocation3] sm:$0xff] %vm313, %v2533
      %2566 = vst.msk [vmem:[#allocation3 + $0x8] sm:$0xff] %vm313, %v2534
      %2567 = vst.msk [vmem:[#allocation3 + $0x10] sm:$0xff] %vm313, %v2535
      %2568 = vst.msk [vmem:[#allocation3 + $0x18] sm:$0xff] %vm313, %v2536
      %2569 = vst.msk [vmem:[#allocation3 + $0x20] sm:$0xff] %vm313, %v2537
      %2570 = vst.msk [vmem:[#allocation3 + $0x28] sm:$0xff] %vm313, %v2538
      %2571 = vst.msk [vmem:[#allocation3 + $0x30] sm:$0xff] %vm313, %v2539
      %2572 = vst.msk [vmem:[#allocation3 + $0x38] sm:$0xff] %vm313, %v2540
      %2573 = vst.msk [vmem:[#allocation3 + $0x40] sm:$0xff] %vm313, %v2541
      %2574 = vst.msk [vmem:[#allocation3 + $0x48] sm:$0xff] %vm313, %v2542
      %2575 = vst.msk [vmem:[#allocation3 + $0x50] sm:$0xff] %vm313, %v2543
      %2576 = vst.msk [vmem:[#allocation3 + $0x58] sm:$0xff] %vm313, %v2544
      %2577 = vst.msk [vmem:[#allocation3 + $0x60] sm:$0xff] %vm313, %v2545
      %2578 = vst.msk [vmem:[#allocation3 + $0x68] sm:$0xff] %vm313, %v2546
      %2579 = vst.msk [vmem:[#allocation3 + $0x70] sm:$0xff] %vm313, %v2547
      %2580 = vst.msk [vmem:[#allocation3 + $0x78] sm:$0xff] %vm313, %v2548
      %2581 = vst.msk [vmem:[#allocation3 + $0x80] sm:$0xff] %vm313, %v2549
      %2582 = vst.msk [vmem:[#allocation3 + $0x88] sm:$0xff] %vm313, %v2550
      %2583 = vst.msk [vmem:[#allocation3 + $0x90] sm:$0xff] %vm313, %v2551
      %2584 = vst.msk [vmem:[#allocation3 + $0x98] sm:$0xff] %vm313, %v2552
      %2585 = vst.msk [vmem:[#allocation3 + $0xa0] sm:$0xff] %vm313, %v2553
      %2586 = vst.msk [vmem:[#allocation3 + $0xa8] sm:$0xff] %vm313, %v2554
      %2587 = vst.msk [vmem:[#allocation3 + $0xb0] sm:$0xff] %vm313, %v2555
      %2588 = vst.msk [vmem:[#allocation3 + $0xb8] sm:$0xff] %vm313, %v2556
      %2589 = vst.msk [vmem:[#allocation3 + $0xc0] sm:$0xff] %vm313, %v2557
      %2590 = vst.msk [vmem:[#allocation3 + $0xc8] sm:$0xff] %vm313, %v2558
      %2591 = vst.msk [vmem:[#allocation3 + $0xd0] sm:$0xff] %vm313, %v2559
      %2592 = vst.msk [vmem:[#allocation3 + $0xd8] sm:$0xff] %vm313, %v2560
      %2593 = vst.msk [vmem:[#allocation3 + $0xe0] sm:$0xff] %vm313, %v2561
      %2594 = vst.msk [vmem:[#allocation3 + $0xe8] sm:$0xff] %vm313, %v2562
      %2595 = vst.msk [vmem:[#allocation3 + $0xf0] sm:$0xff] %vm313, %v2563
      %2596 = vst.msk [vmem:[#allocation3 + $0xf8] sm:$0xff] %vm313, %v2564
      %v2597 = vld [vmem:[#allocation2 + $0x1] sm:$0xff]
      %v2598 = vld [vmem:[#allocation2 + $0x9] sm:$0xff]
      %v2599 = vld [vmem:[#allocation2 + $0x19] sm:$0xff]
      %v2600 = vld [vmem:[#allocation2 + $0x21] sm:$0xff]
      %v2601 = vld [vmem:[#allocation2 + $0x31] sm:$0xff]
      %v2602 = vld [vmem:[#allocation2 + $0x39] sm:$0xff]
      %v2603 = vld [vmem:[#allocation2 + $0x49] sm:$0xff]
      %v2604 = vld [vmem:[#allocation2 + $0x51] sm:$0xff]
      %v2605 = vld [vmem:[#allocation2 + $0x61] sm:$0xff]
      %v2606 = vld [vmem:[#allocation2 + $0x69] sm:$0xff]
      %v2607 = vld [vmem:[#allocation2 + $0x79] sm:$0xff]
      %v2608 = vld [vmem:[#allocation2 + $0x81] sm:$0xff]
      %v2609 = vld [vmem:[#allocation2 + $0x91] sm:$0xff]
      %v2610 = vld [vmem:[#allocation2 + $0x99] sm:$0xff]
      %v2611 = vld [vmem:[#allocation2 + $0xa9] sm:$0xff]
      %v2612 = vld [vmem:[#allocation2 + $0xb1] sm:$0xff]
      %v2613 = vld [vmem:[#allocation2 + $0xc1] sm:$0xff]
      %v2614 = vld [vmem:[#allocation2 + $0xc9] sm:$0xff]
      %v2615 = vld [vmem:[#allocation2 + $0xd9] sm:$0xff]
      %v2616 = vld [vmem:[#allocation2 + $0xe1] sm:$0xff]
      %v2617 = vld [vmem:[#allocation2 + $0xf1] sm:$0xff]
      %v2618 = vld [vmem:[#allocation2 + $0xf9] sm:$0xff]
      %v2619 = vld [vmem:[#allocation2 + $0x109] sm:$0xff]
      %v2620 = vld [vmem:[#allocation2 + $0x111] sm:$0xff]
      %v2621 = vld [vmem:[#allocation2 + $0x121] sm:$0xff]
      %v2622 = vld [vmem:[#allocation2 + $0x129] sm:$0xff]
      %v2623 = vld [vmem:[#allocation2 + $0x139] sm:$0xff]
      %v2624 = vld [vmem:[#allocation2 + $0x141] sm:$0xff]
      %v2625 = vld [vmem:[#allocation2 + $0x151] sm:$0xff]
      %v2626 = vld [vmem:[#allocation2 + $0x159] sm:$0xff]
      %v2627 = vld [vmem:[#allocation2 + $0x169] sm:$0xff]
      %v2628 = vld [vmem:[#allocation2 + $0x171] sm:$0xff]
      %2661 = vrot.lane.b32.xlu0 %v2597, 4
      %v2662 = vpop.permute.xlu0 %2661
      %2663 = vrot.lane.b32.xlu0 %v2598, 4
      %v2664 = vpop.permute.xlu0 %2663
      %2665 = vrot.lane.b32.xlu0 %v2599, 4
      %v2666 = vpop.permute.xlu0 %2665
      %2667 = vrot.lane.b32.xlu0 %v2600, 4
      %v2668 = vpop.permute.xlu0 %2667
      %2669 = vrot.lane.b32.xlu0 %v2601, 4
      %v2670 = vpop.permute.xlu0 %2669
      %2671 = vrot.lane.b32.xlu0 %v2602, 4
      %v2672 = vpop.permute.xlu0 %2671
      %2673 = vrot.lane.b32.xlu0 %v2603, 4
      %v2674 = vpop.permute.xlu0 %2673
      %2675 = vrot.lane.b32.xlu0 %v2604, 4
      %v2676 = vpop.permute.xlu0 %2675
      %2677 = vrot.lane.b32.xlu0 %v2605, 4
      %v2678 = vpop.permute.xlu0 %2677
      %2679 = vrot.lane.b32.xlu0 %v2606, 4
      %v2680 = vpop.permute.xlu0 %2679
      %2681 = vrot.lane.b32.xlu0 %v2607, 4
      %v2682 = vpop.permute.xlu0 %2681
      %2683 = vrot.lane.b32.xlu0 %v2608, 4
      %v2684 = vpop.permute.xlu0 %2683
      %2685 = vrot.lane.b32.xlu0 %v2609, 4
      %v2686 = vpop.permute.xlu0 %2685
      %2687 = vrot.lane.b32.xlu0 %v2610, 4
      %v2688 = vpop.permute.xlu0 %2687
      %2689 = vrot.lane.b32.xlu0 %v2611, 4
      %v2690 = vpop.permute.xlu0 %2689
      %2691 = vrot.lane.b32.xlu0 %v2612, 4
      %v2692 = vpop.permute.xlu0 %2691
      %2693 = vrot.lane.b32.xlu0 %v2613, 4
      %v2694 = vpop.permute.xlu0 %2693
      %2695 = vrot.lane.b32.xlu0 %v2614, 4
      %v2696 = vpop.permute.xlu0 %2695
      %2697 = vrot.lane.b32.xlu0 %v2615, 4
      %v2698 = vpop.permute.xlu0 %2697
      %2699 = vrot.lane.b32.xlu0 %v2616, 4
      %v2700 = vpop.permute.xlu0 %2699
      %2701 = vrot.lane.b32.xlu0 %v2617, 4
      %v2702 = vpop.permute.xlu0 %2701
      %2703 = vrot.lane.b32.xlu0 %v2618, 4
      %v2704 = vpop.permute.xlu0 %2703
      %2705 = vrot.lane.b32.xlu0 %v2619, 4
      %v2706 = vpop.permute.xlu0 %2705
      %2707 = vrot.lane.b32.xlu0 %v2620, 4
      %v2708 = vpop.permute.xlu0 %2707
      %2709 = vrot.lane.b32.xlu0 %v2621, 4
      %v2710 = vpop.permute.xlu0 %2709
      %2711 = vrot.lane.b32.xlu0 %v2622, 4
      %v2712 = vpop.permute.xlu0 %2711
      %2713 = vrot.lane.b32.xlu0 %v2623, 4
      %v2714 = vpop.permute.xlu0 %2713
      %2715 = vrot.lane.b32.xlu0 %v2624, 4
      %v2716 = vpop.permute.xlu0 %2715
      %2717 = vrot.lane.b32.xlu0 %v2625, 4
      %v2718 = vpop.permute.xlu0 %2717
      %2719 = vrot.lane.b32.xlu0 %v2626, 4
      %v2720 = vpop.permute.xlu0 %2719
      %2721 = vrot.lane.b32.xlu0 %v2627, 4
      %v2722 = vpop.permute.xlu0 %2721
      %2723 = vrot.lane.b32.xlu0 %v2628, 4
      %v2724 = vpop.permute.xlu0 %2723
      %2757 = vst.msk [vmem:[#allocation3] sm:$0xff] %vm648, %v2662
      %2758 = vst.msk [vmem:[#allocation3 + $0x8] sm:$0xff] %vm648, %v2664
      %2759 = vst.msk [vmem:[#allocation3 + $0x10] sm:$0xff] %vm648, %v2666
      %2760 = vst.msk [vmem:[#allocation3 + $0x18] sm:$0xff] %vm648, %v2668
      %2761 = vst.msk [vmem:[#allocation3 + $0x20] sm:$0xff] %vm648, %v2670
      %2762 = vst.msk [vmem:[#allocation3 + $0x28] sm:$0xff] %vm648, %v2672
      %2763 = vst.msk [vmem:[#allocation3 + $0x30] sm:$0xff] %vm648, %v2674
      %2764 = vst.msk [vmem:[#allocation3 + $0x38] sm:$0xff] %vm648, %v2676
      %2765 = vst.msk [vmem:[#allocation3 + $0x40] sm:$0xff] %vm648, %v2678
      %2766 = vst.msk [vmem:[#allocation3 + $0x48] sm:$0xff] %vm648, %v2680
      %2767 = vst.msk [vmem:[#allocation3 + $0x50] sm:$0xff] %vm648, %v2682
      %2768 = vst.msk [vmem:[#allocation3 + $0x58] sm:$0xff] %vm648, %v2684
      %2769 = vst.msk [vmem:[#allocation3 + $0x60] sm:$0xff] %vm648, %v2686
      %2770 = vst.msk [vmem:[#allocation3 + $0x68] sm:$0xff] %vm648, %v2688
      %2771 = vst.msk [vmem:[#allocation3 + $0x70] sm:$0xff] %vm648, %v2690
      %2772 = vst.msk [vmem:[#allocation3 + $0x78] sm:$0xff] %vm648, %v2692
      %2773 = vst.msk [vmem:[#allocation3 + $0x80] sm:$0xff] %vm648, %v2694
      %2774 = vst.msk [vmem:[#allocation3 + $0x88] sm:$0xff] %vm648, %v2696
      %2775 = vst.msk [vmem:[#allocation3 + $0x90] sm:$0xff] %vm648, %v2698
      %2776 = vst.msk [vmem:[#allocation3 + $0x98] sm:$0xff] %vm648, %v2700
      %2777 = vst.msk [vmem:[#allocation3 + $0xa0] sm:$0xff] %vm648, %v2702
      %2778 = vst.msk [vmem:[#allocation3 + $0xa8] sm:$0xff] %vm648, %v2704
      %2779 = vst.msk [vmem:[#allocation3 + $0xb0] sm:$0xff] %vm648, %v2706
      %2780 = vst.msk [vmem:[#allocation3 + $0xb8] sm:$0xff] %vm648, %v2708
      %2781 = vst.msk [vmem:[#allocation3 + $0xc0] sm:$0xff] %vm648, %v2710
      %2782 = vst.msk [vmem:[#allocation3 + $0xc8] sm:$0xff] %vm648, %v2712
      %2783 = vst.msk [vmem:[#allocation3 + $0xd0] sm:$0xff] %vm648, %v2714
      %2784 = vst.msk [vmem:[#allocation3 + $0xd8] sm:$0xff] %vm648, %v2716
      %2785 = vst.msk [vmem:[#allocation3 + $0xe0] sm:$0xff] %vm648, %v2718
      %2786 = vst.msk [vmem:[#allocation3 + $0xe8] sm:$0xff] %vm648, %v2720
      %2787 = vst.msk [vmem:[#allocation3 + $0xf0] sm:$0xff] %vm648, %v2722
      %2788 = vst.msk [vmem:[#allocation3 + $0xf8] sm:$0xff] %vm648, %v2724
      %v2789 = vld [vmem:[#allocation2 + $0x2] sm:$0xff]
      %v2790 = vld [vmem:[#allocation2 + $0xa] sm:$0xff]
      %v2791 = vld [vmem:[#allocation2 + $0x1a] sm:$0xff]
      %v2792 = vld [vmem:[#allocation2 + $0x22] sm:$0xff]
      %v2793 = vld [vmem:[#allocation2 + $0x32] sm:$0xff]
      %v2794 = vld [vmem:[#allocation2 + $0x3a] sm:$0xff]
      %v2795 = vld [vmem:[#allocation2 + $0x4a] sm:$0xff]
      %v2796 = vld [vmem:[#allocation2 + $0x52] sm:$0xff]
      %v2797 = vld [vmem:[#allocation2 + $0x62] sm:$0xff]
      %v2798 = vld [vmem:[#allocation2 + $0x6a] sm:$0xff]
      %v2799 = vld [vmem:[#allocation2 + $0x7a] sm:$0xff]
      %v2800 = vld [vmem:[#allocation2 + $0x82] sm:$0xff]
      %v2801 = vld [vmem:[#allocation2 + $0x92] sm:$0xff]
      %v2802 = vld [vmem:[#allocation2 + $0x9a] sm:$0xff]
      %v2803 = vld [vmem:[#allocation2 + $0xaa] sm:$0xff]
      %v2804 = vld [vmem:[#allocation2 + $0xb2] sm:$0xff]
      %v2805 = vld [vmem:[#allocation2 + $0xc2] sm:$0xff]
      %v2806 = vld [vmem:[#allocation2 + $0xca] sm:$0xff]
      %v2807 = vld [vmem:[#allocation2 + $0xda] sm:$0xff]
      %v2808 = vld [vmem:[#allocation2 + $0xe2] sm:$0xff]
      %v2809 = vld [vmem:[#allocation2 + $0xf2] sm:$0xff]
      %v2810 = vld [vmem:[#allocation2 + $0xfa] sm:$0xff]
      %v2811 = vld [vmem:[#allocation2 + $0x10a] sm:$0xff]
      %v2812 = vld [vmem:[#allocation2 + $0x112] sm:$0xff]
      %v2813 = vld [vmem:[#allocation2 + $0x122] sm:$0xff]
      %v2814 = vld [vmem:[#allocation2 + $0x12a] sm:$0xff]
      %v2815 = vld [vmem:[#allocation2 + $0x13a] sm:$0xff]
      %v2816 = vld [vmem:[#allocation2 + $0x142] sm:$0xff]
      %v2817 = vld [vmem:[#allocation2 + $0x152] sm:$0xff]
      %v2818 = vld [vmem:[#allocation2 + $0x15a] sm:$0xff]
      %v2819 = vld [vmem:[#allocation2 + $0x16a] sm:$0xff]
      %v2820 = vld [vmem:[#allocation2 + $0x172] sm:$0xff]
      %2853 = vrot.lane.b32.xlu0 %v2789, 8
      %v2854 = vpop.permute.xlu0 %2853
      %2855 = vrot.lane.b32.xlu0 %v2790, 8
      %v2856 = vpop.permute.xlu0 %2855
      %2857 = vrot.lane.b32.xlu0 %v2791, 8
      %v2858 = vpop.permute.xlu0 %2857
      %2859 = vrot.lane.b32.xlu0 %v2792, 8
      %v2860 = vpop.permute.xlu0 %2859
      %2861 = vrot.lane.b32.xlu0 %v2793, 8
      %v2862 = vpop.permute.xlu0 %2861
      %2863 = vrot.lane.b32.xlu0 %v2794, 8
      %v2864 = vpop.permute.xlu0 %2863
      %2865 = vrot.lane.b32.xlu0 %v2795, 8
      %v2866 = vpop.permute.xlu0 %2865
      %2867 = vrot.lane.b32.xlu0 %v2796, 8
      %v2868 = vpop.permute.xlu0 %2867
      %2869 = vrot.lane.b32.xlu0 %v2797, 8
      %v2870 = vpop.permute.xlu0 %2869
      %2871 = vrot.lane.b32.xlu0 %v2798, 8
      %v2872 = vpop.permute.xlu0 %2871
      %2873 = vrot.lane.b32.xlu0 %v2799, 8
      %v2874 = vpop.permute.xlu0 %2873
      %2875 = vrot.lane.b32.xlu0 %v2800, 8
      %v2876 = vpop.permute.xlu0 %2875
      %2877 = vrot.lane.b32.xlu0 %v2801, 8
      %v2878 = vpop.permute.xlu0 %2877
      %2879 = vrot.lane.b32.xlu0 %v2802, 8
      %v2880 = vpop.permute.xlu0 %2879
      %2881 = vrot.lane.b32.xlu0 %v2803, 8
      %v2882 = vpop.permute.xlu0 %2881
      %2883 = vrot.lane.b32.xlu0 %v2804, 8
      %v2884 = vpop.permute.xlu0 %2883
      %2885 = vrot.lane.b32.xlu0 %v2805, 8
      %v2886 = vpop.permute.xlu0 %2885
      %2887 = vrot.lane.b32.xlu0 %v2806, 8
      %v2888 = vpop.permute.xlu0 %2887
      %2889 = vrot.lane.b32.xlu0 %v2807, 8
      %v2890 = vpop.permute.xlu0 %2889
      %2891 = vrot.lane.b32.xlu0 %v2808, 8
      %v2892 = vpop.permute.xlu0 %2891
      %2893 = vrot.lane.b32.xlu0 %v2809, 8
      %v2894 = vpop.permute.xlu0 %2893
      %2895 = vrot.lane.b32.xlu0 %v2810, 8
      %v2896 = vpop.permute.xlu0 %2895
      %2897 = vrot.lane.b32.xlu0 %v2811, 8
      %v2898 = vpop.permute.xlu0 %2897
      %2899 = vrot.lane.b32.xlu0 %v2812, 8
      %v2900 = vpop.permute.xlu0 %2899
      %2901 = vrot.lane.b32.xlu0 %v2813, 8
      %v2902 = vpop.permute.xlu0 %2901
      %2903 = vrot.lane.b32.xlu0 %v2814, 8
      %v2904 = vpop.permute.xlu0 %2903
      %2905 = vrot.lane.b32.xlu0 %v2815, 8
      %v2906 = vpop.permute.xlu0 %2905
      %2907 = vrot.lane.b32.xlu0 %v2816, 8
      %v2908 = vpop.permute.xlu0 %2907
      %2909 = vrot.lane.b32.xlu0 %v2817, 8
      %v2910 = vpop.permute.xlu0 %2909
      %2911 = vrot.lane.b32.xlu0 %v2818, 8
      %v2912 = vpop.permute.xlu0 %2911
      %2913 = vrot.lane.b32.xlu0 %v2819, 8
      %v2914 = vpop.permute.xlu0 %2913
      %2915 = vrot.lane.b32.xlu0 %v2820, 8
      %v2916 = vpop.permute.xlu0 %2915
      %2949 = vst.msk [vmem:[#allocation3] sm:$0xff] %vm841, %v2854
      %2950 = vst.msk [vmem:[#allocation3 + $0x8] sm:$0xff] %vm841, %v2856
      %2951 = vst.msk [vmem:[#allocation3 + $0x10] sm:$0xff] %vm841, %v2858
      %2952 = vst.msk [vmem:[#allocation3 + $0x18] sm:$0xff] %vm841, %v2860
      %2953 = vst.msk [vmem:[#allocation3 + $0x20] sm:$0xff] %vm841, %v2862
      %2954 = vst.msk [vmem:[#allocation3 + $0x28] sm:$0xff] %vm841, %v2864
      %2955 = vst.msk [vmem:[#allocation3 + $0x30] sm:$0xff] %vm841, %v2866
      %2956 = vst.msk [vmem:[#allocation3 + $0x38] sm:$0xff] %vm841, %v2868
      %2957 = vst.msk [vmem:[#allocation3 + $0x40] sm:$0xff] %vm841, %v2870
      %2958 = vst.msk [vmem:[#allocation3 + $0x48] sm:$0xff] %vm841, %v2872
      %2959 = vst.msk [vmem:[#allocation3 + $0x50] sm:$0xff] %vm841, %v2874
      %2960 = vst.msk [vmem:[#allocation3 + $0x58] sm:$0xff] %vm841, %v2876
      %2961 = vst.msk [vmem:[#allocation3 + $0x60] sm:$0xff] %vm841, %v2878
      %2962 = vst.msk [vmem:[#allocation3 + $0x68] sm:$0xff] %vm841, %v2880
      %2963 = vst.msk [vmem:[#allocation3 + $0x70] sm:$0xff] %vm841, %v2882
      %2964 = vst.msk [vmem:[#allocation3 + $0x78] sm:$0xff] %vm841, %v2884
      %2965 = vst.msk [vmem:[#allocation3 + $0x80] sm:$0xff] %vm841, %v2886
      %2966 = vst.msk [vmem:[#allocation3 + $0x88] sm:$0xff] %vm841, %v2888
      %2967 = vst.msk [vmem:[#allocation3 + $0x90] sm:$0xff] %vm841, %v2890
      %2968 = vst.msk [vmem:[#allocation3 + $0x98] sm:$0xff] %vm841, %v2892
      %2969 = vst.msk [vmem:[#allocation3 + $0xa0] sm:$0xff] %vm841, %v2894
      %2970 = vst.msk [vmem:[#allocation3 + $0xa8] sm:$0xff] %vm841, %v2896
      %2971 = vst.msk [vmem:[#allocation3 + $0xb0] sm:$0xff] %vm841, %v2898
      %2972 = vst.msk [vmem:[#allocation3 + $0xb8] sm:$0xff] %vm841, %v2900
      %2973 = vst.msk [vmem:[#allocation3 + $0xc0] sm:$0xff] %vm841, %v2902
      %2974 = vst.msk [vmem:[#allocation3 + $0xc8] sm:$0xff] %vm841, %v2904
      %2975 = vst.msk [vmem:[#allocation3 + $0xd0] sm:$0xff] %vm841, %v2906
      %2976 = vst.msk [vmem:[#allocation3 + $0xd8] sm:$0xff] %vm841, %v2908
      %2977 = vst.msk [vmem:[#allocation3 + $0xe0] sm:$0xff] %vm841, %v2910
      %2978 = vst.msk [vmem:[#allocation3 + $0xe8] sm:$0xff] %vm841, %v2912
      %2979 = vst.msk [vmem:[#allocation3 + $0xf0] sm:$0xff] %vm841, %v2914
      %2980 = vst.msk [vmem:[#allocation3 + $0xf8] sm:$0xff] %vm841, %v2916
      %v2981 = vld [vmem:[%s312] sm:$0xff]
      %v2982 = vld [vmem:[%s312 + $0x8] sm:$0xff]
      %v2983 = vld [vmem:[%s312 + $0x18] sm:$0xff]
      %v2984 = vld [vmem:[%s312 + $0x20] sm:$0xff]
      %v2985 = vld [vmem:[%s312 + $0x30] sm:$0xff]
      %v2986 = vld [vmem:[%s312 + $0x38] sm:$0xff]
      %v2987 = vld [vmem:[%s312 + $0x48] sm:$0xff]
      %v2988 = vld [vmem:[%s312 + $0x50] sm:$0xff]
      %v2989 = vld [vmem:[%s312 + $0x60] sm:$0xff]
      %v2990 = vld [vmem:[%s312 + $0x68] sm:$0xff]
      %v2991 = vld [vmem:[%s312 + $0x78] sm:$0xff]
      %v2992 = vld [vmem:[%s312 + $0x80] sm:$0xff]
      %v2993 = vld [vmem:[%s312 + $0x90] sm:$0xff]
      %v2994 = vld [vmem:[%s312 + $0x98] sm:$0xff]
      %v2995 = vld [vmem:[%s312 + $0xa8] sm:$0xff]
      %v2996 = vld [vmem:[%s312 + $0xb0] sm:$0xff]
      %v2997 = vld [vmem:[%s312 + $0xc0] sm:$0xff]
      %v2998 = vld [vmem:[%s312 + $0xc8] sm:$0xff]
      %v2999 = vld [vmem:[%s312 + $0xd8] sm:$0xff]
      %v3000 = vld [vmem:[%s312 + $0xe0] sm:$0xff]
      %v3001 = vld [vmem:[%s312 + $0xf0] sm:$0xff]
      %v3002 = vld [vmem:[%s312 + $0xf8] sm:$0xff]
      %v3003 = vld [vmem:[%s312 + $0x108] sm:$0xff]
      %v3004 = vld [vmem:[%s312 + $0x110] sm:$0xff]
      %v3005 = vld [vmem:[%s312 + $0x120] sm:$0xff]
      %v3006 = vld [vmem:[%s312 + $0x128] sm:$0xff]
      %v3007 = vld [vmem:[%s312 + $0x138] sm:$0xff]
      %v3008 = vld [vmem:[%s312 + $0x140] sm:$0xff]
      %v3009 = vld [vmem:[%s312 + $0x150] sm:$0xff]
      %v3010 = vld [vmem:[%s312 + $0x158] sm:$0xff]
      %v3011 = vld [vmem:[%s312 + $0x168] sm:$0xff]
      %v3012 = vld [vmem:[%s312 + $0x170] sm:$0xff]
      %3045 = vrot.lane.b32.xlu0 %v2981, 12
      %v3046 = vpop.permute.xlu0 %3045
      %3047 = vrot.lane.b32.xlu0 %v2982, 12
      %v3048 = vpop.permute.xlu0 %3047
      %3049 = vrot.lane.b32.xlu0 %v2983, 12
      %v3050 = vpop.permute.xlu0 %3049
      %3051 = vrot.lane.b32.xlu0 %v2984, 12
      %v3052 = vpop.permute.xlu0 %3051
      %3053 = vrot.lane.b32.xlu0 %v2985, 12
      %v3054 = vpop.permute.xlu0 %3053
      %3055 = vrot.lane.b32.xlu0 %v2986, 12
      %v3056 = vpop.permute.xlu0 %3055
      %3057 = vrot.lane.b32.xlu0 %v2987, 12
      %v3058 = vpop.permute.xlu0 %3057
      %3059 = vrot.lane.b32.xlu0 %v2988, 12
      %v3060 = vpop.permute.xlu0 %3059
      %3061 = vrot.lane.b32.xlu0 %v2989, 12
      %v3062 = vpop.permute.xlu0 %3061
      %3063 = vrot.lane.b32.xlu0 %v2990, 12
      %v3064 = vpop.permute.xlu0 %3063
      %3065 = vrot.lane.b32.xlu0 %v2991, 12
      %v3066 = vpop.permute.xlu0 %3065
      %3067 = vrot.lane.b32.xlu0 %v2992, 12
      %v3068 = vpop.permute.xlu0 %3067
      %3069 = vrot.lane.b32.xlu0 %v2993, 12
      %v3070 = vpop.permute.xlu0 %3069
      %3071 = vrot.lane.b32.xlu0 %v2994, 12
      %v3072 = vpop.permute.xlu0 %3071
      %3073 = vrot.lane.b32.xlu0 %v2995, 12
      %v3074 = vpop.permute.xlu0 %3073
      %3075 = vrot.lane.b32.xlu0 %v2996, 12
      %v3076 = vpop.permute.xlu0 %3075
      %3077 = vrot.lane.b32.xlu0 %v2997, 12
      %v3078 = vpop.permute.xlu0 %3077
      %3079 = vrot.lane.b32.xlu0 %v2998, 12
      %v3080 = vpop.permute.xlu0 %3079
      %3081 = vrot.lane.b32.xlu0 %v2999, 12
      %v3082 = vpop.permute.xlu0 %3081
      %3083 = vrot.lane.b32.xlu0 %v3000, 12
      %v3084 = vpop.permute.xlu0 %3083
      %3085 = vrot.lane.b32.xlu0 %v3001, 12
      %v3086 = vpop.permute.xlu0 %3085
      %3087 = vrot.lane.b32.xlu0 %v3002, 12
      %v3088 = vpop.permute.xlu0 %3087
      %3089 = vrot.lane.b32.xlu0 %v3003, 12
      %v3090 = vpop.permute.xlu0 %3089
      %3091 = vrot.lane.b32.xlu0 %v3004, 12
      %v3092 = vpop.permute.xlu0 %3091
      %3093 = vrot.lane.b32.xlu0 %v3005, 12
      %v3094 = vpop.permute.xlu0 %3093
      %3095 = vrot.lane.b32.xlu0 %v3006, 12
      %v3096 = vpop.permute.xlu0 %3095
      %3097 = vrot.lane.b32.xlu0 %v3007, 12
      %v3098 = vpop.permute.xlu0 %3097
      %3099 = vrot.lane.b32.xlu0 %v3008, 12
      %v3100 = vpop.permute.xlu0 %3099
      %3101 = vrot.lane.b32.xlu0 %v3009, 12
      %v3102 = vpop.permute.xlu0 %3101
      %3103 = vrot.lane.b32.xlu0 %v3010, 12
      %v3104 = vpop.permute.xlu0 %3103
      %3105 = vrot.lane.b32.xlu0 %v3011, 12
      %v3106 = vpop.permute.xlu0 %3105
      %3107 = vrot.lane.b32.xlu0 %v3012, 12
      %v3108 = vpop.permute.xlu0 %3107
      %3141 = vst.msk [vmem:[#allocation3] sm:$0xff] %vm1034, %v3046
      %3142 = vst.msk [vmem:[#allocation3 + $0x8] sm:$0xff] %vm1034, %v3048
      %3143 = vst.msk [vmem:[#allocation3 + $0x10] sm:$0xff] %vm1034, %v3050
      %3144 = vst.msk [vmem:[#allocation3 + $0x18] sm:$0xff] %vm1034, %v3052
      %3145 = vst.msk [vmem:[#allocation3 + $0x20] sm:$0xff] %vm1034, %v3054
      %3146 = vst.msk [vmem:[#allocation3 + $0x28] sm:$0xff] %vm1034, %v3056
      %3147 = vst.msk [vmem:[#allocation3 + $0x30] sm:$0xff] %vm1034, %v3058
      %3148 = vst.msk [vmem:[#allocation3 + $0x38] sm:$0xff] %vm1034, %v3060
      %3149 = vst.msk [vmem:[#allocation3 + $0x40] sm:$0xff] %vm1034, %v3062
      %3150 = vst.msk [vmem:[#allocation3 + $0x48] sm:$0xff] %vm1034, %v3064
      %3151 = vst.msk [vmem:[#allocation3 + $0x50] sm:$0xff] %vm1034, %v3066
      %3152 = vst.msk [vmem:[#allocation3 + $0x58] sm:$0xff] %vm1034, %v3068
      %3153 = vst.msk [vmem:[#allocation3 + $0x60] sm:$0xff] %vm1034, %v3070
      %3154 = vst.msk [vmem:[#allocation3 + $0x68] sm:$0xff] %vm1034, %v3072
      %3155 = vst.msk [vmem:[#allocation3 + $0x70] sm:$0xff] %vm1034, %v3074
      %3156 = vst.msk [vmem:[#allocation3 + $0x78] sm:$0xff] %vm1034, %v3076
      %3157 = vst.msk [vmem:[#allocation3 + $0x80] sm:$0xff] %vm1034, %v3078
      %3158 = vst.msk [vmem:[#allocation3 + $0x88] sm:$0xff] %vm1034, %v3080
      %3159 = vst.msk [vmem:[#allocation3 + $0x90] sm:$0xff] %vm1034, %v3082
      %3160 = vst.msk [vmem:[#allocation3 + $0x98] sm:$0xff] %vm1034, %v3084
      %3161 = vst.msk [vmem:[#allocation3 + $0xa0] sm:$0xff] %vm1034, %v3086
      %3162 = vst.msk [vmem:[#allocation3 + $0xa8] sm:$0xff] %vm1034, %v3088
      %3163 = vst.msk [vmem:[#allocation3 + $0xb0] sm:$0xff] %vm1034, %v3090
      %3164 = vst.msk [vmem:[#allocation3 + $0xb8] sm:$0xff] %vm1034, %v3092
      %3165 = vst.msk [vmem:[#allocation3 + $0xc0] sm:$0xff] %vm1034, %v3094
      %3166 = vst.msk [vmem:[#allocation3 + $0xc8] sm:$0xff] %vm1034, %v3096
      %3167 = vst.msk [vmem:[#allocation3 + $0xd0] sm:$0xff] %vm1034, %v3098
      %3168 = vst.msk [vmem:[#allocation3 + $0xd8] sm:$0xff] %vm1034, %v3100
      %3169 = vst.msk [vmem:[#allocation3 + $0xe0] sm:$0xff] %vm1034, %v3102
      %3170 = vst.msk [vmem:[#allocation3 + $0xe8] sm:$0xff] %vm1034, %v3104
      %3171 = vst.msk [vmem:[#allocation3 + $0xf0] sm:$0xff] %vm1034, %v3106
      %3172 = vst.msk [vmem:[#allocation3 + $0xf8] sm:$0xff] %vm1034, %v3108
      %v3173 = vld [vmem:[%s312 + $0x1] sm:$0xff]
      %v3174 = vld [vmem:[%s312 + $0x9] sm:$0xff]
      %v3175 = vld [vmem:[%s312 + $0x19] sm:$0xff]
      %v3176 = vld [vmem:[%s312 + $0x21] sm:$0xff]
      %v3177 = vld [vmem:[%s312 + $0x31] sm:$0xff]
      %v3178 = vld [vmem:[%s312 + $0x39] sm:$0xff]
      %v3179 = vld [vmem:[%s312 + $0x49] sm:$0xff]
      %v3180 = vld [vmem:[%s312 + $0x51] sm:$0xff]
      %v3181 = vld [vmem:[%s312 + $0x61] sm:$0xff]
      %v3182 = vld [vmem:[%s312 + $0x69] sm:$0xff]
      %v3183 = vld [vmem:[%s312 + $0x79] sm:$0xff]
      %v3184 = vld [vmem:[%s312 + $0x81] sm:$0xff]
      %v3185 = vld [vmem:[%s312 + $0x91] sm:$0xff]
      %v3186 = vld [vmem:[%s312 + $0x99] sm:$0xff]
      %v3187 = vld [vmem:[%s312 + $0xa9] sm:$0xff]
      %v3188 = vld [vmem:[%s312 + $0xb1] sm:$0xff]
      %v3189 = vld [vmem:[%s312 + $0xc1] sm:$0xff]
      %v3190 = vld [vmem:[%s312 + $0xc9] sm:$0xff]
      %v3191 = vld [vmem:[%s312 + $0xd9] sm:$0xff]
      %v3192 = vld [vmem:[%s312 + $0xe1] sm:$0xff]
      %v3193 = vld [vmem:[%s312 + $0xf1] sm:$0xff]
      %v3194 = vld [vmem:[%s312 + $0xf9] sm:$0xff]
      %v3195 = vld [vmem:[%s312 + $0x109] sm:$0xff]
      %v3196 = vld [vmem:[%s312 + $0x111] sm:$0xff]
      %v3197 = vld [vmem:[%s312 + $0x121] sm:$0xff]
      %v3198 = vld [vmem:[%s312 + $0x129] sm:$0xff]
      %v3199 = vld [vmem:[%s312 + $0x139] sm:$0xff]
      %v3200 = vld [vmem:[%s312 + $0x141] sm:$0xff]
      %v3201 = vld [vmem:[%s312 + $0x151] sm:$0xff]
      %v3202 = vld [vmem:[%s312 + $0x159] sm:$0xff]
      %v3203 = vld [vmem:[%s312 + $0x169] sm:$0xff]
      %v3204 = vld [vmem:[%s312 + $0x171] sm:$0xff]
      %3237 = vrot.lane.b32.xlu0 %v3173, 16
      %v3238 = vpop.permute.xlu0 %3237
      %3239 = vrot.lane.b32.xlu0 %v3174, 16
      %v3240 = vpop.permute.xlu0 %3239
      %3241 = vrot.lane.b32.xlu0 %v3175, 16
      %v3242 = vpop.permute.xlu0 %3241
      %3243 = vrot.lane.b32.xlu0 %v3176, 16
      %v3244 = vpop.permute.xlu0 %3243
      %3245 = vrot.lane.b32.xlu0 %v3177, 16
      %v3246 = vpop.permute.xlu0 %3245
      %3247 = vrot.lane.b32.xlu0 %v3178, 16
      %v3248 = vpop.permute.xlu0 %3247
      %3249 = vrot.lane.b32.xlu0 %v3179, 16
      %v3250 = vpop.permute.xlu0 %3249
      %3251 = vrot.lane.b32.xlu0 %v3180, 16
      %v3252 = vpop.permute.xlu0 %3251
      %3253 = vrot.lane.b32.xlu0 %v3181, 16
      %v3254 = vpop.permute.xlu0 %3253
      %3255 = vrot.lane.b32.xlu0 %v3182, 16
      %v3256 = vpop.permute.xlu0 %3255
      %3257 = vrot.lane.b32.xlu0 %v3183, 16
      %v3258 = vpop.permute.xlu0 %3257
      %3259 = vrot.lane.b32.xlu0 %v3184, 16
      %v3260 = vpop.permute.xlu0 %3259
      %3261 = vrot.lane.b32.xlu0 %v3185, 16
      %v3262 = vpop.permute.xlu0 %3261
      %3263 = vrot.lane.b32.xlu0 %v3186, 16
      %v3264 = vpop.permute.xlu0 %3263
      %3265 = vrot.lane.b32.xlu0 %v3187, 16
      %v3266 = vpop.permute.xlu0 %3265
      %3267 = vrot.lane.b32.xlu0 %v3188, 16
      %v3268 = vpop.permute.xlu0 %3267
      %3269 = vrot.lane.b32.xlu0 %v3189, 16
      %v3270 = vpop.permute.xlu0 %3269
      %3271 = vrot.lane.b32.xlu0 %v3190, 16
      %v3272 = vpop.permute.xlu0 %3271
      %3273 = vrot.lane.b32.xlu0 %v3191, 16
      %v3274 = vpop.permute.xlu0 %3273
      %3275 = vrot.lane.b32.xlu0 %v3192, 16
      %v3276 = vpop.permute.xlu0 %3275
      %3277 = vrot.lane.b32.xlu0 %v3193, 16
      %v3278 = vpop.permute.xlu0 %3277
      %3279 = vrot.lane.b32.xlu0 %v3194, 16
      %v3280 = vpop.permute.xlu0 %3279
      %3281 = vrot.lane.b32.xlu0 %v3195, 16
      %v3282 = vpop.permute.xlu0 %3281
      %3283 = vrot.lane.b32.xlu0 %v3196, 16
      %v3284 = vpop.permute.xlu0 %3283
      %3285 = vrot.lane.b32.xlu0 %v3197, 16
      %v3286 = vpop.permute.xlu0 %3285
      %3287 = vrot.lane.b32.xlu0 %v3198, 16
      %v3288 = vpop.permute.xlu0 %3287
      %3289 = vrot.lane.b32.xlu0 %v3199, 16
      %v3290 = vpop.permute.xlu0 %3289
      %3291 = vrot.lane.b32.xlu0 %v3200, 16
      %v3292 = vpop.permute.xlu0 %3291
      %3293 = vrot.lane.b32.xlu0 %v3201, 16
      %v3294 = vpop.permute.xlu0 %3293
      %3295 = vrot.lane.b32.xlu0 %v3202, 16
      %v3296 = vpop.permute.xlu0 %3295
      %3297 = vrot.lane.b32.xlu0 %v3203, 16
      %v3298 = vpop.permute.xlu0 %3297
      %3299 = vrot.lane.b32.xlu0 %v3204, 16
      %v3300 = vpop.permute.xlu0 %3299
      %3333 = vst.msk [vmem:[#allocation3] sm:$0xff] %vm1227, %v3238
      %3334 = vst.msk [vmem:[#allocation3 + $0x8] sm:$0xff] %vm1227, %v3240
      %3335 = vst.msk [vmem:[#allocation3 + $0x10] sm:$0xff] %vm1227, %v3242
      %3336 = vst.msk [vmem:[#allocation3 + $0x18] sm:$0xff] %vm1227, %v3244
      %3337 = vst.msk [vmem:[#allocation3 + $0x20] sm:$0xff] %vm1227, %v3246
      %3338 = vst.msk [vmem:[#allocation3 + $0x28] sm:$0xff] %vm1227, %v3248
      %3339 = vst.msk [vmem:[#allocation3 + $0x30] sm:$0xff] %vm1227, %v3250
      %3340 = vst.msk [vmem:[#allocation3 + $0x38] sm:$0xff] %vm1227, %v3252
      %3341 = vst.msk [vmem:[#allocation3 + $0x40] sm:$0xff] %vm1227, %v3254
      %3342 = vst.msk [vmem:[#allocation3 + $0x48] sm:$0xff] %vm1227, %v3256
      %3343 = vst.msk [vmem:[#allocation3 + $0x50] sm:$0xff] %vm1227, %v3258
      %3344 = vst.msk [vmem:[#allocation3 + $0x58] sm:$0xff] %vm1227, %v3260
      %3345 = vst.msk [vmem:[#allocation3 + $0x60] sm:$0xff] %vm1227, %v3262
      %3346 = vst.msk [vmem:[#allocation3 + $0x68] sm:$0xff] %vm1227, %v3264
      %3347 = vst.msk [vmem:[#allocation3 + $0x70] sm:$0xff] %vm1227, %v3266
      %3348 = vst.msk [vmem:[#allocation3 + $0x78] sm:$0xff] %vm1227, %v3268
      %3349 = vst.msk [vmem:[#allocation3 + $0x80] sm:$0xff] %vm1227, %v3270
      %3350 = vst.msk [vmem:[#allocation3 + $0x88] sm:$0xff] %vm1227, %v3272
      %3351 = vst.msk [vmem:[#allocation3 + $0x90] sm:$0xff] %vm1227, %v3274
      %3352 = vst.msk [vmem:[#allocation3 + $0x98] sm:$0xff] %vm1227, %v3276
      %3353 = vst.msk [vmem:[#allocation3 + $0xa0] sm:$0xff] %vm1227, %v3278
      %3354 = vst.msk [vmem:[#allocation3 + $0xa8] sm:$0xff] %vm1227, %v3280
      %3355 = vst.msk [vmem:[#allocation3 + $0xb0] sm:$0xff] %vm1227, %v3282
      %3356 = vst.msk [vmem:[#allocation3 + $0xb8] sm:$0xff] %vm1227, %v3284
      %3357 = vst.msk [vmem:[#allocation3 + $0xc0] sm:$0xff] %vm1227, %v3286
      %3358 = vst.msk [vmem:[#allocation3 + $0xc8] sm:$0xff] %vm1227, %v3288
      %3359 = vst.msk [vmem:[#allocation3 + $0xd0] sm:$0xff] %vm1227, %v3290
      %3360 = vst.msk [vmem:[#allocation3 + $0xd8] sm:$0xff] %vm1227, %v3292
      %3361 = vst.msk [vmem:[#allocation3 + $0xe0] sm:$0xff] %vm1227, %v3294
      %3362 = vst.msk [vmem:[#allocation3 + $0xe8] sm:$0xff] %vm1227, %v3296
      %3363 = vst.msk [vmem:[#allocation3 + $0xf0] sm:$0xff] %vm1227, %v3298
      %3364 = vst.msk [vmem:[#allocation3 + $0xf8] sm:$0xff] %vm1227, %v3300
      %v3365 = vld [vmem:[%s312 + $0x2] sm:$0xff]
      %v3366 = vld [vmem:[%s312 + $0xa] sm:$0xff]
      %v3367 = vld [vmem:[%s312 + $0x1a] sm:$0xff]
      %v3368 = vld [vmem:[%s312 + $0x22] sm:$0xff]
      %v3369 = vld [vmem:[%s312 + $0x32] sm:$0xff]
      %v3370 = vld [vmem:[%s312 + $0x3a] sm:$0xff]
      %v3371 = vld [vmem:[%s312 + $0x4a] sm:$0xff]
      %v3372 = vld [vmem:[%s312 + $0x52] sm:$0xff]
      %v3373 = vld [vmem:[%s312 + $0x62] sm:$0xff]
      %v3374 = vld [vmem:[%s312 + $0x6a] sm:$0xff]
      %v3375 = vld [vmem:[%s312 + $0x7a] sm:$0xff]
      %v3376 = vld [vmem:[%s312 + $0x82] sm:$0xff]
      %v3377 = vld [vmem:[%s312 + $0x92] sm:$0xff]
      %v3378 = vld [vmem:[%s312 + $0x9a] sm:$0xff]
      %v3379 = vld [vmem:[%s312 + $0xaa] sm:$0xff]
      %v3380 = vld [vmem:[%s312 + $0xb2] sm:$0xff]
      %v3381 = vld [vmem:[%s312 + $0xc2] sm:$0xff]
      %v3382 = vld [vmem:[%s312 + $0xca] sm:$0xff]
      %v3383 = vld [vmem:[%s312 + $0xda] sm:$0xff]
      %v3384 = vld [vmem:[%s312 + $0xe2] sm:$0xff]
      %v3385 = vld [vmem:[%s312 + $0xf2] sm:$0xff]
      %v3386 = vld [vmem:[%s312 + $0xfa] sm:$0xff]
      %v3387 = vld [vmem:[%s312 + $0x10a] sm:$0xff]
      %v3388 = vld [vmem:[%s312 + $0x112] sm:$0xff]
      %v3389 = vld [vmem:[%s312 + $0x122] sm:$0xff]
      %v3390 = vld [vmem:[%s312 + $0x12a] sm:$0xff]
      %v3391 = vld [vmem:[%s312 + $0x13a] sm:$0xff]
      %v3392 = vld [vmem:[%s312 + $0x142] sm:$0xff]
      %v3393 = vld [vmem:[%s312 + $0x152] sm:$0xff]
      %v3394 = vld [vmem:[%s312 + $0x15a] sm:$0xff]
      %v3395 = vld [vmem:[%s312 + $0x16a] sm:$0xff]
      %v3396 = vld [vmem:[%s312 + $0x172] sm:$0xff]
      %3429 = vrot.lane.b32.xlu0 %v3365, 20
      %v3430 = vpop.permute.xlu0 %3429
      %3431 = vrot.lane.b32.xlu0 %v3366, 20
      %v3432 = vpop.permute.xlu0 %3431
      %3433 = vrot.lane.b32.xlu0 %v3367, 20
      %v3434 = vpop.permute.xlu0 %3433
      %3435 = vrot.lane.b32.xlu0 %v3368, 20
      %v3436 = vpop.permute.xlu0 %3435
      %3437 = vrot.lane.b32.xlu0 %v3369, 20
      %v3438 = vpop.permute.xlu0 %3437
      %3439 = vrot.lane.b32.xlu0 %v3370, 20
      %v3440 = vpop.permute.xlu0 %3439
      %3441 = vrot.lane.b32.xlu0 %v3371, 20
      %v3442 = vpop.permute.xlu0 %3441
      %3443 = vrot.lane.b32.xlu0 %v3372, 20
      %v3444 = vpop.permute.xlu0 %3443
      %3445 = vrot.lane.b32.xlu0 %v3373, 20
      %v3446 = vpop.permute.xlu0 %3445
      %3447 = vrot.lane.b32.xlu0 %v3374, 20
      %v3448 = vpop.permute.xlu0 %3447
      %3449 = vrot.lane.b32.xlu0 %v3375, 20
      %v3450 = vpop.permute.xlu0 %3449
      %3451 = vrot.lane.b32.xlu0 %v3376, 20
      %v3452 = vpop.permute.xlu0 %3451
      %3453 = vrot.lane.b32.xlu0 %v3377, 20
      %v3454 = vpop.permute.xlu0 %3453
      %3455 = vrot.lane.b32.xlu0 %v3378, 20
      %v3456 = vpop.permute.xlu0 %3455
      %3457 = vrot.lane.b32.xlu0 %v3379, 20
      %v3458 = vpop.permute.xlu0 %3457
      %3459 = vrot.lane.b32.xlu0 %v3380, 20
      %v3460 = vpop.permute.xlu0 %3459
      %3461 = vrot.lane.b32.xlu0 %v3381, 20
      %v3462 = vpop.permute.xlu0 %3461
      %3463 = vrot.lane.b32.xlu0 %v3382, 20
      %v3464 = vpop.permute.xlu0 %3463
      %3465 = vrot.lane.b32.xlu0 %v3383, 20
      %v3466 = vpop.permute.xlu0 %3465
      %3467 = vrot.lane.b32.xlu0 %v3384, 20
      %v3468 = vpop.permute.xlu0 %3467
      %3469 = vrot.lane.b32.xlu0 %v3385, 20
      %v3470 = vpop.permute.xlu0 %3469
      %3471 = vrot.lane.b32.xlu0 %v3386, 20
      %v3472 = vpop.permute.xlu0 %3471
      %3473 = vrot.lane.b32.xlu0 %v3387, 20
      %v3474 = vpop.permute.xlu0 %3473
      %3475 = vrot.lane.b32.xlu0 %v3388, 20
      %v3476 = vpop.permute.xlu0 %3475
      %3477 = vrot.lane.b32.xlu0 %v3389, 20
      %v3478 = vpop.permute.xlu0 %3477
      %3479 = vrot.lane.b32.xlu0 %v3390, 20
      %v3480 = vpop.permute.xlu0 %3479
      %3481 = vrot.lane.b32.xlu0 %v3391, 20
      %v3482 = vpop.permute.xlu0 %3481
      %3483 = vrot.lane.b32.xlu0 %v3392, 20
      %v3484 = vpop.permute.xlu0 %3483
      %3485 = vrot.lane.b32.xlu0 %v3393, 20
      %v3486 = vpop.permute.xlu0 %3485
      %3487 = vrot.lane.b32.xlu0 %v3394, 20
      %v3488 = vpop.permute.xlu0 %3487
      %3489 = vrot.lane.b32.xlu0 %v3395, 20
      %v3490 = vpop.permute.xlu0 %3489
      %3491 = vrot.lane.b32.xlu0 %v3396, 20
      %v3492 = vpop.permute.xlu0 %3491
      %3525 = vst.msk [vmem:[#allocation3] sm:$0xff] %vm1420, %v3430
      %3526 = vst.msk [vmem:[#allocation3 + $0x8] sm:$0xff] %vm1420, %v3432
      %3527 = vst.msk [vmem:[#allocation3 + $0x10] sm:$0xff] %vm1420, %v3434
      %3528 = vst.msk [vmem:[#allocation3 + $0x18] sm:$0xff] %vm1420, %v3436
      %3529 = vst.msk [vmem:[#allocation3 + $0x20] sm:$0xff] %vm1420, %v3438
      %3530 = vst.msk [vmem:[#allocation3 + $0x28] sm:$0xff] %vm1420, %v3440
      %3531 = vst.msk [vmem:[#allocation3 + $0x30] sm:$0xff] %vm1420, %v3442
      %3532 = vst.msk [vmem:[#allocation3 + $0x38] sm:$0xff] %vm1420, %v3444
      %3533 = vst.msk [vmem:[#allocation3 + $0x40] sm:$0xff] %vm1420, %v3446
      %3534 = vst.msk [vmem:[#allocation3 + $0x48] sm:$0xff] %vm1420, %v3448
      %3535 = vst.msk [vmem:[#allocation3 + $0x50] sm:$0xff] %vm1420, %v3450
      %3536 = vst.msk [vmem:[#allocation3 + $0x58] sm:$0xff] %vm1420, %v3452
      %3537 = vst.msk [vmem:[#allocation3 + $0x60] sm:$0xff] %vm1420, %v3454
      %3538 = vst.msk [vmem:[#allocation3 + $0x68] sm:$0xff] %vm1420, %v3456
      %3539 = vst.msk [vmem:[#allocation3 + $0x70] sm:$0xff] %vm1420, %v3458
      %3540 = vst.msk [vmem:[#allocation3 + $0x78] sm:$0xff] %vm1420, %v3460
      %3541 = vst.msk [vmem:[#allocation3 + $0x80] sm:$0xff] %vm1420, %v3462
      %3542 = vst.msk [vmem:[#allocation3 + $0x88] sm:$0xff] %vm1420, %v3464
      %3543 = vst.msk [vmem:[#allocation3 + $0x90] sm:$0xff] %vm1420, %v3466
      %3544 = vst.msk [vmem:[#allocation3 + $0x98] sm:$0xff] %vm1420, %v3468
      %3545 = vst.msk [vmem:[#allocation3 + $0xa0] sm:$0xff] %vm1420, %v3470
      %3546 = vst.msk [vmem:[#allocation3 + $0xa8] sm:$0xff] %vm1420, %v3472
      %3547 = vst.msk [vmem:[#allocation3 + $0xb0] sm:$0xff] %vm1420, %v3474
      %3548 = vst.msk [vmem:[#allocation3 + $0xb8] sm:$0xff] %vm1420, %v3476
      %3549 = vst.msk [vmem:[#allocation3 + $0xc0] sm:$0xff] %vm1420, %v3478
      %3550 = vst.msk [vmem:[#allocation3 + $0xc8] sm:$0xff] %vm1420, %v3480
      %3551 = vst.msk [vmem:[#allocation3 + $0xd0] sm:$0xff] %vm1420, %v3482
      %3552 = vst.msk [vmem:[#allocation3 + $0xd8] sm:$0xff] %vm1420, %v3484
      %3553 = vst.msk [vmem:[#allocation3 + $0xe0] sm:$0xff] %vm1420, %v3486
      %3554 = vst.msk [vmem:[#allocation3 + $0xe8] sm:$0xff] %vm1420, %v3488
      %3555 = vst.msk [vmem:[#allocation3 + $0xf0] sm:$0xff] %vm1420, %v3490
      %3556 = vst.msk [vmem:[#allocation3 + $0xf8] sm:$0xff] %vm1420, %v3492
      %v3557 = vld [vmem:[%s1453] sm:$0xff]
      %v3558 = vld [vmem:[%s1453 + $0x8] sm:$0xff]
      %v3559 = vld [vmem:[%s1453 + $0x18] sm:$0xff]
      %v3560 = vld [vmem:[%s1453 + $0x20] sm:$0xff]
      %v3561 = vld [vmem:[%s1453 + $0x30] sm:$0xff]
      %v3562 = vld [vmem:[%s1453 + $0x38] sm:$0xff]
      %v3563 = vld [vmem:[%s1453 + $0x48] sm:$0xff]
      %v3564 = vld [vmem:[%s1453 + $0x50] sm:$0xff]
      %v3565 = vld [vmem:[%s1453 + $0x60] sm:$0xff]
      %v3566 = vld [vmem:[%s1453 + $0x68] sm:$0xff]
      %v3567 = vld [vmem:[%s1453 + $0x78] sm:$0xff]
      %v3568 = vld [vmem:[%s1453 + $0x80] sm:$0xff]
      %v3569 = vld [vmem:[%s1453 + $0x90] sm:$0xff]
      %v3570 = vld [vmem:[%s1453 + $0x98] sm:$0xff]
      %v3571 = vld [vmem:[%s1453 + $0xa8] sm:$0xff]
      %v3572 = vld [vmem:[%s1453 + $0xb0] sm:$0xff]
      %v3573 = vld [vmem:[%s1453 + $0xc0] sm:$0xff]
      %v3574 = vld [vmem:[%s1453 + $0xc8] sm:$0xff]
      %v3575 = vld [vmem:[%s1453 + $0xd8] sm:$0xff]
      %v3576 = vld [vmem:[%s1453 + $0xe0] sm:$0xff]
      %v3577 = vld [vmem:[%s1453 + $0xf0] sm:$0xff]
      %v3578 = vld [vmem:[%s1453 + $0xf8] sm:$0xff]
      %v3579 = vld [vmem:[%s1453 + $0x108] sm:$0xff]
      %v3580 = vld [vmem:[%s1453 + $0x110] sm:$0xff]
      %v3581 = vld [vmem:[%s1453 + $0x120] sm:$0xff]
      %v3582 = vld [vmem:[%s1453 + $0x128] sm:$0xff]
      %v3583 = vld [vmem:[%s1453 + $0x138] sm:$0xff]
      %v3584 = vld [vmem:[%s1453 + $0x140] sm:$0xff]
      %v3585 = vld [vmem:[%s1453 + $0x150] sm:$0xff]
      %v3586 = vld [vmem:[%s1453 + $0x158] sm:$0xff]
      %v3587 = vld [vmem:[%s1453 + $0x168] sm:$0xff]
      %v3588 = vld [vmem:[%s1453 + $0x170] sm:$0xff]
      %3621 = vrot.lane.b32.xlu0 %v3557, 24
      %v3622 = vpop.permute.xlu0 %3621
      %3623 = vrot.lane.b32.xlu0 %v3558, 24
      %v3624 = vpop.permute.xlu0 %3623
      %3625 = vrot.lane.b32.xlu0 %v3559, 24
      %v3626 = vpop.permute.xlu0 %3625
      %3627 = vrot.lane.b32.xlu0 %v3560, 24
      %v3628 = vpop.permute.xlu0 %3627
      %3629 = vrot.lane.b32.xlu0 %v3561, 24
      %v3630 = vpop.permute.xlu0 %3629
      %3631 = vrot.lane.b32.xlu0 %v3562, 24
      %v3632 = vpop.permute.xlu0 %3631
      %3633 = vrot.lane.b32.xlu0 %v3563, 24
      %v3634 = vpop.permute.xlu0 %3633
      %3635 = vrot.lane.b32.xlu0 %v3564, 24
      %v3636 = vpop.permute.xlu0 %3635
      %3637 = vrot.lane.b32.xlu0 %v3565, 24
      %v3638 = vpop.permute.xlu0 %3637
      %3639 = vrot.lane.b32.xlu0 %v3566, 24
      %v3640 = vpop.permute.xlu0 %3639
      %3641 = vrot.lane.b32.xlu0 %v3567, 24
      %v3642 = vpop.permute.xlu0 %3641
      %3643 = vrot.lane.b32.xlu0 %v3568, 24
      %v3644 = vpop.permute.xlu0 %3643
      %3645 = vrot.lane.b32.xlu0 %v3569, 24
      %v3646 = vpop.permute.xlu0 %3645
      %3647 = vrot.lane.b32.xlu0 %v3570, 24
      %v3648 = vpop.permute.xlu0 %3647
      %3649 = vrot.lane.b32.xlu0 %v3571, 24
      %v3650 = vpop.permute.xlu0 %3649
      %3651 = vrot.lane.b32.xlu0 %v3572, 24
      %v3652 = vpop.permute.xlu0 %3651
      %3653 = vrot.lane.b32.xlu0 %v3573, 24
      %v3654 = vpop.permute.xlu0 %3653
      %3655 = vrot.lane.b32.xlu0 %v3574, 24
      %v3656 = vpop.permute.xlu0 %3655
      %3657 = vrot.lane.b32.xlu0 %v3575, 24
      %v3658 = vpop.permute.xlu0 %3657
      %3659 = vrot.lane.b32.xlu0 %v3576, 24
      %v3660 = vpop.permute.xlu0 %3659
      %3661 = vrot.lane.b32.xlu0 %v3577, 24
      %v3662 = vpop.permute.xlu0 %3661
      %3663 = vrot.lane.b32.xlu0 %v3578, 24
      %v3664 = vpop.permute.xlu0 %3663
      %3665 = vrot.lane.b32.xlu0 %v3579, 24
      %v3666 = vpop.permute.xlu0 %3665
      %3667 = vrot.lane.b32.xlu0 %v3580, 24
      %v3668 = vpop.permute.xlu0 %3667
      %3669 = vrot.lane.b32.xlu0 %v3581, 24
      %v3670 = vpop.permute.xlu0 %3669
      %3671 = vrot.lane.b32.xlu0 %v3582, 24
      %v3672 = vpop.permute.xlu0 %3671
      %3673 = vrot.lane.b32.xlu0 %v3583, 24
      %v3674 = vpop.permute.xlu0 %3673
      %3675 = vrot.lane.b32.xlu0 %v3584, 24
      %v3676 = vpop.permute.xlu0 %3675
      %3677 = vrot.lane.b32.xlu0 %v3585, 24
      %v3678 = vpop.permute.xlu0 %3677
      %3679 = vrot.lane.b32.xlu0 %v3586, 24
      %v3680 = vpop.permute.xlu0 %3679
      %3681 = vrot.lane.b32.xlu0 %v3587, 24
      %v3682 = vpop.permute.xlu0 %3681
      %3683 = vrot.lane.b32.xlu0 %v3588, 24
      %v3684 = vpop.permute.xlu0 %3683
      %3717 = vst.msk [vmem:[#allocation3] sm:$0xff] %vm1614, %v3622
      %3718 = vst.msk [vmem:[#allocation3 + $0x8] sm:$0xff] %vm1614, %v3624
      %3719 = vst.msk [vmem:[#allocation3 + $0x10] sm:$0xff] %vm1614, %v3626
      %3720 = vst.msk [vmem:[#allocation3 + $0x18] sm:$0xff] %vm1614, %v3628
      %3721 = vst.msk [vmem:[#allocation3 + $0x20] sm:$0xff] %vm1614, %v3630
      %3722 = vst.msk [vmem:[#allocation3 + $0x28] sm:$0xff] %vm1614, %v3632
      %3723 = vst.msk [vmem:[#allocation3 + $0x30] sm:$0xff] %vm1614, %v3634
      %3724 = vst.msk [vmem:[#allocation3 + $0x38] sm:$0xff] %vm1614, %v3636
      %3725 = vst.msk [vmem:[#allocation3 + $0x40] sm:$0xff] %vm1614, %v3638
      %3726 = vst.msk [vmem:[#allocation3 + $0x48] sm:$0xff] %vm1614, %v3640
      %3727 = vst.msk [vmem:[#allocation3 + $0x50] sm:$0xff] %vm1614, %v3642
      %3728 = vst.msk [vmem:[#allocation3 + $0x58] sm:$0xff] %vm1614, %v3644
      %3729 = vst.msk [vmem:[#allocation3 + $0x60] sm:$0xff] %vm1614, %v3646
      %3730 = vst.msk [vmem:[#allocation3 + $0x68] sm:$0xff] %vm1614, %v3648
      %3731 = vst.msk [vmem:[#allocation3 + $0x70] sm:$0xff] %vm1614, %v3650
      %3732 = vst.msk [vmem:[#allocation3 + $0x78] sm:$0xff] %vm1614, %v3652
      %3733 = vst.msk [vmem:[#allocation3 + $0x80] sm:$0xff] %vm1614, %v3654
      %3734 = vst.msk [vmem:[#allocation3 + $0x88] sm:$0xff] %vm1614, %v3656
      %3735 = vst.msk [vmem:[#allocation3 + $0x90] sm:$0xff] %vm1614, %v3658
      %3736 = vst.msk [vmem:[#allocation3 + $0x98] sm:$0xff] %vm1614, %v3660
      %3737 = vst.msk [vmem:[#allocation3 + $0xa0] sm:$0xff] %vm1614, %v3662
      %3738 = vst.msk [vmem:[#allocation3 + $0xa8] sm:$0xff] %vm1614, %v3664
      %3739 = vst.msk [vmem:[#allocation3 + $0xb0] sm:$0xff] %vm1614, %v3666
      %3740 = vst.msk [vmem:[#allocation3 + $0xb8] sm:$0xff] %vm1614, %v3668
      %3741 = vst.msk [vmem:[#allocation3 + $0xc0] sm:$0xff] %vm1614, %v3670
      %3742 = vst.msk [vmem:[#allocation3 + $0xc8] sm:$0xff] %vm1614, %v3672
      %3743 = vst.msk [vmem:[#allocation3 + $0xd0] sm:$0xff] %vm1614, %v3674
      %3744 = vst.msk [vmem:[#allocation3 + $0xd8] sm:$0xff] %vm1614, %v3676
      %3745 = vst.msk [vmem:[#allocation3 + $0xe0] sm:$0xff] %vm1614, %v3678
      %3746 = vst.msk [vmem:[#allocation3 + $0xe8] sm:$0xff] %vm1614, %v3680
      %3747 = vst.msk [vmem:[#allocation3 + $0xf0] sm:$0xff] %vm1614, %v3682
      %3748 = vst.msk [vmem:[#allocation3 + $0xf8] sm:$0xff] %vm1614, %v3684
      %v3749 = vld [vmem:[%s1453 + $0x1] sm:$0xff]
      %v3750 = vld [vmem:[%s1453 + $0x9] sm:$0xff]
      %v3751 = vld [vmem:[%s1453 + $0x19] sm:$0xff]
      %v3752 = vld [vmem:[%s1453 + $0x21] sm:$0xff]
      %v3753 = vld [vmem:[%s1453 + $0x31] sm:$0xff]
      %v3754 = vld [vmem:[%s1453 + $0x39] sm:$0xff]
      %v3755 = vld [vmem:[%s1453 + $0x49] sm:$0xff]
      %v3756 = vld [vmem:[%s1453 + $0x51] sm:$0xff]
      %v3757 = vld [vmem:[%s1453 + $0x61] sm:$0xff]
      %v3758 = vld [vmem:[%s1453 + $0x69] sm:$0xff]
      %v3759 = vld [vmem:[%s1453 + $0x79] sm:$0xff]
      %v3760 = vld [vmem:[%s1453 + $0x81] sm:$0xff]
      %v3761 = vld [vmem:[%s1453 + $0x91] sm:$0xff]
      %v3762 = vld [vmem:[%s1453 + $0x99] sm:$0xff]
      %v3763 = vld [vmem:[%s1453 + $0xa9] sm:$0xff]
      %v3764 = vld [vmem:[%s1453 + $0xb1] sm:$0xff]
      %v3765 = vld [vmem:[%s1453 + $0xc1] sm:$0xff]
      %v3766 = vld [vmem:[%s1453 + $0xc9] sm:$0xff]
      %v3767 = vld [vmem:[%s1453 + $0xd9] sm:$0xff]
      %v3768 = vld [vmem:[%s1453 + $0xe1] sm:$0xff]
      %v3769 = vld [vmem:[%s1453 + $0xf1] sm:$0xff]
      %v3770 = vld [vmem:[%s1453 + $0xf9] sm:$0xff]
      %v3771 = vld [vmem:[%s1453 + $0x109] sm:$0xff]
      %v3772 = vld [vmem:[%s1453 + $0x111] sm:$0xff]
      %v3773 = vld [vmem:[%s1453 + $0x121] sm:$0xff]
      %v3774 = vld [vmem:[%s1453 + $0x129] sm:$0xff]
      %v3775 = vld [vmem:[%s1453 + $0x139] sm:$0xff]
      %v3776 = vld [vmem:[%s1453 + $0x141] sm:$0xff]
      %v3777 = vld [vmem:[%s1453 + $0x151] sm:$0xff]
      %v3778 = vld [vmem:[%s1453 + $0x159] sm:$0xff]
      %v3779 = vld [vmem:[%s1453 + $0x169] sm:$0xff]
      %v3780 = vld [vmem:[%s1453 + $0x171] sm:$0xff]
      %3813 = vrot.lane.b32.xlu0 %v3749, 28
      %v3814 = vpop.permute.xlu0 %3813
      %3815 = vrot.lane.b32.xlu0 %v3750, 28
      %v3816 = vpop.permute.xlu0 %3815
      %3817 = vrot.lane.b32.xlu0 %v3751, 28
      %v3818 = vpop.permute.xlu0 %3817
      %3819 = vrot.lane.b32.xlu0 %v3752, 28
      %v3820 = vpop.permute.xlu0 %3819
      %3821 = vrot.lane.b32.xlu0 %v3753, 28
      %v3822 = vpop.permute.xlu0 %3821
      %3823 = vrot.lane.b32.xlu0 %v3754, 28
      %v3824 = vpop.permute.xlu0 %3823
      %3825 = vrot.lane.b32.xlu0 %v3755, 28
      %v3826 = vpop.permute.xlu0 %3825
      %3827 = vrot.lane.b32.xlu0 %v3756, 28
      %v3828 = vpop.permute.xlu0 %3827
      %3829 = vrot.lane.b32.xlu0 %v3757, 28
      %v3830 = vpop.permute.xlu0 %3829
      %3831 = vrot.lane.b32.xlu0 %v3758, 28
      %v3832 = vpop.permute.xlu0 %3831
      %3833 = vrot.lane.b32.xlu0 %v3759, 28
      %v3834 = vpop.permute.xlu0 %3833
      %3835 = vrot.lane.b32.xlu0 %v3760, 28
      %v3836 = vpop.permute.xlu0 %3835
      %3837 = vrot.lane.b32.xlu0 %v3761, 28
      %v3838 = vpop.permute.xlu0 %3837
      %3839 = vrot.lane.b32.xlu0 %v3762, 28
      %v3840 = vpop.permute.xlu0 %3839
      %3841 = vrot.lane.b32.xlu0 %v3763, 28
      %v3842 = vpop.permute.xlu0 %3841
      %3843 = vrot.lane.b32.xlu0 %v3764, 28
      %v3844 = vpop.permute.xlu0 %3843
      %3845 = vrot.lane.b32.xlu0 %v3765, 28
      %v3846 = vpop.permute.xlu0 %3845
      %3847 = vrot.lane.b32.xlu0 %v3766, 28
      %v3848 = vpop.permute.xlu0 %3847
      %3849 = vrot.lane.b32.xlu0 %v3767, 28
      %v3850 = vpop.permute.xlu0 %3849
      %3851 = vrot.lane.b32.xlu0 %v3768, 28
      %v3852 = vpop.permute.xlu0 %3851
      %3853 = vrot.lane.b32.xlu0 %v3769, 28
      %v3854 = vpop.permute.xlu0 %3853
      %3855 = vrot.lane.b32.xlu0 %v3770, 28
      %v3856 = vpop.permute.xlu0 %3855
      %3857 = vrot.lane.b32.xlu0 %v3771, 28
      %v3858 = vpop.permute.xlu0 %3857
      %3859 = vrot.lane.b32.xlu0 %v3772, 28
      %v3860 = vpop.permute.xlu0 %3859
      %3861 = vrot.lane.b32.xlu0 %v3773, 28
      %v3862 = vpop.permute.xlu0 %3861
      %3863 = vrot.lane.b32.xlu0 %v3774, 28
      %v3864 = vpop.permute.xlu0 %3863
      %3865 = vrot.lane.b32.xlu0 %v3775, 28
      %v3866 = vpop.permute.xlu0 %3865
      %3867 = vrot.lane.b32.xlu0 %v3776, 28
      %v3868 = vpop.permute.xlu0 %3867
      %3869 = vrot.lane.b32.xlu0 %v3777, 28
      %v3870 = vpop.permute.xlu0 %3869
      %3871 = vrot.lane.b32.xlu0 %v3778, 28
      %v3872 = vpop.permute.xlu0 %3871
      %3873 = vrot.lane.b32.xlu0 %v3779, 28
      %v3874 = vpop.permute.xlu0 %3873
      %3875 = vrot.lane.b32.xlu0 %v3780, 28
      %v3876 = vpop.permute.xlu0 %3875
      %3909 = vst.msk [vmem:[#allocation3] sm:$0xff] %vm1807, %v3814
      %3910 = vst.msk [vmem:[#allocation3 + $0x8] sm:$0xff] %vm1807, %v3816
      %3911 = vst.msk [vmem:[#allocation3 + $0x10] sm:$0xff] %vm1807, %v3818
      %3912 = vst.msk [vmem:[#allocation3 + $0x18] sm:$0xff] %vm1807, %v3820
      %3913 = vst.msk [vmem:[#allocation3 + $0x20] sm:$0xff] %vm1807, %v3822
      %3914 = vst.msk [vmem:[#allocation3 + $0x28] sm:$0xff] %vm1807, %v3824
      %3915 = vst.msk [vmem:[#allocation3 + $0x30] sm:$0xff] %vm1807, %v3826
      %3916 = vst.msk [vmem:[#allocation3 + $0x38] sm:$0xff] %vm1807, %v3828
      %3917 = vst.msk [vmem:[#allocation3 + $0x40] sm:$0xff] %vm1807, %v3830
      %3918 = vst.msk [vmem:[#allocation3 + $0x48] sm:$0xff] %vm1807, %v3832
      %3919 = vst.msk [vmem:[#allocation3 + $0x50] sm:$0xff] %vm1807, %v3834
      %3920 = vst.msk [vmem:[#allocation3 + $0x58] sm:$0xff] %vm1807, %v3836
      %3921 = vst.msk [vmem:[#allocation3 + $0x60] sm:$0xff] %vm1807, %v3838
      %3922 = vst.msk [vmem:[#allocation3 + $0x68] sm:$0xff] %vm1807, %v3840
      %3923 = vst.msk [vmem:[#allocation3 + $0x70] sm:$0xff] %vm1807, %v3842
      %3924 = vst.msk [vmem:[#allocation3 + $0x78] sm:$0xff] %vm1807, %v3844
      %3925 = vst.msk [vmem:[#allocation3 + $0x80] sm:$0xff] %vm1807, %v3846
      %3926 = vst.msk [vmem:[#allocation3 + $0x88] sm:$0xff] %vm1807, %v3848
      %3927 = vst.msk [vmem:[#allocation3 + $0x90] sm:$0xff] %vm1807, %v3850
      %3928 = vst.msk [vmem:[#allocation3 + $0x98] sm:$0xff] %vm1807, %v3852
      %3929 = vst.msk [vmem:[#allocation3 + $0xa0] sm:$0xff] %vm1807, %v3854
      %3930 = vst.msk [vmem:[#allocation3 + $0xa8] sm:$0xff] %vm1807, %v3856
      %3931 = vst.msk [vmem:[#allocation3 + $0xb0] sm:$0xff] %vm1807, %v3858
      %3932 = vst.msk [vmem:[#allocation3 + $0xb8] sm:$0xff] %vm1807, %v3860
      %3933 = vst.msk [vmem:[#allocation3 + $0xc0] sm:$0xff] %vm1807, %v3862
      %3934 = vst.msk [vmem:[#allocation3 + $0xc8] sm:$0xff] %vm1807, %v3864
      %3935 = vst.msk [vmem:[#allocation3 + $0xd0] sm:$0xff] %vm1807, %v3866
      %3936 = vst.msk [vmem:[#allocation3 + $0xd8] sm:$0xff] %vm1807, %v3868
      %3937 = vst.msk [vmem:[#allocation3 + $0xe0] sm:$0xff] %vm1807, %v3870
      %3938 = vst.msk [vmem:[#allocation3 + $0xe8] sm:$0xff] %vm1807, %v3872
      %3939 = vst.msk [vmem:[#allocation3 + $0xf0] sm:$0xff] %vm1807, %v3874
      %3940 = vst.msk [vmem:[#allocation3 + $0xf8] sm:$0xff] %vm1807, %v3876
      %v3941 = vld [vmem:[%s1453 + $0x2] sm:$0xff]
      %v3942 = vld [vmem:[%s1453 + $0xa] sm:$0xff]
      %v3943 = vld [vmem:[%s1453 + $0x1a] sm:$0xff]
      %v3944 = vld [vmem:[%s1453 + $0x22] sm:$0xff]
      %v3945 = vld [vmem:[%s1453 + $0x32] sm:$0xff]
      %v3946 = vld [vmem:[%s1453 + $0x3a] sm:$0xff]
      %v3947 = vld [vmem:[%s1453 + $0x4a] sm:$0xff]
      %v3948 = vld [vmem:[%s1453 + $0x52] sm:$0xff]
      %v3949 = vld [vmem:[%s1453 + $0x62] sm:$0xff]
      %v3950 = vld [vmem:[%s1453 + $0x6a] sm:$0xff]
      %v3951 = vld [vmem:[%s1453 + $0x7a] sm:$0xff]
      %v3952 = vld [vmem:[%s1453 + $0x82] sm:$0xff]
      %v3953 = vld [vmem:[%s1453 + $0x92] sm:$0xff]
      %v3954 = vld [vmem:[%s1453 + $0x9a] sm:$0xff]
      %v3955 = vld [vmem:[%s1453 + $0xaa] sm:$0xff]
      %v3956 = vld [vmem:[%s1453 + $0xb2] sm:$0xff]
      %v3957 = vld [vmem:[%s1453 + $0xc2] sm:$0xff]
      %v3958 = vld [vmem:[%s1453 + $0xca] sm:$0xff]
      %v3959 = vld [vmem:[%s1453 + $0xda] sm:$0xff]
      %v3960 = vld [vmem:[%s1453 + $0xe2] sm:$0xff]
      %v3961 = vld [vmem:[%s1453 + $0xf2] sm:$0xff]
      %v3962 = vld [vmem:[%s1453 + $0xfa] sm:$0xff]
      %v3963 = vld [vmem:[%s1453 + $0x10a] sm:$0xff]
      %v3964 = vld [vmem:[%s1453 + $0x112] sm:$0xff]
      %v3965 = vld [vmem:[%s1453 + $0x122] sm:$0xff]
      %v3966 = vld [vmem:[%s1453 + $0x12a] sm:$0xff]
      %v3967 = vld [vmem:[%s1453 + $0x13a] sm:$0xff]
      %v3968 = vld [vmem:[%s1453 + $0x142] sm:$0xff]
      %v3969 = vld [vmem:[%s1453 + $0x152] sm:$0xff]
      %v3970 = vld [vmem:[%s1453 + $0x15a] sm:$0xff]
      %v3971 = vld [vmem:[%s1453 + $0x16a] sm:$0xff]
      %v3972 = vld [vmem:[%s1453 + $0x172] sm:$0xff]
      %4005 = vrot.lane.b32.xlu0 %v3941, 32
      %v4006 = vpop.permute.xlu0 %4005
      %4007 = vrot.lane.b32.xlu0 %v3942, 32
      %v4008 = vpop.permute.xlu0 %4007
      %4009 = vrot.lane.b32.xlu0 %v3943, 32
      %v4010 = vpop.permute.xlu0 %4009
      %4011 = vrot.lane.b32.xlu0 %v3944, 32
      %v4012 = vpop.permute.xlu0 %4011
      %4013 = vrot.lane.b32.xlu0 %v3945, 32
      %v4014 = vpop.permute.xlu0 %4013
      %4015 = vrot.lane.b32.xlu0 %v3946, 32
      %v4016 = vpop.permute.xlu0 %4015
      %4017 = vrot.lane.b32.xlu0 %v3947, 32
      %v4018 = vpop.permute.xlu0 %4017
      %4019 = vrot.lane.b32.xlu0 %v3948, 32
      %v4020 = vpop.permute.xlu0 %4019
      %4021 = vrot.lane.b32.xlu0 %v3949, 32
      %v4022 = vpop.permute.xlu0 %4021
      %4023 = vrot.lane.b32.xlu0 %v3950, 32
      %v4024 = vpop.permute.xlu0 %4023
      %4025 = vrot.lane.b32.xlu0 %v3951, 32
      %v4026 = vpop.permute.xlu0 %4025
      %4027 = vrot.lane.b32.xlu0 %v3952, 32
      %v4028 = vpop.permute.xlu0 %4027
      %4029 = vrot.lane.b32.xlu0 %v3953, 32
      %v4030 = vpop.permute.xlu0 %4029
      %4031 = vrot.lane.b32.xlu0 %v3954, 32
      %v4032 = vpop.permute.xlu0 %4031
      %4033 = vrot.lane.b32.xlu0 %v3955, 32
      %v4034 = vpop.permute.xlu0 %4033
      %4035 = vrot.lane.b32.xlu0 %v3956, 32
      %v4036 = vpop.permute.xlu0 %4035
      %4037 = vrot.lane.b32.xlu0 %v3957, 32
      %v4038 = vpop.permute.xlu0 %4037
      %4039 = vrot.lane.b32.xlu0 %v3958, 32
      %v4040 = vpop.permute.xlu0 %4039
      %4041 = vrot.lane.b32.xlu0 %v3959, 32
      %v4042 = vpop.permute.xlu0 %4041
      %4043 = vrot.lane.b32.xlu0 %v3960, 32
      %v4044 = vpop.permute.xlu0 %4043
      %4045 = vrot.lane.b32.xlu0 %v3961, 32
      %v4046 = vpop.permute.xlu0 %4045
      %4047 = vrot.lane.b32.xlu0 %v3962, 32
      %v4048 = vpop.permute.xlu0 %4047
      %4049 = vrot.lane.b32.xlu0 %v3963, 32
      %v4050 = vpop.permute.xlu0 %4049
      %4051 = vrot.lane.b32.xlu0 %v3964, 32
      %v4052 = vpop.permute.xlu0 %4051
      %4053 = vrot.lane.b32.xlu0 %v3965, 32
      %v4054 = vpop.permute.xlu0 %4053
      %4055 = vrot.lane.b32.xlu0 %v3966, 32
      %v4056 = vpop.permute.xlu0 %4055
      %4057 = vrot.lane.b32.xlu0 %v3967, 32
      %v4058 = vpop.permute.xlu0 %4057
      %4059 = vrot.lane.b32.xlu0 %v3968, 32
      %v4060 = vpop.permute.xlu0 %4059
      %4061 = vrot.lane.b32.xlu0 %v3969, 32
      %v4062 = vpop.permute.xlu0 %4061
      %4063 = vrot.lane.b32.xlu0 %v3970, 32
      %v4064 = vpop.permute.xlu0 %4063
      %4065 = vrot.lane.b32.xlu0 %v3971, 32
      %v4066 = vpop.permute.xlu0 %4065
      %4067 = vrot.lane.b32.xlu0 %v3972, 32
      %v4068 = vpop.permute.xlu0 %4067
      %4101 = vst.msk [vmem:[#allocation3] sm:$0xff] %vm2000, %v4006
      %4102 = vst.msk [vmem:[#allocation3 + $0x8] sm:$0xff] %vm2000, %v4008
      %4103 = vst.msk [vmem:[#allocation3 + $0x10] sm:$0xff] %vm2000, %v4010
      %4104 = vst.msk [vmem:[#allocation3 + $0x18] sm:$0xff] %vm2000, %v4012
      %4105 = vst.msk [vmem:[#allocation3 + $0x20] sm:$0xff] %vm2000, %v4014
      %4106 = vst.msk [vmem:[#allocation3 + $0x28] sm:$0xff] %vm2000, %v4016
      %4107 = vst.msk [vmem:[#allocation3 + $0x30] sm:$0xff] %vm2000, %v4018
      %4108 = vst.msk [vmem:[#allocation3 + $0x38] sm:$0xff] %vm2000, %v4020
      %4109 = vst.msk [vmem:[#allocation3 + $0x40] sm:$0xff] %vm2000, %v4022
      %4110 = vst.msk [vmem:[#allocation3 + $0x48] sm:$0xff] %vm2000, %v4024
      %4111 = vst.msk [vmem:[#allocation3 + $0x50] sm:$0xff] %vm2000, %v4026
      %4112 = vst.msk [vmem:[#allocation3 + $0x58] sm:$0xff] %vm2000, %v4028
      %4113 = vst.msk [vmem:[#allocation3 + $0x60] sm:$0xff] %vm2000, %v4030
      %4114 = vst.msk [vmem:[#allocation3 + $0x68] sm:$0xff] %vm2000, %v4032
      %4115 = vst.msk [vmem:[#allocation3 + $0x70] sm:$0xff] %vm2000, %v4034
      %4116 = vst.msk [vmem:[#allocation3 + $0x78] sm:$0xff] %vm2000, %v4036
      %4117 = vst.msk [vmem:[#allocation3 + $0x80] sm:$0xff] %vm2000, %v4038
      %4118 = vst.msk [vmem:[#allocation3 + $0x88] sm:$0xff] %vm2000, %v4040
      %4119 = vst.msk [vmem:[#allocation3 + $0x90] sm:$0xff] %vm2000, %v4042
      %4120 = vst.msk [vmem:[#allocation3 + $0x98] sm:$0xff] %vm2000, %v4044
      %4121 = vst.msk [vmem:[#allocation3 + $0xa0] sm:$0xff] %vm2000, %v4046
      %4122 = vst.msk [vmem:[#allocation3 + $0xa8] sm:$0xff] %vm2000, %v4048
      %4123 = vst.msk [vmem:[#allocation3 + $0xb0] sm:$0xff] %vm2000, %v4050
      %4124 = vst.msk [vmem:[#allocation3 + $0xb8] sm:$0xff] %vm2000, %v4052
      %4125 = vst.msk [vmem:[#allocation3 + $0xc0] sm:$0xff] %vm2000, %v4054
      %4126 = vst.msk [vmem:[#allocation3 + $0xc8] sm:$0xff] %vm2000, %v4056
      %4127 = vst.msk [vmem:[#allocation3 + $0xd0] sm:$0xff] %vm2000, %v4058
      %4128 = vst.msk [vmem:[#allocation3 + $0xd8] sm:$0xff] %vm2000, %v4060
      %4129 = vst.msk [vmem:[#allocation3 + $0xe0] sm:$0xff] %vm2000, %v4062
      %4130 = vst.msk [vmem:[#allocation3 + $0xe8] sm:$0xff] %vm2000, %v4064
      %4131 = vst.msk [vmem:[#allocation3 + $0xf0] sm:$0xff] %vm2000, %v4066
      %4132 = vst.msk [vmem:[#allocation3 + $0xf8] sm:$0xff] %vm2000, %v4068
      %v4133 = vld [vmem:[#allocation3] sm:$0xff]
      %v4134 = vld [vmem:[#allocation3 + $0x8] sm:$0xff]
      %v4135 = vld [vmem:[#allocation3 + $0x10] sm:$0xff]
      %v4136 = vld [vmem:[#allocation3 + $0x18] sm:$0xff]
      %v4137 = vld [vmem:[#allocation3 + $0x20] sm:$0xff]
      %v4138 = vld [vmem:[#allocation3 + $0x28] sm:$0xff]
      %v4139 = vld [vmem:[#allocation3 + $0x30] sm:$0xff]
      %v4140 = vld [vmem:[#allocation3 + $0x38] sm:$0xff]
      %v4141 = vld [vmem:[#allocation3 + $0x40] sm:$0xff]
      %v4142 = vld [vmem:[#allocation3 + $0x48] sm:$0xff]
      %v4143 = vld [vmem:[#allocation3 + $0x50] sm:$0xff]
      %v4144 = vld [vmem:[#allocation3 + $0x58] sm:$0xff]
      %v4145 = vld [vmem:[#allocation3 + $0x60] sm:$0xff]
      %v4146 = vld [vmem:[#allocation3 + $0x68] sm:$0xff]
      %v4147 = vld [vmem:[#allocation3 + $0x70] sm:$0xff]
      %v4148 = vld [vmem:[#allocation3 + $0x78] sm:$0xff]
      %v4149 = vld [vmem:[#allocation3 + $0x80] sm:$0xff]
      %v4150 = vld [vmem:[#allocation3 + $0x88] sm:$0xff]
      %v4151 = vld [vmem:[#allocation3 + $0x90] sm:$0xff]
      %v4152 = vld [vmem:[#allocation3 + $0x98] sm:$0xff]
      %v4153 = vld [vmem:[#allocation3 + $0xa0] sm:$0xff]
      %v4154 = vld [vmem:[#allocation3 + $0xa8] sm:$0xff]
      %v4155 = vld [vmem:[#allocation3 + $0xb0] sm:$0xff]
      %v4156 = vld [vmem:[#allocation3 + $0xb8] sm:$0xff]
      %v4157 = vld [vmem:[#allocation3 + $0xc0] sm:$0xff]
      %v4158 = vld [vmem:[#allocation3 + $0xc8] sm:$0xff]
      %v4159 = vld [vmem:[#allocation3 + $0xd0] sm:$0xff]
      %v4160 = vld [vmem:[#allocation3 + $0xd8] sm:$0xff]
      %v4161 = vld [vmem:[#allocation3 + $0xe0] sm:$0xff]
      %v4162 = vld [vmem:[#allocation3 + $0xe8] sm:$0xff]
      %v4163 = vld [vmem:[#allocation3 + $0xf0] sm:$0xff]
      %v4164 = vld [vmem:[#allocation3 + $0xf8] sm:$0xff]
      %v4165 = vpack.c.bf16 %v4134, %v4133
      %v4166 = vpack.c.bf16 %v4136, %v4135
      %v4167 = vpack.c.bf16 %v4138, %v4137
      %v4168 = vpack.c.bf16 %v4140, %v4139
      %v4169 = vpack.c.bf16 %v4142, %v4141
      %v4170 = vpack.c.bf16 %v4144, %v4143
      %v4171 = vpack.c.bf16 %v4146, %v4145
      %v4172 = vpack.c.bf16 %v4148, %v4147
      %v4173 = vpack.c.bf16 %v4150, %v4149
      %v4174 = vpack.c.bf16 %v4152, %v4151
      %v4175 = vpack.c.bf16 %v4154, %v4153
      %v4176 = vpack.c.bf16 %v4156, %v4155
      %v4177 = vpack.c.bf16 %v4158, %v4157
      %v4178 = vpack.c.bf16 %v4160, %v4159
      %v4179 = vpack.c.bf16 %v4162, %v4161
      %v4180 = vpack.c.bf16 %v4164, %v4163
      %v4181 = vld [vmem:[%s4] sm:$0xf]
      %v4182 = vld [vmem:[%s4 + $0x4] sm:$0xf]
      %v4183 = vld [vmem:[%s4 + $0x8] sm:$0xf]
      %v4184 = vld [vmem:[%s4 + $0xc] sm:$0xf]
      %v4185 = vld [vmem:[%s4 + $0x10] sm:$0x3]
      %v4191 = vunpack.c.l.b16 %v4181
      %v4192 = vunpack.c.l.b16 %v4182
      %v4193 = vunpack.c.l.b16 %v4183
      %v4194 = vunpack.c.l.b16 %v4184
      %v4195 = vunpack.c.l.b16 %v4185
      %v4196 = vpack.c.b16 %v4192, %v4191
      %v4197 = vpack.c.b16 %v4194, %v4193
      %v4198 = vpack.c.b16 %v4195, %v4195
      %v4202 = vsel %vm2101, %v4165, 0
      %v4205 = vsel %vm2101, %v4166, 0
      %v4208 = vsel %vm2101, %v4167, 0
      %v4211 = vsel %vm2101, %v4168, 0
      %v4214 = vsel %vm2101, %v4169, 0
      %v4217 = vsel %vm2101, %v4170, 0
      %v4220 = vsel %vm2101, %v4171, 0
      %v4223 = vsel %vm2101, %v4172, 0
      %v4226 = vsel %vm2101, %v4173, 0
      %v4229 = vsel %vm2101, %v4174, 0
      %v4232 = vsel %vm2101, %v4175, 0
      %v4235 = vsel %vm2101, %v4176, 0
      %v4238 = vsel %vm2101, %v4177, 0
      %v4241 = vsel %vm2101, %v4178, 0
      %v4244 = vsel %vm2101, %v4179, 0
      %v4247 = vsel %vm2101, %v4180, 0
      %v4250 = vsel %vm2150, %v4198, 0
      %4252 = vmatprep.subr.bf16.mxu0 0
      %4253 = vmatpush1.bf16.msra.mxu0 %v4196
      %4254 = vmatprep.subr.bf16.mxu0 0
      %4255 = vmatpush1.bf16.msra.mxu0 %v4197
      %4256 = vmatprep.subr.bf16.mxu0 0
      %4257 = vmatpush1.bf16.msra.mxu0 %v4250
      %4258 = vmatprep.subr.bf16.mxu0 0
      %4259 = vmatpush1.bf16.msra.mxu0 0
      %4260 = vmatprep.subr.bf16.mxu0 0
      %4261 = vmatpush1.bf16.msra.mxu0 0
      %4262 = vmatprep.subr.bf16.mxu0 0
      %4263 = vmatpush1.bf16.msra.mxu0 0
      %4264 = vmatprep.subr.bf16.mxu0 0
      %4265 = vmatpush1.bf16.msra.mxu0 0
      %4266 = vmatprep.subr.bf16.mxu0 0
      %4267 = vmatpush1.bf16.msra.mxu0 0
      %4268 = vmatprep.subr.bf16.mxu0 0
      %4269 = vmatpush1.bf16.msra.mxu0 0
      %4270 = vmatprep.subr.bf16.mxu0 0
      %4271 = vmatpush1.bf16.msra.mxu0 0
      %4272 = vmatprep.subr.bf16.mxu0 0
      %4273 = vmatpush1.bf16.msra.mxu0 0
      %4274 = vmatprep.subr.bf16.mxu0 0
      %4275 = vmatpush1.bf16.msra.mxu0 0
      %4276 = vmatprep.subr.bf16.mxu0 0
      %4277 = vmatpush1.bf16.msra.mxu0 0
      %4278 = vmatprep.subr.bf16.mxu0 0
      %4279 = vmatpush1.bf16.msra.mxu0 0
      %4280 = vmatprep.subr.bf16.mxu0 0
      %4281 = vmatpush1.bf16.msra.mxu0 0
      %4282 = vmatprep.subr.bf16.mxu0 0
      %4283 = vmatpush1.bf16.msra.mxu0 0
      %4284 = vmatprep.mubr.bf16.mxu0 0
      %4285 = vmatmul.mubr.bf16.gmra.mrb[0].mxu0 %v4202
      %v4286 = vpop.f32.mrb[0].mxu0
      %v4287 = vadd.f32 0.0, %v4286
      %v4288 = vpop.f32.mrb[0].mxu0
      %v4289 = vpop.f32.mrb[0].mxu0
      %v4290 = vadd.f32 0.0, %v4289
      %v4291 = vpop.f32.mrb[0].mxu0
      %4292 = vmatprep.mubr.bf16.mxu0 0
      %4293 = vmatmul.mubr.bf16.gmra.mrb[0].mxu0 %v4205
      %v4294 = vpop.f32.mrb[0].mxu0
      %v4295 = vadd.f32 0.0, %v4294
      %v4296 = vpop.f32.mrb[0].mxu0
      %v4297 = vpop.f32.mrb[0].mxu0
      %v4298 = vadd.f32 0.0, %v4297
      %v4299 = vpop.f32.mrb[0].mxu0
      %4300 = vmatprep.mubr.bf16.mxu0 0
      %4301 = vmatmul.mubr.bf16.gmra.mrb[0].mxu0 %v4208
      %v4302 = vpop.f32.mrb[0].mxu0
      %v4303 = vadd.f32 0.0, %v4302
      %v4304 = vpop.f32.mrb[0].mxu0
      %v4305 = vpop.f32.mrb[0].mxu0
      %v4306 = vadd.f32 0.0, %v4305
      %v4307 = vpop.f32.mrb[0].mxu0
      %4308 = vmatprep.mubr.bf16.mxu0 0
      %4309 = vmatmul.mubr.bf16.gmra.mrb[0].mxu0 %v4211
      %v4310 = vpop.f32.mrb[0].mxu0
      %v4311 = vadd.f32 0.0, %v4310
      %v4312 = vpop.f32.mrb[0].mxu0
      %v4313 = vpop.f32.mrb[0].mxu0
      %v4314 = vadd.f32 0.0, %v4313
      %v4315 = vpop.f32.mrb[0].mxu0
      %4316 = vmatprep.mubr.bf16.mxu0 0
      %4317 = vmatmul.mubr.bf16.gmra.mrb[0].mxu0 %v4214
      %v4318 = vpop.f32.mrb[0].mxu0
      %v4319 = vadd.f32 0.0, %v4318
      %v4320 = vpop.f32.mrb[0].mxu0
      %v4321 = vpop.f32.mrb[0].mxu0
      %v4322 = vadd.f32 0.0, %v4321
      %v4323 = vpop.f32.mrb[0].mxu0
      %4324 = vmatprep.mubr.bf16.mxu0 0
      %4325 = vmatmul.mubr.bf16.gmra.mrb[0].mxu0 %v4217
      %v4326 = vpop.f32.mrb[0].mxu0
      %v4327 = vadd.f32 0.0, %v4326
      %v4328 = vpop.f32.mrb[0].mxu0
      %v4329 = vpop.f32.mrb[0].mxu0
      %v4330 = vadd.f32 0.0, %v4329
      %v4331 = vpop.f32.mrb[0].mxu0
      %4332 = vmatprep.mubr.bf16.mxu0 0
      %4333 = vmatmul.mubr.bf16.gmra.mrb[0].mxu0 %v4220
      %v4334 = vpop.f32.mrb[0].mxu0
      %v4335 = vadd.f32 0.0, %v4334
      %v4336 = vpop.f32.mrb[0].mxu0
      %v4337 = vpop.f32.mrb[0].mxu0
      %v4338 = vadd.f32 0.0, %v4337
      %v4339 = vpop.f32.mrb[0].mxu0
      %4340 = vmatprep.mubr.bf16.mxu0 0
      %4341 = vmatmul.mubr.bf16.gmra.mrb[0].mxu0 %v4223
      %v4342 = vpop.f32.mrb[0].mxu0
      %v4343 = vadd.f32 0.0, %v4342
      %v4344 = vpop.f32.mrb[0].mxu0
      %v4345 = vpop.f32.mrb[0].mxu0
      %v4346 = vadd.f32 0.0, %v4345
      %v4347 = vpop.f32.mrb[0].mxu0
      %4348 = vmatprep.mubr.bf16.mxu0 0
      %4349 = vmatmul.mubr.bf16.gmra.mrb[0].mxu0 %v4226
      %v4350 = vpop.f32.mrb[0].mxu0
      %v4351 = vadd.f32 0.0, %v4350
      %v4352 = vpop.f32.mrb[0].mxu0
      %v4353 = vpop.f32.mrb[0].mxu0
      %v4354 = vadd.f32 0.0, %v4353
      %v4355 = vpop.f32.mrb[0].mxu0
      %4356 = vmatprep.mubr.bf16.mxu0 0
      %4357 = vmatmul.mubr.bf16.gmra.mrb[0].mxu0 %v4229
      %v4358 = vpop.f32.mrb[0].mxu0
      %v4359 = vadd.f32 0.0, %v4358
      %v4360 = vpop.f32.mrb[0].mxu0
      %v4361 = vpop.f32.mrb[0].mxu0
      %v4362 = vadd.f32 0.0, %v4361
      %v4363 = vpop.f32.mrb[0].mxu0
      %4364 = vmatprep.mubr.bf16.mxu0 0
      %4365 = vmatmul.mubr.bf16.gmra.mrb[0].mxu0 %v4232
      %v4366 = vpop.f32.mrb[0].mxu0
      %v4367 = vadd.f32 0.0, %v4366
      %v4368 = vpop.f32.mrb[0].mxu0
      %v4369 = vpop.f32.mrb[0].mxu0
      %v4370 = vadd.f32 0.0, %v4369
      %v4371 = vpop.f32.mrb[0].mxu0
      %4372 = vmatprep.mubr.bf16.mxu0 0
      %4373 = vmatmul.mubr.bf16.gmra.mrb[0].mxu0 %v4235
      %v4374 = vpop.f32.mrb[0].mxu0
      %v4375 = vadd.f32 0.0, %v4374
      %v4376 = vpop.f32.mrb[0].mxu0
      %v4377 = vpop.f32.mrb[0].mxu0
      %v4378 = vadd.f32 0.0, %v4377
      %v4379 = vpop.f32.mrb[0].mxu0
      %4380 = vmatprep.mubr.bf16.mxu0 0
      %4381 = vmatmul.mubr.bf16.gmra.mrb[0].mxu0 %v4238
      %v4382 = vpop.f32.mrb[0].mxu0
      %v4383 = vadd.f32 0.0, %v4382
      %v4384 = vpop.f32.mrb[0].mxu0
      %v4385 = vpop.f32.mrb[0].mxu0
      %v4386 = vadd.f32 0.0, %v4385
      %v4387 = vpop.f32.mrb[0].mxu0
      %4388 = vmatprep.mubr.bf16.mxu0 0
      %4389 = vmatmul.mubr.bf16.gmra.mrb[0].mxu0 %v4241
      %v4390 = vpop.f32.mrb[0].mxu0
      %v4391 = vadd.f32 0.0, %v4390
      %v4392 = vpop.f32.mrb[0].mxu0
      %v4393 = vpop.f32.mrb[0].mxu0
      %v4394 = vadd.f32 0.0, %v4393
      %v4395 = vpop.f32.mrb[0].mxu0
      %4396 = vmatprep.mubr.bf16.mxu0 0
      %4397 = vmatmul.mubr.bf16.gmra.mrb[0].mxu0 %v4244
      %v4398 = vpop.f32.mrb[0].mxu0
      %v4399 = vadd.f32 0.0, %v4398
      %v4400 = vpop.f32.mrb[0].mxu0
      %v4401 = vpop.f32.mrb[0].mxu0
      %v4402 = vadd.f32 0.0, %v4401
      %v4403 = vpop.f32.mrb[0].mxu0
      %4404 = vmatprep.mubr.bf16.mxu0 0
      %4405 = vmatmul.mubr.bf16.gmra.mrb[0].mxu0 %v4247
      %v4406 = vpop.f32.mrb[0].mxu0
      %v4407 = vadd.f32 0.0, %v4406
      %v4408 = vpop.f32.mrb[0].mxu0
      %v4409 = vpop.f32.mrb[0].mxu0
      %v4410 = vadd.f32 0.0, %v4409
      %v4411 = vpop.f32.mrb[0].mxu0
      %4412 = vdwg.mxu0
      %v4413 = vld [vmem:[%s5] sm:$0x1]
      %v4415 = vlaneseq
      %v4416 = vshrl.u32 %v4415, 7
      %v4417 = vsub.s32 0, %v4416
      %v4418 = vrot.slane %v4413, %v4417
      %v4420 = vmul.f32 %v4287, %v4418
      %v4421 = vmul.f32 %v4290, %v4418
      %v4422 = vmul.f32 %v4295, %v4418
      %v4423 = vmul.f32 %v4298, %v4418
      %v4424 = vmul.f32 %v4303, %v4418
      %v4425 = vmul.f32 %v4306, %v4418
      %v4426 = vmul.f32 %v4311, %v4418
      %v4427 = vmul.f32 %v4314, %v4418
      %v4428 = vmul.f32 %v4319, %v4418
      %v4429 = vmul.f32 %v4322, %v4418
      %v4430 = vmul.f32 %v4327, %v4418
      %v4431 = vmul.f32 %v4330, %v4418
      %v4432 = vmul.f32 %v4335, %v4418
      %v4433 = vmul.f32 %v4338, %v4418
      %v4434 = vmul.f32 %v4343, %v4418
      %v4435 = vmul.f32 %v4346, %v4418
      %v4436 = vmul.f32 %v4351, %v4418
      %v4437 = vmul.f32 %v4354, %v4418
      %v4438 = vmul.f32 %v4359, %v4418
      %v4439 = vmul.f32 %v4362, %v4418
      %v4440 = vmul.f32 %v4367, %v4418
      %v4441 = vmul.f32 %v4370, %v4418
      %v4442 = vmul.f32 %v4375, %v4418
      %v4443 = vmul.f32 %v4378, %v4418
      %v4444 = vmul.f32 %v4383, %v4418
      %v4445 = vmul.f32 %v4386, %v4418
      %v4446 = vmul.f32 %v4391, %v4418
      %v4447 = vmul.f32 %v4394, %v4418
      %v4448 = vmul.f32 %v4399, %v4418
      %v4449 = vmul.f32 %v4402, %v4418
      %v4450 = vmul.f32 %v4407, %v4418
      %v4451 = vmul.f32 %v4410, %v4418
      %v4452 = vld [vmem:[%s6] sm:$0x1]
      %v4454 = vlaneseq
      %v4455 = vshrl.u32 %v4454, 7
      %v4456 = vsub.s32 0, %v4455
      %v4457 = vrot.slane %v4452, %v4456
      %v4459 = vadd.f32 %v4420, %v4457
      %v4460 = vadd.f32 %v4421, %v4457
      %v4461 = vadd.f32 %v4422, %v4457
      %v4462 = vadd.f32 %v4423, %v4457
      %v4463 = vadd.f32 %v4424, %v4457
      %v4464 = vadd.f32 %v4425, %v4457
      %v4465 = vadd.f32 %v4426, %v4457
      %v4466 = vadd.f32 %v4427, %v4457
      %v4467 = vadd.f32 %v4428, %v4457
      %v4468 = vadd.f32 %v4429, %v4457
      %v4469 = vadd.f32 %v4430, %v4457
      %v4470 = vadd.f32 %v4431, %v4457
      %v4471 = vadd.f32 %v4432, %v4457
      %v4472 = vadd.f32 %v4433, %v4457
      %v4473 = vadd.f32 %v4434, %v4457
      %v4474 = vadd.f32 %v4435, %v4457
      %v4475 = vadd.f32 %v4436, %v4457
      %v4476 = vadd.f32 %v4437, %v4457
      %v4477 = vadd.f32 %v4438, %v4457
      %v4478 = vadd.f32 %v4439, %v4457
      %v4479 = vadd.f32 %v4440, %v4457
      %v4480 = vadd.f32 %v4441, %v4457
      %v4481 = vadd.f32 %v4442, %v4457
      %v4482 = vadd.f32 %v4443, %v4457
      %v4483 = vadd.f32 %v4444, %v4457
      %v4484 = vadd.f32 %v4445, %v4457
      %v4485 = vadd.f32 %v4446, %v4457
      %v4486 = vadd.f32 %v4447, %v4457
      %v4487 = vadd.f32 %v4448, %v4457
      %v4488 = vadd.f32 %v4449, %v4457
      %v4489 = vadd.f32 %v4450, %v4457
      %v4490 = vadd.f32 %v4451, %v4457
      %v4491 = vadd.f32 %v280, %v4459
      %v4492 = vadd.f32 %v281, %v4460
      %v4493 = vadd.f32 %v282, %v4461
      %v4494 = vadd.f32 %v283, %v4462
      %v4495 = vadd.f32 %v284, %v4463
      %v4496 = vadd.f32 %v285, %v4464
      %v4497 = vadd.f32 %v286, %v4465
      %v4498 = vadd.f32 %v287, %v4466
      %v4499 = vadd.f32 %v288, %v4467
      %v4500 = vadd.f32 %v289, %v4468
      %v4501 = vadd.f32 %v290, %v4469
      %v4502 = vadd.f32 %v291, %v4470
      %v4503 = vadd.f32 %v292, %v4471
      %v4504 = vadd.f32 %v293, %v4472
      %v4505 = vadd.f32 %v294, %v4473
      %v4506 = vadd.f32 %v295, %v4474
      %v4507 = vadd.f32 %v296, %v4475
      %v4508 = vadd.f32 %v297, %v4476
      %v4509 = vadd.f32 %v298, %v4477
      %v4510 = vadd.f32 %v299, %v4478
      %v4511 = vadd.f32 %v300, %v4479
      %v4512 = vadd.f32 %v301, %v4480
      %v4513 = vadd.f32 %v302, %v4481
      %v4514 = vadd.f32 %v303, %v4482
      %v4515 = vadd.f32 %v304, %v4483
      %v4516 = vadd.f32 %v305, %v4484
      %v4517 = vadd.f32 %v306, %v4485
      %v4518 = vadd.f32 %v307, %v4486
      %v4519 = vadd.f32 %v308, %v4487
      %v4520 = vadd.f32 %v309, %v4488
      %v4521 = vadd.f32 %v310, %v4489
      %v4522 = vadd.f32 %v311, %v4490
      %4523 = vst.msk [vmem:[%s278] sm:$0xff] %vm313, %v4491
      %4524 = vst.msk [vmem:[%s278 + $0x8] sm:$0xff] %vm313, %v4492
      %4525 = vst.msk [vmem:[%s278 + $0x10] sm:$0xff] %vm313, %v4493
      %4526 = vst.msk [vmem:[%s278 + $0x18] sm:$0xff] %vm313, %v4494
      %4527 = vst.msk [vmem:[%s278 + $0x20] sm:$0xff] %vm313, %v4495
      %4528 = vst.msk [vmem:[%s278 + $0x28] sm:$0xff] %vm313, %v4496
      %4529 = vst.msk [vmem:[%s278 + $0x30] sm:$0xff] %vm313, %v4497
      %4530 = vst.msk [vmem:[%s278 + $0x38] sm:$0xff] %vm313, %v4498
      %4531 = vst.msk [vmem:[%s278 + $0x40] sm:$0xff] %vm313, %v4499
      %4532 = vst.msk [vmem:[%s278 + $0x48] sm:$0xff] %vm313, %v4500
      %4533 = vst.msk [vmem:[%s278 + $0x50] sm:$0xff] %vm313, %v4501
      %4534 = vst.msk [vmem:[%s278 + $0x58] sm:$0xff] %vm313, %v4502
      %4535 = vst.msk [vmem:[%s278 + $0x60] sm:$0xff] %vm313, %v4503
      %4536 = vst.msk [vmem:[%s278 + $0x68] sm:$0xff] %vm313, %v4504
      %4537 = vst.msk [vmem:[%s278 + $0x70] sm:$0xff] %vm313, %v4505
      %4538 = vst.msk [vmem:[%s278 + $0x78] sm:$0xff] %vm313, %v4506
      %4539 = vst.msk [vmem:[%s278 + $0x80] sm:$0xff] %vm313, %v4507
      %4540 = vst.msk [vmem:[%s278 + $0x88] sm:$0xff] %vm313, %v4508
      %4541 = vst.msk [vmem:[%s278 + $0x90] sm:$0xff] %vm313, %v4509
      %4542 = vst.msk [vmem:[%s278 + $0x98] sm:$0xff] %vm313, %v4510
      %4543 = vst.msk [vmem:[%s278 + $0xa0] sm:$0xff] %vm313, %v4511
      %4544 = vst.msk [vmem:[%s278 + $0xa8] sm:$0xff] %vm313, %v4512
      %4545 = vst.msk [vmem:[%s278 + $0xb0] sm:$0xff] %vm313, %v4513
      %4546 = vst.msk [vmem:[%s278 + $0xb8] sm:$0xff] %vm313, %v4514
      %4547 = vst.msk [vmem:[%s278 + $0xc0] sm:$0xff] %vm313, %v4515
      %4548 = vst.msk [vmem:[%s278 + $0xc8] sm:$0xff] %vm313, %v4516
      %4549 = vst.msk [vmem:[%s278 + $0xd0] sm:$0xff] %vm313, %v4517
      %4550 = vst.msk [vmem:[%s278 + $0xd8] sm:$0xff] %vm313, %v4518
      %4551 = vst.msk [vmem:[%s278 + $0xe0] sm:$0xff] %vm313, %v4519
      %4552 = vst.msk [vmem:[%s278 + $0xe8] sm:$0xff] %vm313, %v4520
      %4553 = vst.msk [vmem:[%s278 + $0xf0] sm:$0xff] %vm313, %v4521
      %4554 = vst.msk [vmem:[%s278 + $0xf8] sm:$0xff] %vm313, %v4522
      %p4555 = scmp.lt.s32.totalorder %s18, 1
      %s4556 = scalar_select %p4555, %s18, 1
      %s4557 = smul.addr %s4556, 32
      %s4558 = smul.addr %s4557, 8
      %s4559 = scalar_lea.vmem %s7, %s4558
      // Predicated region
      $region49: #{tpu_custom_call.1} parent=47 // pred_check
        %p4560 = pneg %p188
      $region50: #{tpu_custom_call.1} parent=47 // pred_check_branch
        %4562 = sbr.rel (%p4560) target = $region52
      $region51: #{tpu_custom_call.1} parent=47 // pred_region
        _
      $region52: #{tpu_custom_call.1} parent=47 // pred_fallthru
        _
    $region48: #{tpu_custom_call.1} parent=5 // pred_fallthru
      _
    %p4563 = scmp.le.s32.totalorder 2, %s13
    // Predicated region
    $region53: #{tpu_custom_call.1} parent=5 // pred_check
      %p4564 = pneg %p4563
    $region54: #{tpu_custom_call.1} parent=5 // pred_check_branch
      %4566 = sbr.rel (%p4564) target = $region56
    $region55: #{tpu_custom_call.1} parent=5 // pred_region
      %s4567 = ssub.s32 %s13, 2
      // Predicated region
      $region57: #{tpu_custom_call.1} parent=55 // pred_check
        %p4568 = pneg %p194
      $region58: #{tpu_custom_call.1} parent=55 // pred_check_branch
        %4570 = sbr.rel (%p4568) target = $region60
      $region59: #{tpu_custom_call.1} parent=55 // pred_region
        %p4571 = scmp.lt.s32.totalorder %s19, 1
        %s4572 = scalar_select %p4571, %s19, 1
        %s4573 = smul.addr %s4572, 32
        %s4574 = smul.addr %s4573, 8
        %s4575 = scalar_lea.vmem %s7, %s4574
      $region60: #{tpu_custom_call.1} parent=55 // pred_fallthru
        _
    $region56: #{tpu_custom_call.1} parent=5 // pred_fallthru
      _
  $region6: #{tpu_custom_call.1} parent=0 // loop_footer
    %s17 = sadd.s32 1, %s13
  $region7: #{tpu_custom_call.1} parent=0 // loop_footer_branch
    %12 = sbr.rel target = $region3
  $region8: #{tpu_custom_call.1} parent=0 // loop_exit
    _

</llo_original>
